<compile_context>
chip_gen: v6e
topology: v6e:2x2x1
jax: 0.10.0
libtpu: 0.0.40
codegen_flags: <defaults>
</compile_context>

<pallas_src>
import numpy as np
import jax
import jax.numpy as jnp
from jax import lax
from jax.experimental import pallas as pl
from jax.experimental.pallas import tpu as pltpu


# ---------------------------------------------------------------------------
# Pallas kernel
# ---------------------------------------------------------------------------
def _make_kernel(H, W, classes, Bc):
    HW = H * W
    L = Bc * HW                      # lane extent of every activation slab
    Ho, Wo = 2 * H, 2 * W
    HoWo = Ho * Wo

    def conv3x3(x, m_ref, w_ref, b_ref):
        """3x3 same-padding conv on a (Cin, Bc*HW) slab.

        im2col: 8 static lane rolls of x (+ identity for the centre tap)
        stacked along sublanes -> (9*Cin, L); one multiply by the pre-expanded
        0/1 border mask (also zeroes cross-image wraps when Bc > 1); one fused
        MXU matmul with W_flat (Cout, 9*Cin).
        """
        taps = []
        for dy in range(3):
            for dx in range(3):
                k = (dy - 1) * W + (dx - 1)            # flat spatial offset
                taps.append(x if k == 0 else pltpu.roll(x, shift=(-k) % L, axis=1))
        patches = jnp.concatenate(taps, axis=0) * m_ref[...]      # (9*Cin, L)
        return jnp.dot(w_ref[...], patches,
                       preferred_element_type=jnp.float32) + b_ref[...]

    def kernel(x_ref, kt_ref,
               m1_ref, w1_ref, b1_ref,
               m2_ref, w2_ref, b2_ref,
               m3_ref, w3_ref, b3_ref,
               m4_ref, w4_ref, b4_ref,
               o_ref):
        x = x_ref[0]                                              # (Cin, L)
        h = jnp.maximum(conv3x3(x, m1_ref, w1_ref, b1_ref), 0.0)
        h = jnp.maximum(conv3x3(h, m2_ref, w2_ref, b2_ref), 0.0)
        h = jnp.maximum(conv3x3(h, m3_ref, w3_ref, b3_ref), 0.0)
        h = conv3x3(h, m4_ref, w4_ref, b4_ref)                    # (classes, L)

        # Bilinear 2x upsample (align_corners=True) as a single lane-dense
        # matmul per image: (classes, HW) @ (HW, Ho*Wo).
        kt = kt_ref[...]
        for bi in range(Bc):                                      # static loop
            img = h[:, bi * HW:(bi + 1) * HW]                     # lane-aligned
            up = jnp.dot(img, kt, preferred_element_type=jnp.float32)
            o_ref[bi] = up.astype(o_ref.dtype)                    # (classes, 1024)

    return kernel


# ---------------------------------------------------------------------------
# Constant builders (deterministic functions of H, W)
# ---------------------------------------------------------------------------
def _tap_masks_expanded(H, W, cin, bc):
    """(9*cin, bc*H*W) mask; row t*cin+c, lane b*HW+p is 1 iff the source pixel
    of tap t for pixel p is in-bounds (also kills cross-image wraps)."""
    base = np.zeros((9, H * W), np.float32)
    for dy in range(3):
        for dx in range(3):
            t = dy * 3 + dx
            for i in range(H):
                if not (0 <= i + dy - 1 < H):
                    continue
                for j in range(W):
                    if 0 <= j + dx - 1 < W:
                        base[t, i * W + j] = 1.0
    m = np.repeat(base[:, None, :], cin, axis=1).reshape(9 * cin, H * W)
    m = np.tile(m, (1, bc))
    return jnp.asarray(m)


def _bilinear_matrix(n_in, n_out):
    """1-D bilinear interpolation matrix, align_corners=True."""
    if n_out == 1:
        src = np.zeros((1,), np.float64)
    else:
        src = np.arange(n_out, dtype=np.float64) * (n_in - 1) / (n_out - 1)
    i0 = np.clip(np.floor(src).astype(np.int64), 0, n_in - 1)
    i1 = np.minimum(i0 + 1, n_in - 1)
    w1 = src - i0
    w0 = 1.0 - w1
    A = np.zeros((n_out, n_in), np.float32)
    A[np.arange(n_out), i0] += w0.astype(np.float32)
    A[np.arange(n_out), i1] += w1.astype(np.float32)
    return A


def _choose_bc(B):
    """Largest batch-chunk that still leaves >= 2 grid steps (v7x 2-TC)."""
    best = 1
    for d in range(1, B + 1):
        if B % d == 0 and B // d >= 2:
            best = d
    return best


# ---------------------------------------------------------------------------
# Wrapper
# ---------------------------------------------------------------------------
def simple_cnn_forward(x_nchw, params, batch_chunk=None):
    B, cin, H, W = x_nchw.shape
    HW, Ho, Wo = H * W, 2 * H, 2 * W
    HoWo = Ho * Wo
    classes = params[-1][0].shape[-1]

    Bc = batch_chunk if batch_chunk is not None else _choose_bc(B)
    assert B % Bc == 0
    nb = B // Bc
    L = Bc * HW

    # Batch fused into the lane axis: (nb, Cin, Bc*HW), image-major along lanes.
    x_fused = (x_nchw.reshape(nb, Bc, cin, HW)
                     .transpose(0, 2, 1, 3)
                     .reshape(nb, cin, L))

    # Separable bilinear (align_corners=True) folded into one (HW, Ho*Wo) const.
    # TODO(synk): gate this kron constant for large images (it scales as 16*HW^2 bytes).
    Ah = _bilinear_matrix(H, Ho)
    Aw = _bilinear_matrix(W, Wo)
    kronT = jnp.asarray(np.kron(Ah, Aw).T)               # (HW, Ho*Wo)

    kernel_args = [x_fused, kronT]
    in_specs = [
        pl.BlockSpec((1, cin, L), lambda g: (g, 0, 0)),
        pl.BlockSpec(kronT.shape, lambda g: (0, 0)),
    ]
    for (w, bvec) in params:                              # w: HWIO (3,3,Cin,Cout)
        c_in, c_out = w.shape[2], w.shape[3]
        mask = _tap_masks_expanded(H, W, c_in, Bc)        # (9*Cin, L)
        kernel_args += [mask,
                        w.reshape(9 * c_in, c_out).T,     # (Cout, 9*Cin), taps in K
                        bvec.reshape(c_out, 1)]
        in_specs += [pl.BlockSpec(mask.shape, lambda g: (0, 0)),
                     pl.BlockSpec((c_out, 9 * c_in), lambda g: (0, 0)),
                     pl.BlockSpec((c_out, 1), lambda g: (0, 0))]

    out = pl.pallas_call(
        _make_kernel(H, W, classes, Bc),
        out_shape=jax.ShapeDtypeStruct((B, classes, HoWo), jnp.float32),
        grid_spec=pltpu.PrefetchScalarGridSpec(
            num_scalar_prefetch=0,
            grid=(nb,),
            in_specs=in_specs,
            out_specs=pl.BlockSpec((Bc, classes, HoWo), lambda g: (g, 0, 0)),
        ),
        compiler_params=pltpu.CompilerParams(
            dimension_semantics=("parallel",)),
    )(*kernel_args)

    return out.reshape(B, classes, Ho, Wo)                # NCHW


# ---------------------------------------------------------------------------
# Deterministic parameter init (mirrors nn.Conv2d shapes, stored as HWIO)
# ---------------------------------------------------------------------------
def init_params(key, in_channels=1, classes=1):
    chans = [in_channels, 16, 32, 64, classes]
    params = []
    for i in range(4):
        cin, cout = chans[i], chans[i + 1]
        key, kw, kb = jax.random.split(key, 3)
        fan_in = 9 * cin
        w = jax.random.normal(kw, (3, 3, cin, cout), jnp.float32) / np.sqrt(fan_in)
        b = 0.01 * jax.random.normal(kb, (cout,), jnp.float32)
        params.append((w, b))
    return params


# ---------------------------------------------------------------------------
# Pure-JAX reference (for verification)
# ---------------------------------------------------------------------------
def reference_forward(x_nchw, params):
    x = jnp.transpose(x_nchw, (0, 2, 3, 1))

    def conv(h, w, b):
        y = lax.conv_general_dilated(h, w, (1, 1), 'SAME',
                                     dimension_numbers=('NHWC', 'HWIO', 'NHWC'))
        return y + b[None, None, None, :]

    (w1, b1), (w2, b2), (w3, b3), (w4, b4) = params
    h = jax.nn.relu(conv(x, w1, b1))
    h = jax.nn.relu(conv(h, w2, b2))
    h = jax.nn.relu(conv(h, w3, b3))
    h = conv(h, w4, b4)
    H, W = h.shape[1], h.shape[2]
    Ah = jnp.asarray(_bilinear_matrix(H, 2 * H))
    Aw = jnp.asarray(_bilinear_matrix(W, 2 * W))
    up = jnp.einsum('oh,pw,bhwc->bopc', Ah, Aw, h)
    return jnp.transpose(up, (0, 3, 1, 2))


if __name__ == "__main__":
    B, Cin, H, W, classes = 2, 1, 16, 16, 1

    key = jax.random.PRNGKey(0)
    key, kx = jax.random.split(key)
    x = jax.random.normal(kx, (B, Cin, H, W), jnp.float32)   # NCHW like PyTorch
    params = init_params(jax.random.PRNGKey(1), Cin, classes)

    out = simple_cnn_forward(x, params)
    out = jax.block_until_ready(out)
    assert out.shape == (B, classes, 2 * H, 2 * W), out.shape

    ref = reference_forward(x, params)
    # Default MXU precision rounds f32 matmul operands to bf16 (values are
    # O(1)); tolerance reflects that accuracy/perf choice.
    np.testing.assert_allclose(np.asarray(out), np.asarray(ref),
                               rtol=3e-2, atol=3e-2)

    print("KERNEL_OK")
</pallas_src>

<mosaic_0001>
module attributes {stable_mosaic.version = 11 : i64} {
  func.func @kernel(%arg0: i32, %arg1: memref<1x1x256xf32, #tpu.memory_space<vmem>>, %arg2: memref<256x1024xf32, #tpu.memory_space<vmem>>, %arg3: memref<9x256xf32, #tpu.memory_space<vmem>>, %arg4: memref<16x9xf32, #tpu.memory_space<vmem>>, %arg5: memref<16x1xf32, #tpu.memory_space<vmem>>, %arg6: memref<144x256xf32, #tpu.memory_space<vmem>>, %arg7: memref<32x144xf32, #tpu.memory_space<vmem>>, %arg8: memref<32x1xf32, #tpu.memory_space<vmem>>, %arg9: memref<288x256xf32, #tpu.memory_space<vmem>>, %arg10: memref<64x288xf32, #tpu.memory_space<vmem>>, %arg11: memref<64x1xf32, #tpu.memory_space<vmem>>, %arg12: memref<576x256xf32, #tpu.memory_space<vmem>>, %arg13: memref<1x576xf32, #tpu.memory_space<vmem>>, %arg14: memref<1x1xf32, #tpu.memory_space<vmem>>, %arg15: memref<1x1x1024xf32, #tpu.memory_space<vmem>>) attributes {dimension_semantics = [#tpu.dimension_semantics<parallel>], iteration_bounds = array<i64: 2>, scalar_prefetch = 0 : i64, scratch_operands = 0 : i64, tpu.core_type = #tpu.core_type<tc>, window_params = [{transform_indices = @transform_0, window_bounds = array<i64: 1, 1, 256>}, {pipeline_mode = #tpu.pipeline_mode<synchronous>, transform_indices = @transform_1, window_bounds = array<i64: 256, 1024>}, {pipeline_mode = #tpu.pipeline_mode<synchronous>, transform_indices = @transform_2, window_bounds = array<i64: 9, 256>}, {pipeline_mode = #tpu.pipeline_mode<synchronous>, transform_indices = @transform_3, window_bounds = array<i64: 16, 9>}, {pipeline_mode = #tpu.pipeline_mode<synchronous>, transform_indices = @transform_4, window_bounds = array<i64: 16, 1>}, {pipeline_mode = #tpu.pipeline_mode<synchronous>, transform_indices = @transform_5, window_bounds = array<i64: 144, 256>}, {pipeline_mode = #tpu.pipeline_mode<synchronous>, transform_indices = @transform_6, window_bounds = array<i64: 32, 144>}, {pipeline_mode = #tpu.pipeline_mode<synchronous>, transform_indices = @transform_7, window_bounds = array<i64: 32, 1>}, {pipeline_mode = #tpu.pipeline_mode<synchronous>, transform_indices = @transform_8, window_bounds = array<i64: 288, 256>}, {pipeline_mode = #tpu.pipeline_mode<synchronous>, transform_indices = @transform_9, window_bounds = array<i64: 64, 288>}, {pipeline_mode = #tpu.pipeline_mode<synchronous>, transform_indices = @transform_10, window_bounds = array<i64: 64, 1>}, {pipeline_mode = #tpu.pipeline_mode<synchronous>, transform_indices = @transform_11, window_bounds = array<i64: 576, 256>}, {pipeline_mode = #tpu.pipeline_mode<synchronous>, transform_indices = @transform_12, window_bounds = array<i64: 1, 576>}, {pipeline_mode = #tpu.pipeline_mode<synchronous>, transform_indices = @transform_13, window_bounds = array<i64: 1, 1>}, {transform_indices = @transform_14, window_bounds = array<i64: 1, 1, 1024>}]} {
    %c0 = arith.constant 0 : index
    %c0_0 = arith.constant 0 : index
    %c0_1 = arith.constant 0 : index
    %0 = vector.load %arg1[%c0, %c0_0, %c0_1] : memref<1x1x256xf32, #tpu.memory_space<vmem>>, vector<1x1x256xf32>
    %1 = vector.shape_cast %0 : vector<1x1x256xf32> to vector<1x256xf32>
    %c17_i32 = arith.constant 17 : i32
    %2 = tpu.dynamic_rotate %1 by %c17_i32 dim 1 : vector<1x256xf32>, i32 -> vector<1x256xf32>
    %c16_i32 = arith.constant 16 : i32
    %3 = tpu.dynamic_rotate %1 by %c16_i32 dim 1 : vector<1x256xf32>, i32 -> vector<1x256xf32>
    %c15_i32 = arith.constant 15 : i32
    %4 = tpu.dynamic_rotate %1 by %c15_i32 dim 1 : vector<1x256xf32>, i32 -> vector<1x256xf32>
    %c1_i32 = arith.constant 1 : i32
    %5 = tpu.dynamic_rotate %1 by %c1_i32 dim 1 : vector<1x256xf32>, i32 -> vector<1x256xf32>
    %c255_i32 = arith.constant 255 : i32
    %6 = tpu.dynamic_rotate %1 by %c255_i32 dim 1 : vector<1x256xf32>, i32 -> vector<1x256xf32>
    %c241_i32 = arith.constant 241 : i32
    %7 = tpu.dynamic_rotate %1 by %c241_i32 dim 1 : vector<1x256xf32>, i32 -> vector<1x256xf32>
    %c240_i32 = arith.constant 240 : i32
    %8 = tpu.dynamic_rotate %1 by %c240_i32 dim 1 : vector<1x256xf32>, i32 -> vector<1x256xf32>
    %c239_i32 = arith.constant 239 : i32
    %9 = tpu.dynamic_rotate %1 by %c239_i32 dim 1 : vector<1x256xf32>, i32 -> vector<1x256xf32>
    %10 = tpu.concatenate %2, %3, %4, %5, %1, %6, %7, %8, %9 in 0 : vector<1x256xf32>, vector<1x256xf32>, vector<1x256xf32>, vector<1x256xf32>, vector<1x256xf32>, vector<1x256xf32>, vector<1x256xf32>, vector<1x256xf32>, vector<1x256xf32> -> vector<9x256xf32>
    %c0_2 = arith.constant 0 : index
    %c0_3 = arith.constant 0 : index
    %11 = vector.load %arg3[%c0_2, %c0_3] : memref<9x256xf32, #tpu.memory_space<vmem>>, vector<9x256xf32>
    %12 = arith.mulf %10, %11 : vector<9x256xf32>
    %c0_4 = arith.constant 0 : index
    %c0_5 = arith.constant 0 : index
    %13 = vector.load %arg4[%c0_4, %c0_5] : memref<16x9xf32, #tpu.memory_space<vmem>>, vector<16x9xf32>
    %cst = arith.constant dense<0.000000e+00> : vector<16x256xf32>
    %14 = tpu.matmul %13, %12, %cst {dimension_numbers = #tpu.dot_dimension_numbers<[1], [0], [0], [1], [0, 0, 1, 1], [], []>} : vector<16x9xf32>, vector<9x256xf32>, vector<16x256xf32> -> vector<16x256xf32>
    %c0_6 = arith.constant 0 : index
    %c0_7 = arith.constant 0 : index
    %15 = vector.load %arg5[%c0_6, %c0_7] : memref<16x1xf32, #tpu.memory_space<vmem>>, vector<16x1xf32>
    %16 = vector.broadcast %15 : vector<16x1xf32> to vector<16x256xf32>
    %17 = arith.addf %14, %16 : vector<16x256xf32>
    %cst_8 = arith.constant 0.000000e+00 : f32
    %18 = vector.broadcast %cst_8 : f32 to vector<16x256xf32>
    %19 = arith.maximumf %17, %18 : vector<16x256xf32>
    %c17_i32_9 = arith.constant 17 : i32
    %20 = tpu.dynamic_rotate %19 by %c17_i32_9 dim 1 : vector<16x256xf32>, i32 -> vector<16x256xf32>
    %c16_i32_10 = arith.constant 16 : i32
    %21 = tpu.dynamic_rotate %19 by %c16_i32_10 dim 1 : vector<16x256xf32>, i32 -> vector<16x256xf32>
    %c15_i32_11 = arith.constant 15 : i32
    %22 = tpu.dynamic_rotate %19 by %c15_i32_11 dim 1 : vector<16x256xf32>, i32 -> vector<16x256xf32>
    %c1_i32_12 = arith.constant 1 : i32
    %23 = tpu.dynamic_rotate %19 by %c1_i32_12 dim 1 : vector<16x256xf32>, i32 -> vector<16x256xf32>
    %c255_i32_13 = arith.constant 255 : i32
    %24 = tpu.dynamic_rotate %19 by %c255_i32_13 dim 1 : vector<16x256xf32>, i32 -> vector<16x256xf32>
    %c241_i32_14 = arith.constant 241 : i32
    %25 = tpu.dynamic_rotate %19 by %c241_i32_14 dim 1 : vector<16x256xf32>, i32 -> vector<16x256xf32>
    %c240_i32_15 = arith.constant 240 : i32
    %26 = tpu.dynamic_rotate %19 by %c240_i32_15 dim 1 : vector<16x256xf32>, i32 -> vector<16x256xf32>
    %c239_i32_16 = arith.constant 239 : i32
    %27 = tpu.dynamic_rotate %19 by %c239_i32_16 dim 1 : vector<16x256xf32>, i32 -> vector<16x256xf32>
    %28 = tpu.concatenate %20, %21, %22, %23, %19, %24, %25, %26, %27 in 0 : vector<16x256xf32>, vector<16x256xf32>, vector<16x256xf32>, vector<16x256xf32>, vector<16x256xf32>, vector<16x256xf32>, vector<16x256xf32>, vector<16x256xf32>, vector<16x256xf32> -> vector<144x256xf32>
    %c0_17 = arith.constant 0 : index
    %c0_18 = arith.constant 0 : index
    %29 = vector.load %arg6[%c0_17, %c0_18] : memref<144x256xf32, #tpu.memory_space<vmem>>, vector<144x256xf32>
    %30 = arith.mulf %28, %29 : vector<144x256xf32>
    %c0_19 = arith.constant 0 : index
    %c0_20 = arith.constant 0 : index
    %31 = vector.load %arg7[%c0_19, %c0_20] : memref<32x144xf32, #tpu.memory_space<vmem>>, vector<32x144xf32>
    %cst_21 = arith.constant dense<0.000000e+00> : vector<32x256xf32>
    %32 = tpu.matmul %31, %30, %cst_21 {dimension_numbers = #tpu.dot_dimension_numbers<[1], [0], [0], [1], [0, 0, 1, 1], [], []>} : vector<32x144xf32>, vector<144x256xf32>, vector<32x256xf32> -> vector<32x256xf32>
    %c0_22 = arith.constant 0 : index
    %c0_23 = arith.constant 0 : index
    %33 = vector.load %arg8[%c0_22, %c0_23] : memref<32x1xf32, #tpu.memory_space<vmem>>, vector<32x1xf32>
    %34 = vector.broadcast %33 : vector<32x1xf32> to vector<32x256xf32>
    %35 = arith.addf %32, %34 : vector<32x256xf32>
    %cst_24 = arith.constant 0.000000e+00 : f32
    %36 = vector.broadcast %cst_24 : f32 to vector<32x256xf32>
    %37 = arith.maximumf %35, %36 : vector<32x256xf32>
    %c17_i32_25 = arith.constant 17 : i32
    %38 = tpu.dynamic_rotate %37 by %c17_i32_25 dim 1 : vector<32x256xf32>, i32 -> vector<32x256xf32>
    %c16_i32_26 = arith.constant 16 : i32
    %39 = tpu.dynamic_rotate %37 by %c16_i32_26 dim 1 : vector<32x256xf32>, i32 -> vector<32x256xf32>
    %c15_i32_27 = arith.constant 15 : i32
    %40 = tpu.dynamic_rotate %37 by %c15_i32_27 dim 1 : vector<32x256xf32>, i32 -> vector<32x256xf32>
    %c1_i32_28 = arith.constant 1 : i32
    %41 = tpu.dynamic_rotate %37 by %c1_i32_28 dim 1 : vector<32x256xf32>, i32 -> vector<32x256xf32>
    %c255_i32_29 = arith.constant 255 : i32
    %42 = tpu.dynamic_rotate %37 by %c255_i32_29 dim 1 : vector<32x256xf32>, i32 -> vector<32x256xf32>
    %c241_i32_30 = arith.constant 241 : i32
    %43 = tpu.dynamic_rotate %37 by %c241_i32_30 dim 1 : vector<32x256xf32>, i32 -> vector<32x256xf32>
    %c240_i32_31 = arith.constant 240 : i32
    %44 = tpu.dynamic_rotate %37 by %c240_i32_31 dim 1 : vector<32x256xf32>, i32 -> vector<32x256xf32>
    %c239_i32_32 = arith.constant 239 : i32
    %45 = tpu.dynamic_rotate %37 by %c239_i32_32 dim 1 : vector<32x256xf32>, i32 -> vector<32x256xf32>
    %46 = tpu.concatenate %38, %39, %40, %41, %37, %42, %43, %44, %45 in 0 : vector<32x256xf32>, vector<32x256xf32>, vector<32x256xf32>, vector<32x256xf32>, vector<32x256xf32>, vector<32x256xf32>, vector<32x256xf32>, vector<32x256xf32>, vector<32x256xf32> -> vector<288x256xf32>
    %c0_33 = arith.constant 0 : index
    %c0_34 = arith.constant 0 : index
    %47 = vector.load %arg9[%c0_33, %c0_34] : memref<288x256xf32, #tpu.memory_space<vmem>>, vector<288x256xf32>
    %48 = arith.mulf %46, %47 : vector<288x256xf32>
    %c0_35 = arith.constant 0 : index
    %c0_36 = arith.constant 0 : index
    %49 = vector.load %arg10[%c0_35, %c0_36] : memref<64x288xf32, #tpu.memory_space<vmem>>, vector<64x288xf32>
    %cst_37 = arith.constant dense<0.000000e+00> : vector<64x256xf32>
    %50 = tpu.matmul %49, %48, %cst_37 {dimension_numbers = #tpu.dot_dimension_numbers<[1], [0], [0], [1], [0, 0, 1, 1], [], []>} : vector<64x288xf32>, vector<288x256xf32>, vector<64x256xf32> -> vector<64x256xf32>
    %c0_38 = arith.constant 0 : index
    %c0_39 = arith.constant 0 : index
    %51 = vector.load %arg11[%c0_38, %c0_39] : memref<64x1xf32, #tpu.memory_space<vmem>>, vector<64x1xf32>
    %52 = vector.broadcast %51 : vector<64x1xf32> to vector<64x256xf32>
    %53 = arith.addf %50, %52 : vector<64x256xf32>
    %cst_40 = arith.constant 0.000000e+00 : f32
    %54 = vector.broadcast %cst_40 : f32 to vector<64x256xf32>
    %55 = arith.maximumf %53, %54 : vector<64x256xf32>
    %c17_i32_41 = arith.constant 17 : i32
    %56 = tpu.dynamic_rotate %55 by %c17_i32_41 dim 1 : vector<64x256xf32>, i32 -> vector<64x256xf32>
    %c16_i32_42 = arith.constant 16 : i32
    %57 = tpu.dynamic_rotate %55 by %c16_i32_42 dim 1 : vector<64x256xf32>, i32 -> vector<64x256xf32>
    %c15_i32_43 = arith.constant 15 : i32
    %58 = tpu.dynamic_rotate %55 by %c15_i32_43 dim 1 : vector<64x256xf32>, i32 -> vector<64x256xf32>
    %c1_i32_44 = arith.constant 1 : i32
    %59 = tpu.dynamic_rotate %55 by %c1_i32_44 dim 1 : vector<64x256xf32>, i32 -> vector<64x256xf32>
    %c255_i32_45 = arith.constant 255 : i32
    %60 = tpu.dynamic_rotate %55 by %c255_i32_45 dim 1 : vector<64x256xf32>, i32 -> vector<64x256xf32>
    %c241_i32_46 = arith.constant 241 : i32
    %61 = tpu.dynamic_rotate %55 by %c241_i32_46 dim 1 : vector<64x256xf32>, i32 -> vector<64x256xf32>
    %c240_i32_47 = arith.constant 240 : i32
    %62 = tpu.dynamic_rotate %55 by %c240_i32_47 dim 1 : vector<64x256xf32>, i32 -> vector<64x256xf32>
    %c239_i32_48 = arith.constant 239 : i32
    %63 = tpu.dynamic_rotate %55 by %c239_i32_48 dim 1 : vector<64x256xf32>, i32 -> vector<64x256xf32>
    %64 = tpu.concatenate %56, %57, %58, %59, %55, %60, %61, %62, %63 in 0 : vector<64x256xf32>, vector<64x256xf32>, vector<64x256xf32>, vector<64x256xf32>, vector<64x256xf32>, vector<64x256xf32>, vector<64x256xf32>, vector<64x256xf32>, vector<64x256xf32> -> vector<576x256xf32>
    %c0_49 = arith.constant 0 : index
    %c0_50 = arith.constant 0 : index
    %65 = vector.load %arg12[%c0_49, %c0_50] : memref<576x256xf32, #tpu.memory_space<vmem>>, vector<576x256xf32>
    %66 = arith.mulf %64, %65 : vector<576x256xf32>
    %c0_51 = arith.constant 0 : index
    %c0_52 = arith.constant 0 : index
    %67 = vector.load %arg13[%c0_51, %c0_52] : memref<1x576xf32, #tpu.memory_space<vmem>>, vector<1x576xf32>
    %cst_53 = arith.constant dense<0.000000e+00> : vector<1x256xf32>
    %68 = tpu.matmul %67, %66, %cst_53 {dimension_numbers = #tpu.dot_dimension_numbers<[1], [0], [0], [1], [0, 0, 1, 1], [], []>} : vector<1x576xf32>, vector<576x256xf32>, vector<1x256xf32> -> vector<1x256xf32>
    %c0_54 = arith.constant 0 : index
    %c0_55 = arith.constant 0 : index
    %69 = vector.load %arg14[%c0_54, %c0_55] : memref<1x1xf32, #tpu.memory_space<vmem>>, vector<1x1xf32>
    %70 = vector.broadcast %69 : vector<1x1xf32> to vector<1x256xf32>
    %71 = arith.addf %68, %70 : vector<1x256xf32>
    %c0_56 = arith.constant 0 : index
    %c0_57 = arith.constant 0 : index
    %72 = vector.load %arg2[%c0_56, %c0_57] : memref<256x1024xf32, #tpu.memory_space<vmem>>, vector<256x1024xf32>
    %cst_58 = arith.constant dense<0.000000e+00> : vector<1x1024xf32>
    %73 = tpu.matmul %71, %72, %cst_58 {dimension_numbers = #tpu.dot_dimension_numbers<[1], [0], [0], [1], [0, 0, 1, 1], [], []>} : vector<1x256xf32>, vector<256x1024xf32>, vector<1x1024xf32> -> vector<1x1024xf32>
    %c0_59 = arith.constant 0 : index
    %c0_60 = arith.constant 0 : index
    %c0_61 = arith.constant 0 : index
    %74 = vector.load %arg15[%c0_59, %c0_60, %c0_61] : memref<1x1x1024xf32, #tpu.memory_space<vmem>>, vector<1x1x1024xf32>
    %75 = vector.shape_cast %74 : vector<1x1x1024xf32> to vector<1x1024xf32>
    %76 = vector.shape_cast %73 : vector<1x1024xf32> to vector<1x1x1024xf32>
    tpu.vector_store %arg15[%c0_59, %c0_60, %c0_61], %76 {strides = array<i32>} : memref<1x1x1024xf32, #tpu.memory_space<vmem>>, vector<1x1x1024xf32>,
    return
  }
  func.func @transform_0(%arg0: i32) -> (i32, i32, i32) {
    %c0_i32 = arith.constant 0 : i32
    %c0_i32_0 = arith.constant 0 : i32
    %c0_i32_1 = arith.constant 0 : i32
    return %arg0, %c0_i32, %c0_i32_0 : i32, i32, i32
  }
  func.func @transform_1(%arg0: i32) -> (i32, i32) {
    %c0_i32 = arith.constant 0 : i32
    %c0_i32_0 = arith.constant 0 : i32
    %c0_i32_1 = arith.constant 0 : i32
    return %c0_i32, %c0_i32_0 : i32, i32
  }
  func.func @transform_2(%arg0: i32) -> (i32, i32) {
    %c0_i32 = arith.constant 0 : i32
    %c0_i32_0 = arith.constant 0 : i32
    %c0_i32_1 = arith.constant 0 : i32
    return %c0_i32, %c0_i32_0 : i32, i32
  }
  func.func @transform_3(%arg0: i32) -> (i32, i32) {
    %c0_i32 = arith.constant 0 : i32
    %c0_i32_0 = arith.constant 0 : i32
    %c0_i32_1 = arith.constant 0 : i32
    return %c0_i32, %c0_i32_0 : i32, i32
  }
  func.func @transform_4(%arg0: i32) -> (i32, i32) {
    %c0_i32 = arith.constant 0 : i32
    %c0_i32_0 = arith.constant 0 : i32
    %c0_i32_1 = arith.constant 0 : i32
    return %c0_i32, %c0_i32_0 : i32, i32
  }
  func.func @transform_5(%arg0: i32) -> (i32, i32) {
    %c0_i32 = arith.constant 0 : i32
    %c0_i32_0 = arith.constant 0 : i32
    %c0_i32_1 = arith.constant 0 : i32
    return %c0_i32, %c0_i32_0 : i32, i32
  }
  func.func @transform_6(%arg0: i32) -> (i32, i32) {
    %c0_i32 = arith.constant 0 : i32
    %c0_i32_0 = arith.constant 0 : i32
    %c0_i32_1 = arith.constant 0 : i32
    return %c0_i32, %c0_i32_0 : i32, i32
  }
  func.func @transform_7(%arg0: i32) -> (i32, i32) {
    %c0_i32 = arith.constant 0 : i32
    %c0_i32_0 = arith.constant 0 : i32
    %c0_i32_1 = arith.constant 0 : i32
    return %c0_i32, %c0_i32_0 : i32, i32
  }
  func.func @transform_8(%arg0: i32) -> (i32, i32) {
    %c0_i32 = arith.constant 0 : i32
    %c0_i32_0 = arith.constant 0 : i32
    %c0_i32_1 = arith.constant 0 : i32
    return %c0_i32, %c0_i32_0 : i32, i32
  }
  func.func @transform_9(%arg0: i32) -> (i32, i32) {
    %c0_i32 = arith.constant 0 : i32
    %c0_i32_0 = arith.constant 0 : i32
    %c0_i32_1 = arith.constant 0 : i32
    return %c0_i32, %c0_i32_0 : i32, i32
  }
  func.func @transform_10(%arg0: i32) -> (i32, i32) {
    %c0_i32 = arith.constant 0 : i32
    %c0_i32_0 = arith.constant 0 : i32
    %c0_i32_1 = arith.constant 0 : i32
    return %c0_i32, %c0_i32_0 : i32, i32
  }
  func.func @transform_11(%arg0: i32) -> (i32, i32) {
    %c0_i32 = arith.constant 0 : i32
    %c0_i32_0 = arith.constant 0 : i32
    %c0_i32_1 = arith.constant 0 : i32
    return %c0_i32, %c0_i32_0 : i32, i32
  }
  func.func @transform_12(%arg0: i32) -> (i32, i32) {
    %c0_i32 = arith.constant 0 : i32
    %c0_i32_0 = arith.constant 0 : i32
    %c0_i32_1 = arith.constant 0 : i32
    return %c0_i32, %c0_i32_0 : i32, i32
  }
  func.func @transform_13(%arg0: i32) -> (i32, i32) {
    %c0_i32 = arith.constant 0 : i32
    %c0_i32_0 = arith.constant 0 : i32
    %c0_i32_1 = arith.constant 0 : i32
    return %c0_i32, %c0_i32_0 : i32, i32
  }
  func.func @transform_14(%arg0: i32) -> (i32, i32, i32) {
    %c0_i32 = arith.constant 0 : i32
    %c0_i32_0 = arith.constant 0 : i32
    %c0_i32_1 = arith.constant 0 : i32
    return %arg0, %c0_i32, %c0_i32_0 : i32, i32, i32
  }
}

</mosaic_0001>

<llo_original>
// kernel: tpu_custom_call.1
$region0: #{tpu_custom_call.1}
  #allocation0 [shape = 'u32[]', space=smem, size = 0x4, offset = 0x4, fixed_abs, tag = 'smem constant byte address 0x4 - core index']
  #allocation1 [shape = 'u32[144,128]{1,0:T(1,128)}', space=vmem, size = 0x12000, scoped, tag = 'internal scratch']
  #allocation2 [shape = 'f32[1,1]{1,0:T(1,128)S(1)}', space=vmem, size = 0x200, scoped, tag = 'scoped memory for tpu_custom_call.1']
  %s0 = inlined_call_operand.vmem [shape: f32[2,1,256], index: 0, kind: input, shape index: {}]
  %s1 = inlined_call_operand.hbm [shape: f32[256,1024], index: 1, kind: input, shape index: {}]
  %s2 = inlined_call_operand.vmem [shape: f32[9,256], index: 2, kind: input, shape index: {}]
  %s3 = inlined_call_operand.vmem [shape: f32[16,9], index: 3, kind: input, shape index: {}]
  %s4 = inlined_call_operand.vmem [shape: f32[16,1], index: 4, kind: input, shape index: {}]
  %s5 = inlined_call_operand.hbm [shape: f32[144,256], index: 5, kind: input, shape index: {}]
  %s6 = inlined_call_operand.vmem [shape: f32[32,144], index: 6, kind: input, shape index: {}]
  %s7 = inlined_call_operand.vmem [shape: f32[32,1], index: 7, kind: input, shape index: {}]
  %s8 = inlined_call_operand.hbm [shape: f32[288,256], index: 8, kind: input, shape index: {}]
  %s9 = inlined_call_operand.hbm [shape: f32[64,288], index: 9, kind: input, shape index: {}]
  %s10 = inlined_call_operand.vmem [shape: f32[64,1], index: 10, kind: input, shape index: {}]
  %s11 = inlined_call_operand.hbm [shape: f32[576,256], index: 11, kind: input, shape index: {}]
  %s12 = inlined_call_operand.vmem [shape: f32[1,576], index: 12, kind: input, shape index: {}]
  %s13 = inlined_call_operand.<no memory space> [shape: f32[1,1], index: 13, kind: input, shape index: {}]
  %s14 = inlined_call_operand.hbm [shape: f32[2,1,1024], index: 14, kind: output, shape index: {}]
  %s15 = sld [smem:[#allocation0]]
  $region109: #{tpu_custom_call.1} parent=0
    _
  %s17 = ssub.s32 1, %s15
  %s18 = scalar_select 0, %s17, %s15
  %v19 = vstv %s13
  %20 = vst [vmem:[#allocation2] sm:$0x1] %v19
  $region1: #{tpu_custom_call.1} parent=0
    #allocation3 [shape = 'u8[1048576]{0}', space=vmem, size = 0x100000, scoped, tag = 'input window, operand 1, single buffered']
    #allocation4 [shape = 's32[2]{0}', space=sflag, size = 0x8, scoped, tag = 'scoped memory for tpu_custom_call.1']
    #allocation5 [shape = 's32[2]{0}', space=sflag, size = 0x8, scoped, tag = 'scoped memory for tpu_custom_call.1']
    #allocation6 [shape = 'u8[147456]{0}', space=vmem, size = 0x24000, scoped, tag = 'input window, operand 5, single buffered']
    #allocation7 [shape = 's32[1]{0}', space=sflag, size = 0x4, scoped, tag = 'scoped memory for tpu_custom_call.1']
    #allocation8 [shape = 'u8[294912]{0}', space=vmem, size = 0x48000, scoped, tag = 'input window, operand 8, single buffered']
    #allocation9 [shape = 'u8[98304]{0}', space=vmem, size = 0x18000, scoped, tag = 'input window, operand 9, single buffered']
    #allocation10 [shape = 's32[1]{0}', space=sflag, size = 0x4, scoped, tag = 'scoped memory for tpu_custom_call.1']
    #allocation11 [shape = 'u8[589824]{0}', space=vmem, size = 0x90000, scoped, tag = 'input window, operand 11, single buffered']
    #allocation12 [shape = 'u8[8192]{0}', space=vmem, size = 0x2000, scoped, tag = 'output window, operand 0']
    %21 = vsyncpa [#allocation4], 0
    %22 = vsyncpa [#allocation7], 0
    %23 = vsyncpa [#allocation10], 0
    %24 = vsyncpa [#allocation5], 0
    %s25 = scalar_lea.sflag [#allocation5], 1
    %26 = vsyncpa %s25, 0
    loop: start=0, step=1, limit=4
    $region2: #{tpu_custom_call.1} parent=1 // loop_pre_header
      _
    $region3: #{tpu_custom_call.1} parent=1 // loop_header
      %s28 = sphi 0, %s32
      %p29 = scmp.ge.s32.totalorder %s28, 4
      %s38 = sphi 0, %s40
      %s41 = sphi 0, %s38
      %s42 = sphi 0, %s41
      %s58 = sphi 0, %s42
      %s62 = sphi 0, %s62
      %s64 = sphi 0, %s62
      %s65 = sphi 0, %s64
      %s79 = sphi 0, %s65
      %s83 = sphi 0, %s83
      %s85 = sphi 0, %s83
      %s86 = sphi 0, %s85
      %s100 = sphi 0, %s86
      %s104 = sphi 0, %s104
      %s106 = sphi 0, %s104
      %s107 = sphi 0, %s106
      %s121 = sphi 0, %s107
      %s125 = sphi 0, %s125
      %s127 = sphi 0, %s125
      %s128 = sphi 0, %s127
      %s142 = sphi 0, %s128
      %s146 = sphi 0, %s146
      %s148 = sphi 0, %s146
      %s149 = sphi 0, %s148
      %s163 = sphi 0, %s149
      %s167 = sphi 0, %s167
      %s169 = sphi 0, %s167
      %s170 = sphi 0, %s169
      %s184 = sphi 0, %s170
      %s188 = sphi 0, %s188
      %s190 = sphi 0, %s188
      %s191 = sphi 0, %s190
      %s205 = sphi 0, %s191
      %s209 = sphi 0, %s209
      %s211 = sphi 0, %s209
      %s212 = sphi 0, %s211
      %s226 = sphi 0, %s212
      %s230 = sphi 0, %s230
      %s232 = sphi 0, %s230
      %s233 = sphi 0, %s232
      %s247 = sphi 0, %s233
      %s251 = sphi 0, %s251
      %s253 = sphi 0, %s251
      %s254 = sphi 0, %s253
      %s268 = sphi 0, %s254
      %s272 = sphi 0, %s272
      %s274 = sphi 0, %s272
      %s275 = sphi 0, %s274
      %s289 = sphi 0, %s275
      %s293 = sphi 0, %s293
      %s295 = sphi 0, %s293
      %s296 = sphi 0, %s295
      %s310 = sphi 0, %s296
      %s314 = sphi 0, %s314
      %s316 = sphi 0, %s314
      %s317 = sphi 0, %s316
      %s331 = sphi 0, %s317
      %s337 = sphi 0, %s339
      %s340 = sphi 0, %s337
      %s341 = sphi 0, %s340
      %s357 = sphi 0, %s341
    $region4: #{tpu_custom_call.1} parent=1 // loop_header_branch
      %31 = sbr.rel (%p29) target = $region8
    $region5: #{tpu_custom_call.1} parent=1 // loop_body
      %s33 = ssub.s32 %s28, 1
      %s34 = ssub.s32 %s28, 2
      %s35 = sadd.s32 %s28, 1
      %s36 = ssub.s32 %s28, %s35
      %p37 = scmp.eq.s32.totalorder %s36, 0
      %s39 = sadd.s32 %s38, 1
      %s40 = scalar_select %p37, %s38, %s39
      %p43 = pneg %p37
      %p44 = scmp.eq.s32.totalorder %s28, 1
      %p45 = por %p43, %p44
      %p46 = scmp.ne.s32.totalorder %s38, %s41
      %p47 = scmp.eq.s32.totalorder %s28, 0
      %p48 = por %p46, %p47
      %p49 = scmp.ne.s32.totalorder %s38, %s41
      %p50 = scmp.eq.s32.totalorder %s33, 1
      %p51 = por %p49, %p50
      %p52 = scmp.ne.s32.totalorder %s41, %s42
      %p53 = scmp.eq.s32.totalorder %s33, 0
      %p54 = por %p52, %p53
      %p55 = scmp.ne.s32.totalorder %s41, %s42
      %p56 = scmp.eq.s32.totalorder %s34, 1
      %p57 = por %p55, %p56
      %p59 = scmp.ne.s32.totalorder %s42, %s58
      %p60 = scmp.eq.s32.totalorder %s34, 0
      %p61 = por %p59, %p60
      %s63 = sadd.s32 %s62, 1
      %p66 = scmp.eq.s32.totalorder %s28, 1
      %p67 = scmp.ne.s32.totalorder %s62, %s64
      %p68 = scmp.eq.s32.totalorder %s28, 0
      %p69 = por %p67, %p68
      %p70 = scmp.ne.s32.totalorder %s62, %s64
      %p71 = scmp.eq.s32.totalorder %s33, 1
      %p72 = por %p70, %p71
      %p73 = scmp.ne.s32.totalorder %s64, %s65
      %p74 = scmp.eq.s32.totalorder %s33, 0
      %p75 = por %p73, %p74
      %p76 = scmp.ne.s32.totalorder %s64, %s65
      %p77 = scmp.eq.s32.totalorder %s34, 1
      %p78 = por %p76, %p77
      %p80 = scmp.ne.s32.totalorder %s65, %s79
      %p81 = scmp.eq.s32.totalorder %s34, 0
      %p82 = por %p80, %p81
      %s84 = sadd.s32 %s83, 1
      %p87 = scmp.eq.s32.totalorder %s28, 1
      %p88 = scmp.ne.s32.totalorder %s83, %s85
      %p89 = scmp.eq.s32.totalorder %s28, 0
      %p90 = por %p88, %p89
      %p91 = scmp.ne.s32.totalorder %s83, %s85
      %p92 = scmp.eq.s32.totalorder %s33, 1
      %p93 = por %p91, %p92
      %p94 = scmp.ne.s32.totalorder %s85, %s86
      %p95 = scmp.eq.s32.totalorder %s33, 0
      %p96 = por %p94, %p95
      %p97 = scmp.ne.s32.totalorder %s85, %s86
      %p98 = scmp.eq.s32.totalorder %s34, 1
      %p99 = por %p97, %p98
      %p101 = scmp.ne.s32.totalorder %s86, %s100
      %p102 = scmp.eq.s32.totalorder %s34, 0
      %p103 = por %p101, %p102
      %s105 = sadd.s32 %s104, 1
      %p108 = scmp.eq.s32.totalorder %s28, 1
      %p109 = scmp.ne.s32.totalorder %s104, %s106
      %p110 = scmp.eq.s32.totalorder %s28, 0
      %p111 = por %p109, %p110
      %p112 = scmp.ne.s32.totalorder %s104, %s106
      %p113 = scmp.eq.s32.totalorder %s33, 1
      %p114 = por %p112, %p113
      %p115 = scmp.ne.s32.totalorder %s106, %s107
      %p116 = scmp.eq.s32.totalorder %s33, 0
      %p117 = por %p115, %p116
      %p118 = scmp.ne.s32.totalorder %s106, %s107
      %p119 = scmp.eq.s32.totalorder %s34, 1
      %p120 = por %p118, %p119
      %p122 = scmp.ne.s32.totalorder %s107, %s121
      %p123 = scmp.eq.s32.totalorder %s34, 0
      %p124 = por %p122, %p123
      %s126 = sadd.s32 %s125, 1
      %p129 = scmp.eq.s32.totalorder %s28, 1
      %p130 = scmp.ne.s32.totalorder %s125, %s127
      %p131 = scmp.eq.s32.totalorder %s28, 0
      %p132 = por %p130, %p131
      %p133 = scmp.ne.s32.totalorder %s125, %s127
      %p134 = scmp.eq.s32.totalorder %s33, 1
      %p135 = por %p133, %p134
      %p136 = scmp.ne.s32.totalorder %s127, %s128
      %p137 = scmp.eq.s32.totalorder %s33, 0
      %p138 = por %p136, %p137
      %p139 = scmp.ne.s32.totalorder %s127, %s128
      %p140 = scmp.eq.s32.totalorder %s34, 1
      %p141 = por %p139, %p140
      %p143 = scmp.ne.s32.totalorder %s128, %s142
      %p144 = scmp.eq.s32.totalorder %s34, 0
      %p145 = por %p143, %p144
      %s147 = sadd.s32 %s146, 1
      %p150 = scmp.eq.s32.totalorder %s28, 1
      %p151 = scmp.ne.s32.totalorder %s146, %s148
      %p152 = scmp.eq.s32.totalorder %s28, 0
      %p153 = por %p151, %p152
      %p154 = scmp.ne.s32.totalorder %s146, %s148
      %p155 = scmp.eq.s32.totalorder %s33, 1
      %p156 = por %p154, %p155
      %p157 = scmp.ne.s32.totalorder %s148, %s149
      %p158 = scmp.eq.s32.totalorder %s33, 0
      %p159 = por %p157, %p158
      %p160 = scmp.ne.s32.totalorder %s148, %s149
      %p161 = scmp.eq.s32.totalorder %s34, 1
      %p162 = por %p160, %p161
      %p164 = scmp.ne.s32.totalorder %s149, %s163
      %p165 = scmp.eq.s32.totalorder %s34, 0
      %p166 = por %p164, %p165
      %s168 = sadd.s32 %s167, 1
      %p171 = scmp.eq.s32.totalorder %s28, 1
      %p172 = scmp.ne.s32.totalorder %s167, %s169
      %p173 = scmp.eq.s32.totalorder %s28, 0
      %p174 = por %p172, %p173
      %p175 = scmp.ne.s32.totalorder %s167, %s169
      %p176 = scmp.eq.s32.totalorder %s33, 1
      %p177 = por %p175, %p176
      %p178 = scmp.ne.s32.totalorder %s169, %s170
      %p179 = scmp.eq.s32.totalorder %s33, 0
      %p180 = por %p178, %p179
      %p181 = scmp.ne.s32.totalorder %s169, %s170
      %p182 = scmp.eq.s32.totalorder %s34, 1
      %p183 = por %p181, %p182
      %p185 = scmp.ne.s32.totalorder %s170, %s184
      %p186 = scmp.eq.s32.totalorder %s34, 0
      %p187 = por %p185, %p186
      %s189 = sadd.s32 %s188, 1
      %p192 = scmp.eq.s32.totalorder %s28, 1
      %p193 = scmp.ne.s32.totalorder %s188, %s190
      %p194 = scmp.eq.s32.totalorder %s28, 0
      %p195 = por %p193, %p194
      %p196 = scmp.ne.s32.totalorder %s188, %s190
      %p197 = scmp.eq.s32.totalorder %s33, 1
      %p198 = por %p196, %p197
      %p199 = scmp.ne.s32.totalorder %s190, %s191
      %p200 = scmp.eq.s32.totalorder %s33, 0
      %p201 = por %p199, %p200
      %p202 = scmp.ne.s32.totalorder %s190, %s191
      %p203 = scmp.eq.s32.totalorder %s34, 1
      %p204 = por %p202, %p203
      %p206 = scmp.ne.s32.totalorder %s191, %s205
      %p207 = scmp.eq.s32.totalorder %s34, 0
      %p208 = por %p206, %p207
      %s210 = sadd.s32 %s209, 1
      %p213 = scmp.eq.s32.totalorder %s28, 1
      %p214 = scmp.ne.s32.totalorder %s209, %s211
      %p215 = scmp.eq.s32.totalorder %s28, 0
      %p216 = por %p214, %p215
      %p217 = scmp.ne.s32.totalorder %s209, %s211
      %p218 = scmp.eq.s32.totalorder %s33, 1
      %p219 = por %p217, %p218
      %p220 = scmp.ne.s32.totalorder %s211, %s212
      %p221 = scmp.eq.s32.totalorder %s33, 0
      %p222 = por %p220, %p221
      %p223 = scmp.ne.s32.totalorder %s211, %s212
      %p224 = scmp.eq.s32.totalorder %s34, 1
      %p225 = por %p223, %p224
      %p227 = scmp.ne.s32.totalorder %s212, %s226
      %p228 = scmp.eq.s32.totalorder %s34, 0
      %p229 = por %p227, %p228
      %s231 = sadd.s32 %s230, 1
      %p234 = scmp.eq.s32.totalorder %s28, 1
      %p235 = scmp.ne.s32.totalorder %s230, %s232
      %p236 = scmp.eq.s32.totalorder %s28, 0
      %p237 = por %p235, %p236
      %p238 = scmp.ne.s32.totalorder %s230, %s232
      %p239 = scmp.eq.s32.totalorder %s33, 1
      %p240 = por %p238, %p239
      %p241 = scmp.ne.s32.totalorder %s232, %s233
      %p242 = scmp.eq.s32.totalorder %s33, 0
      %p243 = por %p241, %p242
      %p244 = scmp.ne.s32.totalorder %s232, %s233
      %p245 = scmp.eq.s32.totalorder %s34, 1
      %p246 = por %p244, %p245
      %p248 = scmp.ne.s32.totalorder %s233, %s247
      %p249 = scmp.eq.s32.totalorder %s34, 0
      %p250 = por %p248, %p249
      %s252 = sadd.s32 %s251, 1
      %p255 = scmp.eq.s32.totalorder %s28, 1
      %p256 = scmp.ne.s32.totalorder %s251, %s253
      %p257 = scmp.eq.s32.totalorder %s28, 0
      %p258 = por %p256, %p257
      %p259 = scmp.ne.s32.totalorder %s251, %s253
      %p260 = scmp.eq.s32.totalorder %s33, 1
      %p261 = por %p259, %p260
      %p262 = scmp.ne.s32.totalorder %s253, %s254
      %p263 = scmp.eq.s32.totalorder %s33, 0
      %p264 = por %p262, %p263
      %p265 = scmp.ne.s32.totalorder %s253, %s254
      %p266 = scmp.eq.s32.totalorder %s34, 1
      %p267 = por %p265, %p266
      %p269 = scmp.ne.s32.totalorder %s254, %s268
      %p270 = scmp.eq.s32.totalorder %s34, 0
      %p271 = por %p269, %p270
      %s273 = sadd.s32 %s272, 1
      %p276 = scmp.eq.s32.totalorder %s28, 1
      %p277 = scmp.ne.s32.totalorder %s272, %s274
      %p278 = scmp.eq.s32.totalorder %s28, 0
      %p279 = por %p277, %p278
      %p280 = scmp.ne.s32.totalorder %s272, %s274
      %p281 = scmp.eq.s32.totalorder %s33, 1
      %p282 = por %p280, %p281
      %p283 = scmp.ne.s32.totalorder %s274, %s275
      %p284 = scmp.eq.s32.totalorder %s33, 0
      %p285 = por %p283, %p284
      %p286 = scmp.ne.s32.totalorder %s274, %s275
      %p287 = scmp.eq.s32.totalorder %s34, 1
      %p288 = por %p286, %p287
      %p290 = scmp.ne.s32.totalorder %s275, %s289
      %p291 = scmp.eq.s32.totalorder %s34, 0
      %p292 = por %p290, %p291
      %s294 = sadd.s32 %s293, 1
      %p297 = scmp.eq.s32.totalorder %s28, 1
      %p298 = scmp.ne.s32.totalorder %s293, %s295
      %p299 = scmp.eq.s32.totalorder %s28, 0
      %p300 = por %p298, %p299
      %p301 = scmp.ne.s32.totalorder %s293, %s295
      %p302 = scmp.eq.s32.totalorder %s33, 1
      %p303 = por %p301, %p302
      %p304 = scmp.ne.s32.totalorder %s295, %s296
      %p305 = scmp.eq.s32.totalorder %s33, 0
      %p306 = por %p304, %p305
      %p307 = scmp.ne.s32.totalorder %s295, %s296
      %p308 = scmp.eq.s32.totalorder %s34, 1
      %p309 = por %p307, %p308
      %p311 = scmp.ne.s32.totalorder %s296, %s310
      %p312 = scmp.eq.s32.totalorder %s34, 0
      %p313 = por %p311, %p312
      %s315 = sadd.s32 %s314, 1
      %p318 = scmp.eq.s32.totalorder %s28, 1
      %p319 = scmp.ne.s32.totalorder %s314, %s316
      %p320 = scmp.eq.s32.totalorder %s28, 0
      %p321 = por %p319, %p320
      %p322 = scmp.ne.s32.totalorder %s314, %s316
      %p323 = scmp.eq.s32.totalorder %s33, 1
      %p324 = por %p322, %p323
      %p325 = scmp.ne.s32.totalorder %s316, %s317
      %p326 = scmp.eq.s32.totalorder %s33, 0
      %p327 = por %p325, %p326
      %p328 = scmp.ne.s32.totalorder %s316, %s317
      %p329 = scmp.eq.s32.totalorder %s34, 1
      %p330 = por %p328, %p329
      %p332 = scmp.ne.s32.totalorder %s317, %s331
      %p333 = scmp.eq.s32.totalorder %s34, 0
      %p334 = por %p332, %p333
      %s335 = ssub.s32 %s28, %s35
      %p336 = scmp.eq.s32.totalorder %s335, 0
      %s338 = sadd.s32 %s337, 1
      %s339 = scalar_select %p336, %s337, %s338
      %p342 = pneg %p336
      %p343 = scmp.eq.s32.totalorder %s28, 1
      %p344 = por %p342, %p343
      %p345 = scmp.ne.s32.totalorder %s337, %s340
      %p346 = scmp.eq.s32.totalorder %s28, 0
      %p347 = por %p345, %p346
      %p348 = scmp.ne.s32.totalorder %s337, %s340
      %p349 = scmp.eq.s32.totalorder %s33, 1
      %p350 = por %p348, %p349
      %p351 = scmp.ne.s32.totalorder %s340, %s341
      %p352 = scmp.eq.s32.totalorder %s33, 0
      %p353 = por %p351, %p352
      %p354 = scmp.ne.s32.totalorder %s340, %s341
      %p355 = scmp.eq.s32.totalorder %s34, 1
      %p356 = por %p354, %p355
      %p358 = scmp.ne.s32.totalorder %s341, %s357
      %p359 = scmp.eq.s32.totalorder %s34, 0
      %p360 = por %p358, %p359
      %p361 = scmp.le.s32.totalorder 1, %s28
      %p362 = scmp.lt.s32.totalorder %s28, 3
      %p363 = pnand %p361, %p362
      %p364 = pneg %p363
      // Predicated region
      $region9: #{tpu_custom_call.1} parent=5 // pred_check
        _
      $region10: #{tpu_custom_call.1} parent=5 // pred_check_branch
        %366 = sbr.rel (%p363) target = $region12
      $region11: #{tpu_custom_call.1} parent=5 // pred_region
        %s367 = ssub.s32 %s28, 1
        // Predicated region
        $region13: #{tpu_custom_call.1} parent=11 // pred_check
          %p368 = pneg %p75
        $region14: #{tpu_custom_call.1} parent=11 // pred_check_branch
          %370 = sbr.rel (%p368) target = $region16
        $region15: #{tpu_custom_call.1} parent=11 // pred_region
          %s372 = ssub.s32 32768, 32768
          %373 = vsyncadd [#allocation4], %s372
          %s374 = sshll.u32 [#allocation3], 4
          %s375 = int_to_ptr.vmem [resolvable:$true] %s374
          %380 = dma.hbm_to_vmem [thread:$0]  %s1, 32768, %s375, [#allocation4], 1024, 1024, 64
        $region16: #{tpu_custom_call.1} parent=11 // pred_fallthru
          _
        // Predicated region
        $region17: #{tpu_custom_call.1} parent=11 // pred_check
          %p381 = pneg %p96
        $region18: #{tpu_custom_call.1} parent=11 // pred_check_branch
          %383 = sbr.rel (%p381) target = $region20
        $region19: #{tpu_custom_call.1} parent=11 // pred_region
          _
        $region20: #{tpu_custom_call.1} parent=11 // pred_fallthru
          _
        // Predicated region
        $region21: #{tpu_custom_call.1} parent=11 // pred_check
          %p384 = pneg %p117
        $region22: #{tpu_custom_call.1} parent=11 // pred_check_branch
          %386 = sbr.rel (%p384) target = $region24
        $region23: #{tpu_custom_call.1} parent=11 // pred_region
          _
        $region24: #{tpu_custom_call.1} parent=11 // pred_fallthru
          _
        // Predicated region
        $region25: #{tpu_custom_call.1} parent=11 // pred_check
          %p387 = pneg %p138
        $region26: #{tpu_custom_call.1} parent=11 // pred_check_branch
          %389 = sbr.rel (%p387) target = $region28
        $region27: #{tpu_custom_call.1} parent=11 // pred_region
          _
        $region28: #{tpu_custom_call.1} parent=11 // pred_fallthru
          _
        // Predicated region
        $region29: #{tpu_custom_call.1} parent=11 // pred_check
          %p390 = pneg %p159
        $region30: #{tpu_custom_call.1} parent=11 // pred_check_branch
          %392 = sbr.rel (%p390) target = $region32
        $region31: #{tpu_custom_call.1} parent=11 // pred_region
          %s394 = ssub.s32 4608, 4608
          %395 = vsyncadd [#allocation7], %s394
          %s396 = sshll.u32 [#allocation6], 4
          %s397 = int_to_ptr.vmem [resolvable:$true] %s396
          %402 = dma.hbm_to_vmem [thread:$0]  %s5, 4608, %s397, [#allocation7], 256, 256, 16
        $region32: #{tpu_custom_call.1} parent=11 // pred_fallthru
          _
        // Predicated region
        $region33: #{tpu_custom_call.1} parent=11 // pred_check
          %p403 = pneg %p180
        $region34: #{tpu_custom_call.1} parent=11 // pred_check_branch
          %405 = sbr.rel (%p403) target = $region36
        $region35: #{tpu_custom_call.1} parent=11 // pred_region
          _
        $region36: #{tpu_custom_call.1} parent=11 // pred_fallthru
          _
        // Predicated region
        $region37: #{tpu_custom_call.1} parent=11 // pred_check
          %p406 = pneg %p201
        $region38: #{tpu_custom_call.1} parent=11 // pred_check_branch
          %408 = sbr.rel (%p406) target = $region40
        $region39: #{tpu_custom_call.1} parent=11 // pred_region
          _
        $region40: #{tpu_custom_call.1} parent=11 // pred_fallthru
          _
        // Predicated region
        $region41: #{tpu_custom_call.1} parent=11 // pred_check
          %p409 = pneg %p222
        $region42: #{tpu_custom_call.1} parent=11 // pred_check_branch
          %411 = sbr.rel (%p409) target = $region44
        $region43: #{tpu_custom_call.1} parent=11 // pred_region
          %s413 = ssub.s32 9216, 9216
          %414 = vsyncadd [#allocation7], %s413
          %s415 = sshll.u32 [#allocation8], 4
          %s416 = int_to_ptr.vmem [resolvable:$true] %s415
          %421 = dma.hbm_to_vmem [thread:$0]  %s8, 9216, %s416, [#allocation7], 256, 256, 16
        $region44: #{tpu_custom_call.1} parent=11 // pred_fallthru
          _
        // Predicated region
        $region45: #{tpu_custom_call.1} parent=11 // pred_check
          %p422 = pneg %p243
        $region46: #{tpu_custom_call.1} parent=11 // pred_check_branch
          %424 = sbr.rel (%p422) target = $region48
        $region47: #{tpu_custom_call.1} parent=11 // pred_region
          %s426 = ssub.s32 3072, 3072
          %427 = vsyncadd [#allocation10], %s426
          %s428 = sshll.u32 [#allocation9], 4
          %s429 = int_to_ptr.vmem [resolvable:$true] %s428
          %434 = dma.hbm_to_vmem [thread:$0]  %s9, 3072, %s429, [#allocation10], 384, 384, 24
        $region48: #{tpu_custom_call.1} parent=11 // pred_fallthru
          _
        // Predicated region
        $region49: #{tpu_custom_call.1} parent=11 // pred_check
          %p435 = pneg %p264
        $region50: #{tpu_custom_call.1} parent=11 // pred_check_branch
          %437 = sbr.rel (%p435) target = $region52
        $region51: #{tpu_custom_call.1} parent=11 // pred_region
          _
        $region52: #{tpu_custom_call.1} parent=11 // pred_fallthru
          _
        // Predicated region
        $region53: #{tpu_custom_call.1} parent=11 // pred_check
          %p438 = pneg %p285
        $region54: #{tpu_custom_call.1} parent=11 // pred_check_branch
          %440 = sbr.rel (%p438) target = $region56
        $region55: #{tpu_custom_call.1} parent=11 // pred_region
          %s442 = ssub.s32 18432, 18432
          %443 = vsyncadd [#allocation10], %s442
          %s444 = sshll.u32 [#allocation11], 4
          %s445 = int_to_ptr.vmem [resolvable:$true] %s444
          %450 = dma.hbm_to_vmem [thread:$0]  %s11, 18432, %s445, [#allocation10], 256, 256, 16
        $region56: #{tpu_custom_call.1} parent=11 // pred_fallthru
          _
        // Predicated region
        $region57: #{tpu_custom_call.1} parent=11 // pred_check
          %p451 = pneg %p306
        $region58: #{tpu_custom_call.1} parent=11 // pred_check_branch
          %453 = sbr.rel (%p451) target = $region60
        $region59: #{tpu_custom_call.1} parent=11 // pred_region
          _
        $region60: #{tpu_custom_call.1} parent=11 // pred_fallthru
          _
        // Predicated region
        $region61: #{tpu_custom_call.1} parent=11 // pred_check
          %p454 = pneg %p327
        $region62: #{tpu_custom_call.1} parent=11 // pred_check_branch
          %456 = sbr.rel (%p454) target = $region64
        $region63: #{tpu_custom_call.1} parent=11 // pred_region
          _
        $region64: #{tpu_custom_call.1} parent=11 // pred_fallthru
          _
      $region12: #{tpu_custom_call.1} parent=5 // pred_fallthru
        _
      %p457 = scmp.lt.s32.totalorder %s28, 2
      // Predicated region
      $region65: #{tpu_custom_call.1} parent=5 // pred_check
        %p458 = pneg %p457
      $region66: #{tpu_custom_call.1} parent=5 // pred_check_branch
        %460 = sbr.rel (%p458) target = $region68
      $region67: #{tpu_custom_call.1} parent=5 // pred_region
        // Predicated region
        $region69: #{tpu_custom_call.1} parent=67 // pred_check
          %p461 = pneg %p48
        $region70: #{tpu_custom_call.1} parent=67 // pred_check_branch
          %463 = sbr.rel (%p461) target = $region72
        $region71: #{tpu_custom_call.1} parent=67 // pred_region
          %p464 = scmp.lt.s32.totalorder %s28, 1
          %s465 = scalar_select %p464, %s28, 1
          %s466 = smul.addr %s465, 2
          %s467 = scalar_lea.vmem %s0, %s466
        $region72: #{tpu_custom_call.1} parent=67 // pred_fallthru
          _
      $region68: #{tpu_custom_call.1} parent=5 // pred_fallthru
        _
      %p468 = scmp.le.s32.totalorder 1, %s28
      %p469 = scmp.lt.s32.totalorder %s28, 3
      %p470 = pnand %p468, %p469
      %p471 = pneg %p470
      // Predicated region
      $region73: #{tpu_custom_call.1} parent=5 // pred_check
        _
      $region74: #{tpu_custom_call.1} parent=5 // pred_check_branch
        %473 = sbr.rel (%p470) target = $region76
      $region75: #{tpu_custom_call.1} parent=5 // pred_region
        %s474 = ssub.s32 %s28, 1
        // Predicated region
        $region77: #{tpu_custom_call.1} parent=75 // pred_check
          %p475 = pneg %p75
        $region78: #{tpu_custom_call.1} parent=75 // pred_check_branch
          %477 = sbr.rel (%p475) target = $region80
        $region79: #{tpu_custom_call.1} parent=75 // pred_region
          %478 = dma.done [#allocation4], 32768
        $region80: #{tpu_custom_call.1} parent=75 // pred_fallthru
          _
        // Predicated region
        $region81: #{tpu_custom_call.1} parent=75 // pred_check
          %p479 = pneg %p159
        $region82: #{tpu_custom_call.1} parent=75 // pred_check_branch
          %481 = sbr.rel (%p479) target = $region84
        $region83: #{tpu_custom_call.1} parent=75 // pred_region
          %482 = dma.done [#allocation7], 4608
        $region84: #{tpu_custom_call.1} parent=75 // pred_fallthru
          _
        // Predicated region
        $region85: #{tpu_custom_call.1} parent=75 // pred_check
          %p483 = pneg %p222
        $region86: #{tpu_custom_call.1} parent=75 // pred_check_branch
          %485 = sbr.rel (%p483) target = $region88
        $region87: #{tpu_custom_call.1} parent=75 // pred_region
          %486 = dma.done [#allocation7], 9216
        $region88: #{tpu_custom_call.1} parent=75 // pred_fallthru
          _
        // Predicated region
        $region89: #{tpu_custom_call.1} parent=75 // pred_check
          %p487 = pneg %p243
        $region90: #{tpu_custom_call.1} parent=75 // pred_check_branch
          %489 = sbr.rel (%p487) target = $region92
        $region91: #{tpu_custom_call.1} parent=75 // pred_region
          %490 = dma.done [#allocation10], 3072
        $region92: #{tpu_custom_call.1} parent=75 // pred_fallthru
          _
        // Predicated region
        $region93: #{tpu_custom_call.1} parent=75 // pred_check
          %p491 = pneg %p285
        $region94: #{tpu_custom_call.1} parent=75 // pred_check_branch
          %493 = sbr.rel (%p491) target = $region96
        $region95: #{tpu_custom_call.1} parent=75 // pred_region
          %494 = dma.done [#allocation10], 18432
        $region96: #{tpu_custom_call.1} parent=75 // pred_fallthru
          _
        %p495 = scmp.lt.s32.totalorder %s33, 1
        %s496 = scalar_select %p495, %s33, 1
        %s497 = smul.addr %s496, 2
        %s498 = scalar_lea.vmem %s0, %s497
        %p499 = pneg %p54
        %p500 = pneg %p51
        %p501 = pneg %p75
        %p502 = pneg %p72
        %p503 = pneg %p96
        %p504 = pneg %p93
        %p505 = pneg %p117
        %p506 = pneg %p114
        %p507 = pneg %p138
        %p508 = pneg %p135
        %p509 = pneg %p159
        %p510 = pneg %p156
        %p511 = pneg %p180
        %p512 = pneg %p177
        %p513 = pneg %p201
        %p514 = pneg %p198
        %p515 = pneg %p222
        %p516 = pneg %p219
        %p517 = pneg %p243
        %p518 = pneg %p240
        %p519 = pneg %p264
        %p520 = pneg %p261
        %p521 = pneg %p285
        %p522 = pneg %p282
        %p523 = pneg %p306
        %p524 = pneg %p303
        %p525 = pneg %p327
        %p526 = pneg %p324
        %p527 = pneg %p353
        %p528 = pneg %p350
        %s529 = sand.u32 %s340, 1
        %s530 = scalar_lea.sflag [#allocation5], %s529
        %s531 = sand.u32 %s340, 1
        %s532 = smul.addr %s531, 8
        %s533 = scalar_lea.vmem [#allocation12], %s532
        %p534 = scmp.lt.s32.totalorder %s33, 1
        %s535 = scalar_select %p534, %s33, 1
        %s536 = smul.addr %s535, 2
        %s537 = scalar_lea.vmem %s0, %s536
        %v538 = vld [vmem:[%s537] sm:$0x3]
        %v540 = vlaneseq
        %v541 = vshrl.u32 %v540, 7
        %v542 = vsub.s32 0, %v541
        %v543 = vrot.slane %v538, %v542
        %v544 = vlaneseq
        %v545 = vshrl.u32 %v544, 7
        %v546 = vsub.s32 1, %v545
        %v547 = vrot.slane %v538, %v546
        %550 = vrot.lane.b32.xlu0 %v543, 17
        %v551 = vpop.permute.xlu0 %550
        %552 = vrot.lane.b32.xlu0 %v547, 17
        %v553 = vpop.permute.xlu0 %552
        %v554 = vlaneseq
        %v555 = vand.u32 %v554, 127
        %vm556 = vcmp.lt.s32.totalorder %v555, 17
        %v557 = vsel %vm556, %v551, %v553
        %v558 = vsel %vm556, %v553, %v551
        %559 = vrot.lane.b32.xlu0 %v543, 16
        %v560 = vpop.permute.xlu0 %559
        %561 = vrot.lane.b32.xlu0 %v547, 16
        %v562 = vpop.permute.xlu0 %561
        %vm563 = vcmp.lt.s32.totalorder %v555, 16
        %v564 = vsel %vm563, %v560, %v562
        %v565 = vsel %vm563, %v562, %v560
        %566 = vrot.lane.b32.xlu0 %v543, 15
        %v567 = vpop.permute.xlu0 %566
        %568 = vrot.lane.b32.xlu0 %v547, 15
        %v569 = vpop.permute.xlu0 %568
        %vm570 = vcmp.lt.s32.totalorder %v555, 15
        %v571 = vsel %vm570, %v567, %v569
        %v572 = vsel %vm570, %v569, %v567
        %573 = vrot.lane.b32.xlu0 %v543, 1
        %v574 = vpop.permute.xlu0 %573
        %575 = vrot.lane.b32.xlu0 %v547, 1
        %v576 = vpop.permute.xlu0 %575
        %vm577 = vcmp.lt.s32.totalorder %v555, 1
        %v578 = vsel %vm577, %v574, %v576
        %v579 = vsel %vm577, %v576, %v574
        %580 = vrot.lane.b32.xlu0 %v543, 127
        %v581 = vpop.permute.xlu0 %580
        %582 = vrot.lane.b32.xlu0 %v547, 127
        %v583 = vpop.permute.xlu0 %582
        %vm584 = vcmp.lt.s32.totalorder %v555, 127
        %v585 = vsel %vm584, %v581, %v583
        %v586 = vsel %vm584, %v583, %v581
        %587 = vrot.lane.b32.xlu0 %v543, 113
        %v588 = vpop.permute.xlu0 %587
        %589 = vrot.lane.b32.xlu0 %v547, 113
        %v590 = vpop.permute.xlu0 %589
        %vm591 = vcmp.lt.s32.totalorder %v555, 113
        %v592 = vsel %vm591, %v588, %v590
        %v593 = vsel %vm591, %v590, %v588
        %594 = vrot.lane.b32.xlu0 %v543, 112
        %v595 = vpop.permute.xlu0 %594
        %596 = vrot.lane.b32.xlu0 %v547, 112
        %v597 = vpop.permute.xlu0 %596
        %vm598 = vcmp.lt.s32.totalorder %v555, 112
        %v599 = vsel %vm598, %v595, %v597
        %v600 = vsel %vm598, %v597, %v595
        %601 = vrot.lane.b32.xlu0 %v543, 111
        %v602 = vpop.permute.xlu0 %601
        %603 = vrot.lane.b32.xlu0 %v547, 111
        %v604 = vpop.permute.xlu0 %603
        %vm605 = vcmp.lt.s32.totalorder %v555, 111
        %v606 = vsel %vm605, %v602, %v604
        %v607 = vsel %vm605, %v604, %v602
        %v610 = vrot.slane %v565, 7
        %v611 = vrot.slane %v564, 7
        %v616 = vrot.slane %v572, 6
        %v617 = vrot.slane %v571, 6
        %v622 = vrot.slane %v579, 5
        %v623 = vrot.slane %v578, 5
        %v628 = vrot.slane %v585, 3
        %v629 = vrot.slane %v586, 3
        %v634 = vrot.slane %v592, 2
        %v635 = vrot.slane %v593, 2
        %v640 = vrot.slane %v599, 1
        %v641 = vrot.slane %v600, 1
        %vm644 = vcmask 1040384
        %v645 = vsel %vm644, %v558, %v610
        %v646 = vsel %vm644, %v557, %v611
        %vm647 = vcmask 1041408
        %v648 = vsel %vm647, %v645, %v616
        %v649 = vsel %vm647, %v646, %v617
        %vm650 = vcmask 1042432
        %v651 = vsel %vm650, %v648, %v622
        %v652 = vsel %vm650, %v649, %v623
        %vm653 = vcmask 1043456
        %v654 = vsel %vm653, %v651, %v543
        %v655 = vsel %vm653, %v652, %v547
        %vm656 = vcmask 1044480
        %v657 = vsel %vm656, %v654, %v628
        %v658 = vsel %vm656, %v655, %v629
        %vm659 = vcmask 1045504
        %v660 = vsel %vm659, %v657, %v634
        %v661 = vsel %vm659, %v658, %v635
        %vm662 = vcmask 1046528
        %v663 = vsel %vm662, %v660, %v640
        %v664 = vsel %vm662, %v661, %v641
        %v665 = vld [vmem:[%s2] sm:$0xff]
        %v666 = vld [vmem:[%s2 + $0x8] sm:$0xff]
        %v667 = vld [vmem:[%s2 + $0x10] sm:$0x1]
        %v668 = vld [vmem:[%s2 + $0x18] sm:$0x1]
        %v669 = vmul.f32 %v663, %v665
        %v670 = vmul.f32 %v664, %v666
        %v671 = vmul.f32 %v606, %v667
        %v672 = vmul.f32 %v607, %v668
        %v673 = vld [vmem:[%s3] sm:$0xff]
        %v674 = vld [vmem:[%s3 + $0x8] sm:$0xff]
        %v675 = vld [vmem:[%s4] sm:$0xff]
        %v676 = vld [vmem:[%s4 + $0x8] sm:$0xff]
        %678 = vset.pattern.permute.xlu0 0
        %679 = vperm.xlu0 %678, %v675
        %v680 = vpop.permute.xlu0 %679
        %683 = vset.pattern.permute.xlu0 0
        %684 = vperm.xlu0 %683, %v676
        %v685 = vpop.permute.xlu0 %684
        %vm687 = vcmask 72704
        %v689 = vsel %vm687, %v673, 0
        %v692 = vsel %vm687, %v674, 0
        %v695 = vsel %vm644, %v671, 0
        %v698 = vsel %vm644, %v672, 0
        %700 = vmatprep.subr.mxu0 0.0
        %701 = vmatpush1.msra.mxu0 0.0
        %702 = vmatprep.subr.mxu0 0.0
        %703 = vmatpush1.msra.mxu0 0.0
        %704 = vmatprep.subr.mxu0 0.0
        %705 = vmatpush1.msra.mxu0 0.0
        %706 = vmatprep.subr.mxu0 0.0
        %707 = vmatpush1.msra.mxu0 0.0
        %708 = vmatprep.subr.mxu0 0.0
        %709 = vmatpush1.msra.mxu0 0.0
        %710 = vmatprep.subr.mxu0 0.0
        %711 = vmatpush1.msra.mxu0 0.0
        %712 = vmatprep.subr.mxu0 0.0
        %713 = vmatpush1.msra.mxu0 0.0
        %714 = vmatprep.subr.mxu0 0.0
        %715 = vmatpush1.msra.mxu0 0.0
        %716 = vmatprep.subr.mxu0 0.0
        %717 = vmatpush1.msra.mxu0 0.0
        %718 = vmatprep.subr.mxu0 0.0
        %719 = vmatpush1.msra.mxu0 0.0
        %720 = vmatprep.subr.mxu0 0.0
        %721 = vmatpush1.msra.mxu0 0.0
        %722 = vmatprep.subr.mxu0 0.0
        %723 = vmatpush1.msra.mxu0 0.0
        %724 = vmatprep.subr.mxu0 0.0
        %725 = vmatpush1.msra.mxu0 0.0
        %726 = vmatprep.subr.mxu0 0.0
        %727 = vmatpush1.msra.mxu0 0.0
        %728 = vmatprep.subr.mxu0 %v698
        %729 = vmatpush1.msra.mxu0 %v695
        %730 = vmatprep.subr.mxu0 %v670
        %731 = vmatpush1.msra.mxu0 %v669
        %732 = vmatprep.subr.mxu0 0.0
        %733 = vmatpush2.msra.mxu0 0.0
        %734 = vmatprep.subr.mxu0 0.0
        %735 = vmatpush2.msra.mxu0 0.0
        %736 = vmatprep.subr.mxu0 0.0
        %737 = vmatpush2.msra.mxu0 0.0
        %738 = vmatprep.subr.mxu0 0.0
        %739 = vmatpush2.msra.mxu0 0.0
        %740 = vmatprep.subr.mxu0 0.0
        %741 = vmatpush2.msra.mxu0 0.0
        %742 = vmatprep.subr.mxu0 0.0
        %743 = vmatpush2.msra.mxu0 0.0
        %744 = vmatprep.subr.mxu0 0.0
        %745 = vmatpush2.msra.mxu0 0.0
        %746 = vmatprep.subr.mxu0 0.0
        %747 = vmatpush2.msra.mxu0 0.0
        %748 = vmatprep.subr.mxu0 0.0
        %749 = vmatpush2.msra.mxu0 0.0
        %750 = vmatprep.subr.mxu0 0.0
        %751 = vmatpush2.msra.mxu0 0.0
        %752 = vmatprep.subr.mxu0 0.0
        %753 = vmatpush2.msra.mxu0 0.0
        %754 = vmatprep.subr.mxu0 0.0
        %755 = vmatpush2.msra.mxu0 0.0
        %756 = vmatprep.subr.mxu0 0.0
        %757 = vmatpush2.msra.mxu0 0.0
        %758 = vmatprep.subr.mxu0 0.0
        %759 = vmatpush2.msra.mxu0 0.0
        %760 = vmatprep.subr.mxu0 0.0
        %761 = vmatpush2.msra.mxu0 0.0
        %762 = vmatprep.subr.mxu0 0.0
        %763 = vmatpush2.msra.mxu0 0.0
        %764 = vmatprep.mubr.f32.mxu0 0.0
        %765 = vmatmul.mubr.f32.gmra.mxu0 %v689
        %v766 = vpop.f32.mrf.mxu0
        %v767 = vadd.f32 %v680, %v766
        %v768 = vpop.f32.mrf.mxu0
        %v769 = vadd.f32 %v680, %v768
        %770 = vmatprep.mubr.f32.mxu0 0.0
        %771 = vmatmul.mubr.f32.gmra.mxu0 %v692
        %v772 = vpop.f32.mrf.mxu0
        %v773 = vadd.f32 %v685, %v772
        %v774 = vpop.f32.mrf.mxu0
        %v775 = vadd.f32 %v685, %v774
        %776 = vdwg.mxu0
        %v777 = vmax.f32 %v767, 0.0
        %v778 = vmax.f32 %v769, 0.0
        %v779 = vmax.f32 %v773, 0.0
        %v780 = vmax.f32 %v775, 0.0
        %781 = vrot.lane.b32.xlu0 %v777, 17
        %v782 = vpop.permute.xlu0 %781
        %783 = vrot.lane.b32.xlu0 %v779, 17
        %v784 = vpop.permute.xlu0 %783
        %785 = vrot.lane.b32.xlu0 %v778, 17
        %v786 = vpop.permute.xlu0 %785
        %787 = vrot.lane.b32.xlu0 %v780, 17
        %v788 = vpop.permute.xlu0 %787
        %v789 = vsel %vm556, %v782, %v786
        %v790 = vsel %vm556, %v784, %v788
        %v791 = vsel %vm556, %v786, %v782
        %v792 = vsel %vm556, %v788, %v784
        %793 = vrot.lane.b32.xlu0 %v777, 16
        %v794 = vpop.permute.xlu0 %793
        %795 = vrot.lane.b32.xlu0 %v779, 16
        %v796 = vpop.permute.xlu0 %795
        %797 = vrot.lane.b32.xlu0 %v778, 16
        %v798 = vpop.permute.xlu0 %797
        %799 = vrot.lane.b32.xlu0 %v780, 16
        %v800 = vpop.permute.xlu0 %799
        %v801 = vsel %vm563, %v794, %v798
        %v802 = vsel %vm563, %v796, %v800
        %v803 = vsel %vm563, %v798, %v794
        %v804 = vsel %vm563, %v800, %v796
        %805 = vrot.lane.b32.xlu0 %v777, 15
        %v806 = vpop.permute.xlu0 %805
        %807 = vrot.lane.b32.xlu0 %v779, 15
        %v808 = vpop.permute.xlu0 %807
        %809 = vrot.lane.b32.xlu0 %v778, 15
        %v810 = vpop.permute.xlu0 %809
        %811 = vrot.lane.b32.xlu0 %v780, 15
        %v812 = vpop.permute.xlu0 %811
        %v813 = vsel %vm570, %v806, %v810
        %v814 = vsel %vm570, %v808, %v812
        %v815 = vsel %vm570, %v810, %v806
        %v816 = vsel %vm570, %v812, %v808
        %817 = vrot.lane.b32.xlu0 %v777, 1
        %v818 = vpop.permute.xlu0 %817
        %819 = vrot.lane.b32.xlu0 %v779, 1
        %v820 = vpop.permute.xlu0 %819
        %821 = vrot.lane.b32.xlu0 %v778, 1
        %v822 = vpop.permute.xlu0 %821
        %823 = vrot.lane.b32.xlu0 %v780, 1
        %v824 = vpop.permute.xlu0 %823
        %v825 = vsel %vm577, %v818, %v822
        %v826 = vsel %vm577, %v820, %v824
        %v827 = vsel %vm577, %v822, %v818
        %v828 = vsel %vm577, %v824, %v820
        %829 = vrot.lane.b32.xlu0 %v777, 127
        %v830 = vpop.permute.xlu0 %829
        %831 = vrot.lane.b32.xlu0 %v779, 127
        %v832 = vpop.permute.xlu0 %831
        %833 = vrot.lane.b32.xlu0 %v778, 127
        %v834 = vpop.permute.xlu0 %833
        %835 = vrot.lane.b32.xlu0 %v780, 127
        %v836 = vpop.permute.xlu0 %835
        %v837 = vsel %vm584, %v830, %v834
        %v838 = vsel %vm584, %v832, %v836
        %v839 = vsel %vm584, %v834, %v830
        %v840 = vsel %vm584, %v836, %v832
        %841 = vrot.lane.b32.xlu0 %v777, 113
        %v842 = vpop.permute.xlu0 %841
        %843 = vrot.lane.b32.xlu0 %v779, 113
        %v844 = vpop.permute.xlu0 %843
        %845 = vrot.lane.b32.xlu0 %v778, 113
        %v846 = vpop.permute.xlu0 %845
        %847 = vrot.lane.b32.xlu0 %v780, 113
        %v848 = vpop.permute.xlu0 %847
        %v849 = vsel %vm591, %v842, %v846
        %v850 = vsel %vm591, %v844, %v848
        %v851 = vsel %vm591, %v846, %v842
        %v852 = vsel %vm591, %v848, %v844
        %853 = vrot.lane.b32.xlu0 %v777, 112
        %v854 = vpop.permute.xlu0 %853
        %855 = vrot.lane.b32.xlu0 %v779, 112
        %v856 = vpop.permute.xlu0 %855
        %857 = vrot.lane.b32.xlu0 %v778, 112
        %v858 = vpop.permute.xlu0 %857
        %859 = vrot.lane.b32.xlu0 %v780, 112
        %v860 = vpop.permute.xlu0 %859
        %v861 = vsel %vm598, %v854, %v858
        %v862 = vsel %vm598, %v856, %v860
        %v863 = vsel %vm598, %v858, %v854
        %v864 = vsel %vm598, %v860, %v856
        %865 = vrot.lane.b32.xlu0 %v777, 111
        %v866 = vpop.permute.xlu0 %865
        %867 = vrot.lane.b32.xlu0 %v779, 111
        %v868 = vpop.permute.xlu0 %867
        %869 = vrot.lane.b32.xlu0 %v778, 111
        %v870 = vpop.permute.xlu0 %869
        %871 = vrot.lane.b32.xlu0 %v780, 111
        %v872 = vpop.permute.xlu0 %871
        %v873 = vsel %vm605, %v866, %v870
        %v874 = vsel %vm605, %v868, %v872
        %v875 = vsel %vm605, %v870, %v866
        %v876 = vsel %vm605, %v872, %v868
        %v877 = vld [vmem:[#allocation6] sm:$0xff]
        %v878 = vld [vmem:[#allocation6 + $0x8] sm:$0xff]
        %v879 = vld [vmem:[#allocation6 + $0x10] sm:$0xff]
        %v880 = vld [vmem:[#allocation6 + $0x18] sm:$0xff]
        %v881 = vld [vmem:[#allocation6 + $0x20] sm:$0xff]
        %v882 = vld [vmem:[#allocation6 + $0x28] sm:$0xff]
        %v883 = vld [vmem:[#allocation6 + $0x30] sm:$0xff]
        %v884 = vld [vmem:[#allocation6 + $0x38] sm:$0xff]
        %v885 = vld [vmem:[#allocation6 + $0x40] sm:$0xff]
        %v886 = vld [vmem:[#allocation6 + $0x48] sm:$0xff]
        %v887 = vld [vmem:[#allocation6 + $0x50] sm:$0xff]
        %v888 = vld [vmem:[#allocation6 + $0x58] sm:$0xff]
        %v889 = vld [vmem:[#allocation6 + $0x60] sm:$0xff]
        %v890 = vld [vmem:[#allocation6 + $0x68] sm:$0xff]
        %v891 = vld [vmem:[#allocation6 + $0x70] sm:$0xff]
        %v892 = vld [vmem:[#allocation6 + $0x78] sm:$0xff]
        %v893 = vld [vmem:[#allocation6 + $0x80] sm:$0xff]
        %v894 = vld [vmem:[#allocation6 + $0x88] sm:$0xff]
        %v895 = vld [vmem:[#allocation6 + $0x90] sm:$0xff]
        %v896 = vld [vmem:[#allocation6 + $0x98] sm:$0xff]
        %v897 = vld [vmem:[#allocation6 + $0xa0] sm:$0xff]
        %v898 = vld [vmem:[#allocation6 + $0xa8] sm:$0xff]
        %v899 = vld [vmem:[#allocation6 + $0xb0] sm:$0xff]
        %v900 = vld [vmem:[#allocation6 + $0xb8] sm:$0xff]
        %v901 = vld [vmem:[#allocation6 + $0xc0] sm:$0xff]
        %v902 = vld [vmem:[#allocation6 + $0xc8] sm:$0xff]
        %v903 = vld [vmem:[#allocation6 + $0xd0] sm:$0xff]
        %v904 = vld [vmem:[#allocation6 + $0xd8] sm:$0xff]
        %v905 = vld [vmem:[#allocation6 + $0xe0] sm:$0xff]
        %v906 = vld [vmem:[#allocation6 + $0xe8] sm:$0xff]
        %v907 = vld [vmem:[#allocation6 + $0xf0] sm:$0xff]
        %v908 = vld [vmem:[#allocation6 + $0xf8] sm:$0xff]
        %v909 = vld [vmem:[#allocation6 + $0x100] sm:$0xff]
        %v910 = vld [vmem:[#allocation6 + $0x108] sm:$0xff]
        %v911 = vld [vmem:[#allocation6 + $0x110] sm:$0xff]
        %v912 = vld [vmem:[#allocation6 + $0x118] sm:$0xff]
        %v913 = vmul.f32 %v791, %v877
        %v914 = vmul.f32 %v789, %v878
        %v915 = vmul.f32 %v792, %v879
        %v916 = vmul.f32 %v790, %v880
        %v917 = vmul.f32 %v803, %v881
        %v918 = vmul.f32 %v801, %v882
        %v919 = vmul.f32 %v804, %v883
        %v920 = vmul.f32 %v802, %v884
        %v921 = vmul.f32 %v815, %v885
        %v922 = vmul.f32 %v813, %v886
        %v923 = vmul.f32 %v816, %v887
        %v924 = vmul.f32 %v814, %v888
        %v925 = vmul.f32 %v827, %v889
        %v926 = vmul.f32 %v825, %v890
        %v927 = vmul.f32 %v828, %v891
        %v928 = vmul.f32 %v826, %v892
        %v929 = vmul.f32 %v777, %v893
        %v930 = vmul.f32 %v778, %v894
        %v931 = vmul.f32 %v779, %v895
        %v932 = vmul.f32 %v780, %v896
        %v933 = vmul.f32 %v837, %v897
        %v934 = vmul.f32 %v839, %v898
        %v935 = vmul.f32 %v838, %v899
        %v936 = vmul.f32 %v840, %v900
        %v937 = vmul.f32 %v849, %v901
        %v938 = vmul.f32 %v851, %v902
        %v939 = vmul.f32 %v850, %v903
        %v940 = vmul.f32 %v852, %v904
        %v941 = vmul.f32 %v861, %v905
        %v942 = vmul.f32 %v863, %v906
        %v943 = vmul.f32 %v862, %v907
        %v944 = vmul.f32 %v864, %v908
        %v945 = vmul.f32 %v873, %v909
        %v946 = vmul.f32 %v875, %v910
        %v947 = vmul.f32 %v874, %v911
        %v948 = vmul.f32 %v876, %v912
        %v949 = vld [vmem:[%s6] sm:$0xff]
        %v950 = vld [vmem:[%s6 + $0x8] sm:$0xff]
        %v951 = vld [vmem:[%s6 + $0x10] sm:$0xff]
        %v952 = vld [vmem:[%s6 + $0x18] sm:$0xff]
        %v953 = vld [vmem:[%s6 + $0x20] sm:$0xff]
        %v954 = vld [vmem:[%s6 + $0x28] sm:$0xff]
        %v955 = vld [vmem:[%s6 + $0x30] sm:$0xff]
        %v956 = vld [vmem:[%s6 + $0x38] sm:$0xff]
        %v957 = vld [vmem:[%s7] sm:$0xff]
        %v958 = vld [vmem:[%s7 + $0x8] sm:$0xff]
        %v959 = vld [vmem:[%s7 + $0x10] sm:$0xff]
        %v960 = vld [vmem:[%s7 + $0x18] sm:$0xff]
        %962 = vset.pattern.permute.xlu0 0
        %963 = vperm.xlu0 %962, %v957
        %v964 = vpop.permute.xlu0 %963
        %967 = vset.pattern.permute.xlu0 0
        %968 = vperm.xlu0 %967, %v958
        %v969 = vpop.permute.xlu0 %968
        %972 = vset.pattern.permute.xlu0 0
        %973 = vperm.xlu0 %972, %v959
        %v974 = vpop.permute.xlu0 %973
        %977 = vset.pattern.permute.xlu0 0
        %978 = vperm.xlu0 %977, %v960
        %v979 = vpop.permute.xlu0 %978
        %vm981 = vcmask 130048
        %v983 = vsel %vm981, %v950, 0
        %v986 = vsel %vm981, %v952, 0
        %v989 = vsel %vm981, %v954, 0
        %v992 = vsel %vm981, %v956, 0
        %994 = vmatprep.subr.mxu0 %v944
        %995 = vmatpush1.msra.mxu0 %v943
        %996 = vmatprep.subr.mxu0 %v942
        %997 = vmatpush1.msra.mxu0 %v941
        %998 = vmatprep.subr.mxu0 %v940
        %999 = vmatpush1.msra.mxu0 %v939
        %1000 = vmatprep.subr.mxu0 %v938
        %1001 = vmatpush1.msra.mxu0 %v937
        %1002 = vmatprep.subr.mxu0 %v936
        %1003 = vmatpush1.msra.mxu0 %v935
        %1004 = vmatprep.subr.mxu0 %v934
        %1005 = vmatpush1.msra.mxu0 %v933
        %1006 = vmatprep.subr.mxu0 %v932
        %1007 = vmatpush1.msra.mxu0 %v931
        %1008 = vmatprep.subr.mxu0 %v930
        %1009 = vmatpush1.msra.mxu0 %v929
        %1010 = vmatprep.subr.mxu0 %v928
        %1011 = vmatpush1.msra.mxu0 %v927
        %1012 = vmatprep.subr.mxu0 %v926
        %1013 = vmatpush1.msra.mxu0 %v925
        %1014 = vmatprep.subr.mxu0 %v924
        %1015 = vmatpush1.msra.mxu0 %v923
        %1016 = vmatprep.subr.mxu0 %v922
        %1017 = vmatpush1.msra.mxu0 %v921
        %1018 = vmatprep.subr.mxu0 %v920
        %1019 = vmatpush1.msra.mxu0 %v919
        %1020 = vmatprep.subr.mxu0 %v918
        %1021 = vmatpush1.msra.mxu0 %v917
        %1022 = vmatprep.subr.mxu0 %v916
        %1023 = vmatpush1.msra.mxu0 %v915
        %1024 = vmatprep.subr.mxu0 %v914
        %1025 = vmatpush1.msra.mxu0 %v913
        %1026 = vmatprep.subr.mxu0 0.0
        %1027 = vmatpush2.msra.mxu0 0.0
        %1028 = vmatprep.subr.mxu0 0.0
        %1029 = vmatpush2.msra.mxu0 0.0
        %1030 = vmatprep.subr.mxu0 0.0
        %1031 = vmatpush2.msra.mxu0 0.0
        %1032 = vmatprep.subr.mxu0 0.0
        %1033 = vmatpush2.msra.mxu0 0.0
        %1034 = vmatprep.subr.mxu0 0.0
        %1035 = vmatpush2.msra.mxu0 0.0
        %1036 = vmatprep.subr.mxu0 0.0
        %1037 = vmatpush2.msra.mxu0 0.0
        %1038 = vmatprep.subr.mxu0 0.0
        %1039 = vmatpush2.msra.mxu0 0.0
        %1040 = vmatprep.subr.mxu0 0.0
        %1041 = vmatpush2.msra.mxu0 0.0
        %1042 = vmatprep.subr.mxu0 0.0
        %1043 = vmatpush2.msra.mxu0 0.0
        %1044 = vmatprep.subr.mxu0 0.0
        %1045 = vmatpush2.msra.mxu0 0.0
        %1046 = vmatprep.subr.mxu0 0.0
        %1047 = vmatpush2.msra.mxu0 0.0
        %1048 = vmatprep.subr.mxu0 0.0
        %1049 = vmatpush2.msra.mxu0 0.0
        %1050 = vmatprep.subr.mxu0 0.0
        %1051 = vmatpush2.msra.mxu0 0.0
        %1052 = vmatprep.subr.mxu0 0.0
        %1053 = vmatpush2.msra.mxu0 0.0
        %1054 = vmatprep.subr.mxu0 %v948
        %1055 = vmatpush2.msra.mxu0 %v947
        %1056 = vmatprep.subr.mxu0 %v946
        %1057 = vmatpush2.msra.mxu0 %v945
        %1058 = vmatprep.mubr.f32.mxu0 %v983
        %1059 = vmatmul.mubr.f32.gmra.mxu0 %v949
        %v1060 = vpop.f32.mrf.mxu0
        %v1061 = vadd.f32 %v964, %v1060
        %v1062 = vpop.f32.mrf.mxu0
        %v1063 = vadd.f32 %v964, %v1062
        %1064 = vmatprep.mubr.f32.mxu0 %v986
        %1065 = vmatmul.mubr.f32.gmra.mxu0 %v951
        %v1066 = vpop.f32.mrf.mxu0
        %v1067 = vadd.f32 %v969, %v1066
        %v1068 = vpop.f32.mrf.mxu0
        %v1069 = vadd.f32 %v969, %v1068
        %1070 = vmatprep.mubr.f32.mxu0 %v989
        %1071 = vmatmul.mubr.f32.gmra.mxu0 %v953
        %v1072 = vpop.f32.mrf.mxu0
        %v1073 = vadd.f32 %v974, %v1072
        %v1074 = vpop.f32.mrf.mxu0
        %v1075 = vadd.f32 %v974, %v1074
        %1076 = vmatprep.mubr.f32.mxu0 %v992
        %1077 = vmatmul.mubr.f32.gmra.mxu0 %v955
        %v1078 = vpop.f32.mrf.mxu0
        %v1079 = vadd.f32 %v979, %v1078
        %v1080 = vpop.f32.mrf.mxu0
        %v1081 = vadd.f32 %v979, %v1080
        %1082 = vdwg.mxu0
        %v1083 = vmax.f32 %v1061, 0.0
        %v1084 = vmax.f32 %v1063, 0.0
        %v1085 = vmax.f32 %v1067, 0.0
        %v1086 = vmax.f32 %v1069, 0.0
        %v1087 = vmax.f32 %v1073, 0.0
        %v1088 = vmax.f32 %v1075, 0.0
        %v1089 = vmax.f32 %v1079, 0.0
        %v1090 = vmax.f32 %v1081, 0.0
        %1091 = vrot.lane.b32.xlu0 %v1083, 17
        %v1092 = vpop.permute.xlu0 %1091
        %1093 = vrot.lane.b32.xlu0 %v1085, 17
        %v1094 = vpop.permute.xlu0 %1093
        %1095 = vrot.lane.b32.xlu0 %v1087, 17
        %v1096 = vpop.permute.xlu0 %1095
        %1097 = vrot.lane.b32.xlu0 %v1089, 17
        %v1098 = vpop.permute.xlu0 %1097
        %1099 = vrot.lane.b32.xlu0 %v1084, 17
        %v1100 = vpop.permute.xlu0 %1099
        %1101 = vrot.lane.b32.xlu0 %v1086, 17
        %v1102 = vpop.permute.xlu0 %1101
        %1103 = vrot.lane.b32.xlu0 %v1088, 17
        %v1104 = vpop.permute.xlu0 %1103
        %1105 = vrot.lane.b32.xlu0 %v1090, 17
        %v1106 = vpop.permute.xlu0 %1105
        %v1107 = vsel %vm556, %v1092, %v1100
        %v1108 = vsel %vm556, %v1094, %v1102
        %v1109 = vsel %vm556, %v1096, %v1104
        %v1110 = vsel %vm556, %v1098, %v1106
        %v1111 = vsel %vm556, %v1100, %v1092
        %v1112 = vsel %vm556, %v1102, %v1094
        %v1113 = vsel %vm556, %v1104, %v1096
        %v1114 = vsel %vm556, %v1106, %v1098
        %1115 = vrot.lane.b32.xlu0 %v1083, 16
        %v1116 = vpop.permute.xlu0 %1115
        %1117 = vrot.lane.b32.xlu0 %v1085, 16
        %v1118 = vpop.permute.xlu0 %1117
        %1119 = vrot.lane.b32.xlu0 %v1087, 16
        %v1120 = vpop.permute.xlu0 %1119
        %1121 = vrot.lane.b32.xlu0 %v1089, 16
        %v1122 = vpop.permute.xlu0 %1121
        %1123 = vrot.lane.b32.xlu0 %v1084, 16
        %v1124 = vpop.permute.xlu0 %1123
        %1125 = vrot.lane.b32.xlu0 %v1086, 16
        %v1126 = vpop.permute.xlu0 %1125
        %1127 = vrot.lane.b32.xlu0 %v1088, 16
        %v1128 = vpop.permute.xlu0 %1127
        %1129 = vrot.lane.b32.xlu0 %v1090, 16
        %v1130 = vpop.permute.xlu0 %1129
        %v1131 = vsel %vm563, %v1116, %v1124
        %v1132 = vsel %vm563, %v1118, %v1126
        %v1133 = vsel %vm563, %v1120, %v1128
        %v1134 = vsel %vm563, %v1122, %v1130
        %v1135 = vsel %vm563, %v1124, %v1116
        %v1136 = vsel %vm563, %v1126, %v1118
        %v1137 = vsel %vm563, %v1128, %v1120
        %v1138 = vsel %vm563, %v1130, %v1122
        %1139 = vrot.lane.b32.xlu0 %v1083, 15
        %v1140 = vpop.permute.xlu0 %1139
        %1141 = vrot.lane.b32.xlu0 %v1085, 15
        %v1142 = vpop.permute.xlu0 %1141
        %1143 = vrot.lane.b32.xlu0 %v1087, 15
        %v1144 = vpop.permute.xlu0 %1143
        %1145 = vrot.lane.b32.xlu0 %v1089, 15
        %v1146 = vpop.permute.xlu0 %1145
        %1147 = vrot.lane.b32.xlu0 %v1084, 15
        %v1148 = vpop.permute.xlu0 %1147
        %1149 = vrot.lane.b32.xlu0 %v1086, 15
        %v1150 = vpop.permute.xlu0 %1149
        %1151 = vrot.lane.b32.xlu0 %v1088, 15
        %v1152 = vpop.permute.xlu0 %1151
        %1153 = vrot.lane.b32.xlu0 %v1090, 15
        %v1154 = vpop.permute.xlu0 %1153
        %v1155 = vsel %vm570, %v1140, %v1148
        %v1156 = vsel %vm570, %v1142, %v1150
        %v1157 = vsel %vm570, %v1144, %v1152
        %v1158 = vsel %vm570, %v1146, %v1154
        %v1159 = vsel %vm570, %v1148, %v1140
        %v1160 = vsel %vm570, %v1150, %v1142
        %v1161 = vsel %vm570, %v1152, %v1144
        %v1162 = vsel %vm570, %v1154, %v1146
        %1163 = vrot.lane.b32.xlu0 %v1083, 1
        %v1164 = vpop.permute.xlu0 %1163
        %1165 = vrot.lane.b32.xlu0 %v1085, 1
        %v1166 = vpop.permute.xlu0 %1165
        %1167 = vrot.lane.b32.xlu0 %v1087, 1
        %v1168 = vpop.permute.xlu0 %1167
        %1169 = vrot.lane.b32.xlu0 %v1089, 1
        %v1170 = vpop.permute.xlu0 %1169
        %1171 = vrot.lane.b32.xlu0 %v1084, 1
        %v1172 = vpop.permute.xlu0 %1171
        %1173 = vrot.lane.b32.xlu0 %v1086, 1
        %v1174 = vpop.permute.xlu0 %1173
        %1175 = vrot.lane.b32.xlu0 %v1088, 1
        %v1176 = vpop.permute.xlu0 %1175
        %1177 = vrot.lane.b32.xlu0 %v1090, 1
        %v1178 = vpop.permute.xlu0 %1177
        %v1179 = vsel %vm577, %v1164, %v1172
        %v1180 = vsel %vm577, %v1166, %v1174
        %v1181 = vsel %vm577, %v1168, %v1176
        %v1182 = vsel %vm577, %v1170, %v1178
        %v1183 = vsel %vm577, %v1172, %v1164
        %v1184 = vsel %vm577, %v1174, %v1166
        %v1185 = vsel %vm577, %v1176, %v1168
        %v1186 = vsel %vm577, %v1178, %v1170
        %1187 = vrot.lane.b32.xlu0 %v1083, 127
        %v1188 = vpop.permute.xlu0 %1187
        %1189 = vrot.lane.b32.xlu0 %v1085, 127
        %v1190 = vpop.permute.xlu0 %1189
        %1191 = vrot.lane.b32.xlu0 %v1087, 127
        %v1192 = vpop.permute.xlu0 %1191
        %1193 = vrot.lane.b32.xlu0 %v1089, 127
        %v1194 = vpop.permute.xlu0 %1193
        %1195 = vrot.lane.b32.xlu0 %v1084, 127
        %v1196 = vpop.permute.xlu0 %1195
        %1197 = vrot.lane.b32.xlu0 %v1086, 127
        %v1198 = vpop.permute.xlu0 %1197
        %1199 = vrot.lane.b32.xlu0 %v1088, 127
        %v1200 = vpop.permute.xlu0 %1199
        %1201 = vrot.lane.b32.xlu0 %v1090, 127
        %v1202 = vpop.permute.xlu0 %1201
        %v1203 = vsel %vm584, %v1188, %v1196
        %v1204 = vsel %vm584, %v1190, %v1198
        %v1205 = vsel %vm584, %v1192, %v1200
        %v1206 = vsel %vm584, %v1194, %v1202
        %v1207 = vsel %vm584, %v1196, %v1188
        %v1208 = vsel %vm584, %v1198, %v1190
        %v1209 = vsel %vm584, %v1200, %v1192
        %v1210 = vsel %vm584, %v1202, %v1194
        %1211 = vrot.lane.b32.xlu0 %v1083, 113
        %v1212 = vpop.permute.xlu0 %1211
        %1213 = vrot.lane.b32.xlu0 %v1085, 113
        %v1214 = vpop.permute.xlu0 %1213
        %1215 = vrot.lane.b32.xlu0 %v1087, 113
        %v1216 = vpop.permute.xlu0 %1215
        %1217 = vrot.lane.b32.xlu0 %v1089, 113
        %v1218 = vpop.permute.xlu0 %1217
        %1219 = vrot.lane.b32.xlu0 %v1084, 113
        %v1220 = vpop.permute.xlu0 %1219
        %1221 = vrot.lane.b32.xlu0 %v1086, 113
        %v1222 = vpop.permute.xlu0 %1221
        %1223 = vrot.lane.b32.xlu0 %v1088, 113
        %v1224 = vpop.permute.xlu0 %1223
        %1225 = vrot.lane.b32.xlu0 %v1090, 113
        %v1226 = vpop.permute.xlu0 %1225
        %v1227 = vsel %vm591, %v1212, %v1220
        %v1228 = vsel %vm591, %v1214, %v1222
        %v1229 = vsel %vm591, %v1216, %v1224
        %v1230 = vsel %vm591, %v1218, %v1226
        %v1231 = vsel %vm591, %v1220, %v1212
        %v1232 = vsel %vm591, %v1222, %v1214
        %v1233 = vsel %vm591, %v1224, %v1216
        %v1234 = vsel %vm591, %v1226, %v1218
        %1235 = vrot.lane.b32.xlu0 %v1083, 112
        %v1236 = vpop.permute.xlu0 %1235
        %1237 = vrot.lane.b32.xlu0 %v1085, 112
        %v1238 = vpop.permute.xlu0 %1237
        %1239 = vrot.lane.b32.xlu0 %v1087, 112
        %v1240 = vpop.permute.xlu0 %1239
        %1241 = vrot.lane.b32.xlu0 %v1089, 112
        %v1242 = vpop.permute.xlu0 %1241
        %1243 = vrot.lane.b32.xlu0 %v1084, 112
        %v1244 = vpop.permute.xlu0 %1243
        %1245 = vrot.lane.b32.xlu0 %v1086, 112
        %v1246 = vpop.permute.xlu0 %1245
        %1247 = vrot.lane.b32.xlu0 %v1088, 112
        %v1248 = vpop.permute.xlu0 %1247
        %1249 = vrot.lane.b32.xlu0 %v1090, 112
        %v1250 = vpop.permute.xlu0 %1249
        %v1251 = vsel %vm598, %v1236, %v1244
        %v1252 = vsel %vm598, %v1238, %v1246
        %v1253 = vsel %vm598, %v1240, %v1248
        %v1254 = vsel %vm598, %v1242, %v1250
        %v1255 = vsel %vm598, %v1244, %v1236
        %v1256 = vsel %vm598, %v1246, %v1238
        %v1257 = vsel %vm598, %v1248, %v1240
        %v1258 = vsel %vm598, %v1250, %v1242
        %1259 = vrot.lane.b32.xlu0 %v1083, 111
        %v1260 = vpop.permute.xlu0 %1259
        %1261 = vrot.lane.b32.xlu0 %v1085, 111
        %v1262 = vpop.permute.xlu0 %1261
        %1263 = vrot.lane.b32.xlu0 %v1087, 111
        %v1264 = vpop.permute.xlu0 %1263
        %1265 = vrot.lane.b32.xlu0 %v1089, 111
        %v1266 = vpop.permute.xlu0 %1265
        %1267 = vrot.lane.b32.xlu0 %v1084, 111
        %v1268 = vpop.permute.xlu0 %1267
        %1269 = vrot.lane.b32.xlu0 %v1086, 111
        %v1270 = vpop.permute.xlu0 %1269
        %1271 = vrot.lane.b32.xlu0 %v1088, 111
        %v1272 = vpop.permute.xlu0 %1271
        %1273 = vrot.lane.b32.xlu0 %v1090, 111
        %v1274 = vpop.permute.xlu0 %1273
        %v1275 = vsel %vm605, %v1260, %v1268
        %v1276 = vsel %vm605, %v1262, %v1270
        %v1277 = vsel %vm605, %v1264, %v1272
        %v1278 = vsel %vm605, %v1266, %v1274
        %v1279 = vsel %vm605, %v1268, %v1260
        %v1280 = vsel %vm605, %v1270, %v1262
        %v1281 = vsel %vm605, %v1272, %v1264
        %v1282 = vsel %vm605, %v1274, %v1266
        %v1283 = vld [vmem:[#allocation8] sm:$0xff]
        %v1284 = vld [vmem:[#allocation8 + $0x8] sm:$0xff]
        %v1285 = vld [vmem:[#allocation8 + $0x10] sm:$0xff]
        %v1286 = vld [vmem:[#allocation8 + $0x18] sm:$0xff]
        %v1287 = vld [vmem:[#allocation8 + $0x20] sm:$0xff]
        %v1288 = vld [vmem:[#allocation8 + $0x28] sm:$0xff]
        %v1289 = vld [vmem:[#allocation8 + $0x30] sm:$0xff]
        %v1290 = vld [vmem:[#allocation8 + $0x38] sm:$0xff]
        %v1291 = vld [vmem:[#allocation8 + $0x40] sm:$0xff]
        %v1292 = vld [vmem:[#allocation8 + $0x48] sm:$0xff]
        %v1293 = vld [vmem:[#allocation8 + $0x50] sm:$0xff]
        %v1294 = vld [vmem:[#allocation8 + $0x58] sm:$0xff]
        %v1295 = vld [vmem:[#allocation8 + $0x60] sm:$0xff]
        %v1296 = vld [vmem:[#allocation8 + $0x68] sm:$0xff]
        %v1297 = vld [vmem:[#allocation8 + $0x70] sm:$0xff]
        %v1298 = vld [vmem:[#allocation8 + $0x78] sm:$0xff]
        %v1299 = vld [vmem:[#allocation8 + $0x80] sm:$0xff]
        %v1300 = vld [vmem:[#allocation8 + $0x88] sm:$0xff]
        %v1301 = vld [vmem:[#allocation8 + $0x90] sm:$0xff]
        %v1302 = vld [vmem:[#allocation8 + $0x98] sm:$0xff]
        %v1303 = vld [vmem:[#allocation8 + $0xa0] sm:$0xff]
        %v1304 = vld [vmem:[#allocation8 + $0xa8] sm:$0xff]
        %v1305 = vld [vmem:[#allocation8 + $0xb0] sm:$0xff]
        %v1306 = vld [vmem:[#allocation8 + $0xb8] sm:$0xff]
        %v1307 = vld [vmem:[#allocation8 + $0xc0] sm:$0xff]
        %v1308 = vld [vmem:[#allocation8 + $0xc8] sm:$0xff]
        %v1309 = vld [vmem:[#allocation8 + $0xd0] sm:$0xff]
        %v1310 = vld [vmem:[#allocation8 + $0xd8] sm:$0xff]
        %v1311 = vld [vmem:[#allocation8 + $0xe0] sm:$0xff]
        %v1312 = vld [vmem:[#allocation8 + $0xe8] sm:$0xff]
        %v1313 = vld [vmem:[#allocation8 + $0xf0] sm:$0xff]
        %v1314 = vld [vmem:[#allocation8 + $0xf8] sm:$0xff]
        %v1315 = vld [vmem:[#allocation8 + $0x100] sm:$0xff]
        %v1316 = vld [vmem:[#allocation8 + $0x108] sm:$0xff]
        %v1317 = vld [vmem:[#allocation8 + $0x110] sm:$0xff]
        %v1318 = vld [vmem:[#allocation8 + $0x118] sm:$0xff]
        %v1319 = vld [vmem:[#allocation8 + $0x120] sm:$0xff]
        %v1320 = vld [vmem:[#allocation8 + $0x128] sm:$0xff]
        %v1321 = vld [vmem:[#allocation8 + $0x130] sm:$0xff]
        %v1322 = vld [vmem:[#allocation8 + $0x138] sm:$0xff]
        %v1323 = vld [vmem:[#allocation8 + $0x140] sm:$0xff]
        %v1324 = vld [vmem:[#allocation8 + $0x148] sm:$0xff]
        %v1325 = vld [vmem:[#allocation8 + $0x150] sm:$0xff]
        %v1326 = vld [vmem:[#allocation8 + $0x158] sm:$0xff]
        %v1327 = vld [vmem:[#allocation8 + $0x160] sm:$0xff]
        %v1328 = vld [vmem:[#allocation8 + $0x168] sm:$0xff]
        %v1329 = vld [vmem:[#allocation8 + $0x170] sm:$0xff]
        %v1330 = vld [vmem:[#allocation8 + $0x178] sm:$0xff]
        %v1331 = vld [vmem:[#allocation8 + $0x180] sm:$0xff]
        %v1332 = vld [vmem:[#allocation8 + $0x188] sm:$0xff]
        %v1333 = vld [vmem:[#allocation8 + $0x190] sm:$0xff]
        %v1334 = vld [vmem:[#allocation8 + $0x198] sm:$0xff]
        %v1335 = vld [vmem:[#allocation8 + $0x1a0] sm:$0xff]
        %v1336 = vld [vmem:[#allocation8 + $0x1a8] sm:$0xff]
        %v1337 = vld [vmem:[#allocation8 + $0x1b0] sm:$0xff]
        %v1338 = vld [vmem:[#allocation8 + $0x1b8] sm:$0xff]
        %v1339 = vld [vmem:[#allocation8 + $0x1c0] sm:$0xff]
        %v1340 = vld [vmem:[#allocation8 + $0x1c8] sm:$0xff]
        %v1341 = vld [vmem:[#allocation8 + $0x1d0] sm:$0xff]
        %v1342 = vld [vmem:[#allocation8 + $0x1d8] sm:$0xff]
        %v1343 = vld [vmem:[#allocation8 + $0x1e0] sm:$0xff]
        %v1344 = vld [vmem:[#allocation8 + $0x1e8] sm:$0xff]
        %v1345 = vld [vmem:[#allocation8 + $0x1f0] sm:$0xff]
        %v1346 = vld [vmem:[#allocation8 + $0x1f8] sm:$0xff]
        %v1347 = vld [vmem:[#allocation8 + $0x200] sm:$0xff]
        %v1348 = vld [vmem:[#allocation8 + $0x208] sm:$0xff]
        %v1349 = vld [vmem:[#allocation8 + $0x210] sm:$0xff]
        %v1350 = vld [vmem:[#allocation8 + $0x218] sm:$0xff]
        %v1351 = vld [vmem:[#allocation8 + $0x220] sm:$0xff]
        %v1352 = vld [vmem:[#allocation8 + $0x228] sm:$0xff]
        %v1353 = vld [vmem:[#allocation8 + $0x230] sm:$0xff]
        %v1354 = vld [vmem:[#allocation8 + $0x238] sm:$0xff]
        %v1355 = vmul.f32 %v1111, %v1283
        %v1356 = vmul.f32 %v1107, %v1284
        %v1357 = vmul.f32 %v1112, %v1285
        %v1358 = vmul.f32 %v1108, %v1286
        %v1359 = vmul.f32 %v1113, %v1287
        %v1360 = vmul.f32 %v1109, %v1288
        %v1361 = vmul.f32 %v1114, %v1289
        %v1362 = vmul.f32 %v1110, %v1290
        %v1363 = vmul.f32 %v1135, %v1291
        %v1364 = vmul.f32 %v1131, %v1292
        %v1365 = vmul.f32 %v1136, %v1293
        %v1366 = vmul.f32 %v1132, %v1294
        %v1367 = vmul.f32 %v1137, %v1295
        %v1368 = vmul.f32 %v1133, %v1296
        %v1369 = vmul.f32 %v1138, %v1297
        %v1370 = vmul.f32 %v1134, %v1298
        %v1371 = vmul.f32 %v1159, %v1299
        %v1372 = vmul.f32 %v1155, %v1300
        %v1373 = vmul.f32 %v1160, %v1301
        %v1374 = vmul.f32 %v1156, %v1302
        %v1375 = vmul.f32 %v1161, %v1303
        %v1376 = vmul.f32 %v1157, %v1304
        %v1377 = vmul.f32 %v1162, %v1305
        %v1378 = vmul.f32 %v1158, %v1306
        %v1379 = vmul.f32 %v1183, %v1307
        %v1380 = vmul.f32 %v1179, %v1308
        %v1381 = vmul.f32 %v1184, %v1309
        %v1382 = vmul.f32 %v1180, %v1310
        %v1383 = vmul.f32 %v1185, %v1311
        %v1384 = vmul.f32 %v1181, %v1312
        %v1385 = vmul.f32 %v1186, %v1313
        %v1386 = vmul.f32 %v1182, %v1314
        %v1387 = vmul.f32 %v1083, %v1315
        %v1388 = vmul.f32 %v1084, %v1316
        %v1389 = vmul.f32 %v1085, %v1317
        %v1390 = vmul.f32 %v1086, %v1318
        %v1391 = vmul.f32 %v1087, %v1319
        %v1392 = vmul.f32 %v1088, %v1320
        %v1393 = vmul.f32 %v1089, %v1321
        %v1394 = vmul.f32 %v1090, %v1322
        %v1395 = vmul.f32 %v1203, %v1323
        %v1396 = vmul.f32 %v1207, %v1324
        %v1397 = vmul.f32 %v1204, %v1325
        %v1398 = vmul.f32 %v1208, %v1326
        %v1399 = vmul.f32 %v1205, %v1327
        %v1400 = vmul.f32 %v1209, %v1328
        %v1401 = vmul.f32 %v1206, %v1329
        %v1402 = vmul.f32 %v1210, %v1330
        %v1403 = vmul.f32 %v1227, %v1331
        %v1404 = vmul.f32 %v1231, %v1332
        %v1405 = vmul.f32 %v1228, %v1333
        %v1406 = vmul.f32 %v1232, %v1334
        %v1407 = vmul.f32 %v1229, %v1335
        %v1408 = vmul.f32 %v1233, %v1336
        %v1409 = vmul.f32 %v1230, %v1337
        %v1410 = vmul.f32 %v1234, %v1338
        %v1411 = vmul.f32 %v1251, %v1339
        %v1412 = vmul.f32 %v1255, %v1340
        %v1413 = vmul.f32 %v1252, %v1341
        %v1414 = vmul.f32 %v1256, %v1342
        %v1415 = vmul.f32 %v1253, %v1343
        %v1416 = vmul.f32 %v1257, %v1344
        %v1417 = vmul.f32 %v1254, %v1345
        %v1418 = vmul.f32 %v1258, %v1346
        %v1419 = vmul.f32 %v1275, %v1347
        %v1420 = vmul.f32 %v1279, %v1348
        %v1421 = vmul.f32 %v1276, %v1349
        %v1422 = vmul.f32 %v1280, %v1350
        %v1423 = vmul.f32 %v1277, %v1351
        %v1424 = vmul.f32 %v1281, %v1352
        %v1425 = vmul.f32 %v1278, %v1353
        %v1426 = vmul.f32 %v1282, %v1354
        %v1427 = vld [vmem:[#allocation9] sm:$0xff]
        %v1428 = vld [vmem:[#allocation9 + $0x8] sm:$0xff]
        %v1429 = vld [vmem:[#allocation9 + $0x10] sm:$0xff]
        %v1430 = vld [vmem:[#allocation9 + $0x18] sm:$0xff]
        %v1431 = vld [vmem:[#allocation9 + $0x20] sm:$0xff]
        %v1432 = vld [vmem:[#allocation9 + $0x28] sm:$0xff]
        %v1433 = vld [vmem:[#allocation9 + $0x30] sm:$0xff]
        %v1434 = vld [vmem:[#allocation9 + $0x38] sm:$0xff]
        %v1435 = vld [vmem:[#allocation9 + $0x40] sm:$0xff]
        %v1436 = vld [vmem:[#allocation9 + $0x48] sm:$0xff]
        %v1437 = vld [vmem:[#allocation9 + $0x50] sm:$0xff]
        %v1438 = vld [vmem:[#allocation9 + $0x58] sm:$0xff]
        %v1439 = vld [vmem:[#allocation9 + $0x60] sm:$0xff]
        %v1440 = vld [vmem:[#allocation9 + $0x68] sm:$0xff]
        %v1441 = vld [vmem:[#allocation9 + $0x70] sm:$0xff]
        %v1442 = vld [vmem:[#allocation9 + $0x78] sm:$0xff]
        %v1443 = vld [vmem:[#allocation9 + $0x80] sm:$0xff]
        %v1444 = vld [vmem:[#allocation9 + $0x88] sm:$0xff]
        %v1445 = vld [vmem:[#allocation9 + $0x90] sm:$0xff]
        %v1446 = vld [vmem:[#allocation9 + $0x98] sm:$0xff]
        %v1447 = vld [vmem:[#allocation9 + $0xa0] sm:$0xff]
        %v1448 = vld [vmem:[#allocation9 + $0xa8] sm:$0xff]
        %v1449 = vld [vmem:[#allocation9 + $0xb0] sm:$0xff]
        %v1450 = vld [vmem:[#allocation9 + $0xb8] sm:$0xff]
        %v1451 = vld [vmem:[%s10] sm:$0xff]
        %v1452 = vld [vmem:[%s10 + $0x8] sm:$0xff]
        %v1453 = vld [vmem:[%s10 + $0x10] sm:$0xff]
        %v1454 = vld [vmem:[%s10 + $0x18] sm:$0xff]
        %v1455 = vld [vmem:[%s10 + $0x20] sm:$0xff]
        %v1456 = vld [vmem:[%s10 + $0x28] sm:$0xff]
        %v1457 = vld [vmem:[%s10 + $0x30] sm:$0xff]
        %v1458 = vld [vmem:[%s10 + $0x38] sm:$0xff]
        %1460 = vset.pattern.permute.xlu0 0
        %1461 = vperm.xlu0 %1460, %v1451
        %v1462 = vpop.permute.xlu0 %1461
        %1465 = vset.pattern.permute.xlu0 0
        %1466 = vperm.xlu0 %1465, %v1452
        %v1467 = vpop.permute.xlu0 %1466
        %1470 = vset.pattern.permute.xlu0 0
        %1471 = vperm.xlu0 %1470, %v1453
        %v1472 = vpop.permute.xlu0 %1471
        %1475 = vset.pattern.permute.xlu0 0
        %1476 = vperm.xlu0 %1475, %v1454
        %v1477 = vpop.permute.xlu0 %1476
        %1480 = vset.pattern.permute.xlu0 0
        %1481 = vperm.xlu0 %1480, %v1455
        %v1482 = vpop.permute.xlu0 %1481
        %1485 = vset.pattern.permute.xlu0 0
        %1486 = vperm.xlu0 %1485, %v1456
        %v1487 = vpop.permute.xlu0 %1486
        %1490 = vset.pattern.permute.xlu0 0
        %1491 = vperm.xlu0 %1490, %v1457
        %v1492 = vpop.permute.xlu0 %1491
        %1495 = vset.pattern.permute.xlu0 0
        %1496 = vperm.xlu0 %1495, %v1458
        %v1497 = vpop.permute.xlu0 %1496
        %vm1499 = vcmask 261120
        %v1501 = vsel %vm1499, %v1429, 0
        %v1504 = vsel %vm1499, %v1432, 0
        %v1507 = vsel %vm1499, %v1435, 0
        %v1510 = vsel %vm1499, %v1438, 0
        %v1513 = vsel %vm1499, %v1441, 0
        %v1516 = vsel %vm1499, %v1444, 0
        %v1519 = vsel %vm1499, %v1447, 0
        %v1522 = vsel %vm1499, %v1450, 0
        %1524 = vmatprep.subr.mxu0 %v1386
        %1525 = vmatpush1.msra.mxu0 %v1385
        %1526 = vmatprep.subr.mxu0 %v1384
        %1527 = vmatpush1.msra.mxu0 %v1383
        %1528 = vmatprep.subr.mxu0 %v1382
        %1529 = vmatpush1.msra.mxu0 %v1381
        %1530 = vmatprep.subr.mxu0 %v1380
        %1531 = vmatpush1.msra.mxu0 %v1379
        %1532 = vmatprep.subr.mxu0 %v1378
        %1533 = vmatpush1.msra.mxu0 %v1377
        %1534 = vmatprep.subr.mxu0 %v1376
        %1535 = vmatpush1.msra.mxu0 %v1375
        %1536 = vmatprep.subr.mxu0 %v1374
        %1537 = vmatpush1.msra.mxu0 %v1373
        %1538 = vmatprep.subr.mxu0 %v1372
        %1539 = vmatpush1.msra.mxu0 %v1371
        %1540 = vmatprep.subr.mxu0 %v1370
        %1541 = vmatpush1.msra.mxu0 %v1369
        %1542 = vmatprep.subr.mxu0 %v1368
        %1543 = vmatpush1.msra.mxu0 %v1367
        %1544 = vmatprep.subr.mxu0 %v1366
        %1545 = vmatpush1.msra.mxu0 %v1365
        %1546 = vmatprep.subr.mxu0 %v1364
        %1547 = vmatpush1.msra.mxu0 %v1363
        %1548 = vmatprep.subr.mxu0 %v1362
        %1549 = vmatpush1.msra.mxu0 %v1361
        %1550 = vmatprep.subr.mxu0 %v1360
        %1551 = vmatpush1.msra.mxu0 %v1359
        %1552 = vmatprep.subr.mxu0 %v1358
        %1553 = vmatpush1.msra.mxu0 %v1357
        %1554 = vmatprep.subr.mxu0 %v1356
        %1555 = vmatpush1.msra.mxu0 %v1355
        %1556 = vmatprep.subr.mxu0 %v1418
        %1557 = vmatpush2.msra.mxu0 %v1417
        %1558 = vmatprep.subr.mxu0 %v1416
        %1559 = vmatpush2.msra.mxu0 %v1415
        %1560 = vmatprep.subr.mxu0 %v1414
        %1561 = vmatpush2.msra.mxu0 %v1413
        %1562 = vmatprep.subr.mxu0 %v1412
        %1563 = vmatpush2.msra.mxu0 %v1411
        %1564 = vmatprep.subr.mxu0 %v1410
        %1565 = vmatpush2.msra.mxu0 %v1409
        %1566 = vmatprep.subr.mxu0 %v1408
        %1567 = vmatpush2.msra.mxu0 %v1407
        %1568 = vmatprep.subr.mxu0 %v1406
        %1569 = vmatpush2.msra.mxu0 %v1405
        %1570 = vmatprep.subr.mxu0 %v1404
        %1571 = vmatpush2.msra.mxu0 %v1403
        %1572 = vmatprep.subr.mxu0 %v1402
        %1573 = vmatpush2.msra.mxu0 %v1401
        %1574 = vmatprep.subr.mxu0 %v1400
        %1575 = vmatpush2.msra.mxu0 %v1399
        %1576 = vmatprep.subr.mxu0 %v1398
        %1577 = vmatpush2.msra.mxu0 %v1397
        %1578 = vmatprep.subr.mxu0 %v1396
        %1579 = vmatpush2.msra.mxu0 %v1395
        %1580 = vmatprep.subr.mxu0 %v1394
        %1581 = vmatpush2.msra.mxu0 %v1393
        %1582 = vmatprep.subr.mxu0 %v1392
        %1583 = vmatpush2.msra.mxu0 %v1391
        %1584 = vmatprep.subr.mxu0 %v1390
        %1585 = vmatpush2.msra.mxu0 %v1389
        %1586 = vmatprep.subr.mxu0 %v1388
        %1587 = vmatpush2.msra.mxu0 %v1387
        %1588 = vmatprep.mubr.f32.mxu0 %v1428
        %1589 = vmatmul.mubr.f32.gmra.mxu0 %v1427
        %v1590 = vpop.f32.mrf.mxu0
        %v1591 = vadd.f32 %v1462, %v1590
        %v1592 = vpop.f32.mrf.mxu0
        %v1593 = vadd.f32 %v1462, %v1592
        %1594 = vmatprep.mubr.f32.mxu0 %v1431
        %1595 = vmatmul.mubr.f32.gmra.mxu0 %v1430
        %v1596 = vpop.f32.mrf.mxu0
        %v1597 = vadd.f32 %v1467, %v1596
        %v1598 = vpop.f32.mrf.mxu0
        %v1599 = vadd.f32 %v1467, %v1598
        %1600 = vmatprep.mubr.f32.mxu0 %v1434
        %1601 = vmatmul.mubr.f32.gmra.mxu0 %v1433
        %v1602 = vpop.f32.mrf.mxu0
        %v1603 = vadd.f32 %v1472, %v1602
        %v1604 = vpop.f32.mrf.mxu0
        %v1605 = vadd.f32 %v1472, %v1604
        %1606 = vmatprep.mubr.f32.mxu0 %v1437
        %1607 = vmatmul.mubr.f32.gmra.mxu0 %v1436
        %v1608 = vpop.f32.mrf.mxu0
        %v1609 = vadd.f32 %v1477, %v1608
        %v1610 = vpop.f32.mrf.mxu0
        %v1611 = vadd.f32 %v1477, %v1610
        %1612 = vmatprep.mubr.f32.mxu0 %v1440
        %1613 = vmatmul.mubr.f32.gmra.mxu0 %v1439
        %v1614 = vpop.f32.mrf.mxu0
        %v1615 = vadd.f32 %v1482, %v1614
        %v1616 = vpop.f32.mrf.mxu0
        %v1617 = vadd.f32 %v1482, %v1616
        %1618 = vmatprep.mubr.f32.mxu0 %v1443
        %1619 = vmatmul.mubr.f32.gmra.mxu0 %v1442
        %v1620 = vpop.f32.mrf.mxu0
        %v1621 = vadd.f32 %v1487, %v1620
        %v1622 = vpop.f32.mrf.mxu0
        %v1623 = vadd.f32 %v1487, %v1622
        %1624 = vmatprep.mubr.f32.mxu0 %v1446
        %1625 = vmatmul.mubr.f32.gmra.mxu0 %v1445
        %v1626 = vpop.f32.mrf.mxu0
        %v1627 = vadd.f32 %v1492, %v1626
        %v1628 = vpop.f32.mrf.mxu0
        %v1629 = vadd.f32 %v1492, %v1628
        %1630 = vmatprep.mubr.f32.mxu0 %v1449
        %1631 = vmatmul.mubr.f32.gmra.mxu0 %v1448
        %v1632 = vpop.f32.mrf.mxu0
        %v1633 = vadd.f32 %v1497, %v1632
        %v1634 = vpop.f32.mrf.mxu0
        %v1635 = vadd.f32 %v1497, %v1634
        %1636 = vdwg.mxu0
        %1637 = vmatprep.subr.mxu0 0.0
        %1638 = vmatpush1.msra.mxu0 0.0
        %1639 = vmatprep.subr.mxu0 0.0
        %1640 = vmatpush1.msra.mxu0 0.0
        %1641 = vmatprep.subr.mxu0 0.0
        %1642 = vmatpush1.msra.mxu0 0.0
        %1643 = vmatprep.subr.mxu0 0.0
        %1644 = vmatpush1.msra.mxu0 0.0
        %1645 = vmatprep.subr.mxu0 0.0
        %1646 = vmatpush1.msra.mxu0 0.0
        %1647 = vmatprep.subr.mxu0 0.0
        %1648 = vmatpush1.msra.mxu0 0.0
        %1649 = vmatprep.subr.mxu0 0.0
        %1650 = vmatpush1.msra.mxu0 0.0
        %1651 = vmatprep.subr.mxu0 0.0
        %1652 = vmatpush1.msra.mxu0 0.0
        %1653 = vmatprep.subr.mxu0 0.0
        %1654 = vmatpush1.msra.mxu0 0.0
        %1655 = vmatprep.subr.mxu0 0.0
        %1656 = vmatpush1.msra.mxu0 0.0
        %1657 = vmatprep.subr.mxu0 0.0
        %1658 = vmatpush1.msra.mxu0 0.0
        %1659 = vmatprep.subr.mxu0 0.0
        %1660 = vmatpush1.msra.mxu0 0.0
        %1661 = vmatprep.subr.mxu0 %v1426
        %1662 = vmatpush1.msra.mxu0 %v1425
        %1663 = vmatprep.subr.mxu0 %v1424
        %1664 = vmatpush1.msra.mxu0 %v1423
        %1665 = vmatprep.subr.mxu0 %v1422
        %1666 = vmatpush1.msra.mxu0 %v1421
        %1667 = vmatprep.subr.mxu0 %v1420
        %1668 = vmatpush1.msra.mxu0 %v1419
        %1669 = vmatprep.subr.mxu0 0.0
        %1670 = vmatpush2.msra.mxu0 0.0
        %1671 = vmatprep.subr.mxu0 0.0
        %1672 = vmatpush2.msra.mxu0 0.0
        %1673 = vmatprep.subr.mxu0 0.0
        %1674 = vmatpush2.msra.mxu0 0.0
        %1675 = vmatprep.subr.mxu0 0.0
        %1676 = vmatpush2.msra.mxu0 0.0
        %1677 = vmatprep.subr.mxu0 0.0
        %1678 = vmatpush2.msra.mxu0 0.0
        %1679 = vmatprep.subr.mxu0 0.0
        %1680 = vmatpush2.msra.mxu0 0.0
        %1681 = vmatprep.subr.mxu0 0.0
        %1682 = vmatpush2.msra.mxu0 0.0
        %1683 = vmatprep.subr.mxu0 0.0
        %1684 = vmatpush2.msra.mxu0 0.0
        %1685 = vmatprep.subr.mxu0 0.0
        %1686 = vmatpush2.msra.mxu0 0.0
        %1687 = vmatprep.subr.mxu0 0.0
        %1688 = vmatpush2.msra.mxu0 0.0
        %1689 = vmatprep.subr.mxu0 0.0
        %1690 = vmatpush2.msra.mxu0 0.0
        %1691 = vmatprep.subr.mxu0 0.0
        %1692 = vmatpush2.msra.mxu0 0.0
        %1693 = vmatprep.subr.mxu0 0.0
        %1694 = vmatpush2.msra.mxu0 0.0
        %1695 = vmatprep.subr.mxu0 0.0
        %1696 = vmatpush2.msra.mxu0 0.0
        %1697 = vmatprep.subr.mxu0 0.0
        %1698 = vmatpush2.msra.mxu0 0.0
        %1699 = vmatprep.subr.mxu0 0.0
        %1700 = vmatpush2.msra.mxu0 0.0
        %1701 = vmatprep.mubr.f32.mxu0 0.0
        %1702 = vmatmul.mubr.f32.gmra.mxu0 %v1501
        %v1703 = vpop.f32.mrf.mxu0
        %v1704 = vadd.f32 %v1591, %v1703
        %v1705 = vpop.f32.mrf.mxu0
        %v1706 = vadd.f32 %v1593, %v1705
        %1707 = vmatprep.mubr.f32.mxu0 0.0
        %1708 = vmatmul.mubr.f32.gmra.mxu0 %v1504
        %v1709 = vpop.f32.mrf.mxu0
        %v1710 = vadd.f32 %v1597, %v1709
        %v1711 = vpop.f32.mrf.mxu0
        %v1712 = vadd.f32 %v1599, %v1711
        %1713 = vmatprep.mubr.f32.mxu0 0.0
        %1714 = vmatmul.mubr.f32.gmra.mxu0 %v1507
        %v1715 = vpop.f32.mrf.mxu0
        %v1716 = vadd.f32 %v1603, %v1715
        %v1717 = vpop.f32.mrf.mxu0
        %v1718 = vadd.f32 %v1605, %v1717
        %1719 = vmatprep.mubr.f32.mxu0 0.0
        %1720 = vmatmul.mubr.f32.gmra.mxu0 %v1510
        %v1721 = vpop.f32.mrf.mxu0
        %v1722 = vadd.f32 %v1609, %v1721
        %v1723 = vpop.f32.mrf.mxu0
        %v1724 = vadd.f32 %v1611, %v1723
        %1725 = vmatprep.mubr.f32.mxu0 0.0
        %1726 = vmatmul.mubr.f32.gmra.mxu0 %v1513
        %v1727 = vpop.f32.mrf.mxu0
        %v1728 = vadd.f32 %v1615, %v1727
        %v1729 = vpop.f32.mrf.mxu0
        %v1730 = vadd.f32 %v1617, %v1729
        %1731 = vmatprep.mubr.f32.mxu0 0.0
        %1732 = vmatmul.mubr.f32.gmra.mxu0 %v1516
        %v1733 = vpop.f32.mrf.mxu0
        %v1734 = vadd.f32 %v1621, %v1733
        %v1735 = vpop.f32.mrf.mxu0
        %v1736 = vadd.f32 %v1623, %v1735
        %1737 = vmatprep.mubr.f32.mxu0 0.0
        %1738 = vmatmul.mubr.f32.gmra.mxu0 %v1519
        %v1739 = vpop.f32.mrf.mxu0
        %v1740 = vadd.f32 %v1627, %v1739
        %v1741 = vpop.f32.mrf.mxu0
        %v1742 = vadd.f32 %v1629, %v1741
        %1743 = vmatprep.mubr.f32.mxu0 0.0
        %1744 = vmatmul.mubr.f32.gmra.mxu0 %v1522
        %v1745 = vpop.f32.mrf.mxu0
        %v1746 = vadd.f32 %v1633, %v1745
        %v1747 = vpop.f32.mrf.mxu0
        %v1748 = vadd.f32 %v1635, %v1747
        %1749 = vdwg.mxu0
        %v1750 = vmax.f32 %v1704, 0.0
        %v1751 = vmax.f32 %v1706, 0.0
        %v1752 = vmax.f32 %v1710, 0.0
        %v1753 = vmax.f32 %v1712, 0.0
        %v1754 = vmax.f32 %v1716, 0.0
        %v1755 = vmax.f32 %v1718, 0.0
        %v1756 = vmax.f32 %v1722, 0.0
        %v1757 = vmax.f32 %v1724, 0.0
        %v1758 = vmax.f32 %v1728, 0.0
        %v1759 = vmax.f32 %v1730, 0.0
        %v1760 = vmax.f32 %v1734, 0.0
        %v1761 = vmax.f32 %v1736, 0.0
        %v1762 = vmax.f32 %v1740, 0.0
        %v1763 = vmax.f32 %v1742, 0.0
        %v1764 = vmax.f32 %v1746, 0.0
        %v1765 = vmax.f32 %v1748, 0.0
        %1766 = vrot.lane.b32.xlu0 %v1750, 17
        %v1767 = vpop.permute.xlu0 %1766
        %1768 = vrot.lane.b32.xlu0 %v1752, 17
        %v1769 = vpop.permute.xlu0 %1768
        %1770 = vrot.lane.b32.xlu0 %v1754, 17
        %v1771 = vpop.permute.xlu0 %1770
        %1772 = vrot.lane.b32.xlu0 %v1756, 17
        %v1773 = vpop.permute.xlu0 %1772
        %1774 = vrot.lane.b32.xlu0 %v1758, 17
        %v1775 = vpop.permute.xlu0 %1774
        %1776 = vrot.lane.b32.xlu0 %v1760, 17
        %v1777 = vpop.permute.xlu0 %1776
        %1778 = vrot.lane.b32.xlu0 %v1762, 17
        %v1779 = vpop.permute.xlu0 %1778
        %1780 = vrot.lane.b32.xlu0 %v1764, 17
        %v1781 = vpop.permute.xlu0 %1780
        %1782 = vrot.lane.b32.xlu0 %v1751, 17
        %v1783 = vpop.permute.xlu0 %1782
        %1784 = vrot.lane.b32.xlu0 %v1753, 17
        %v1785 = vpop.permute.xlu0 %1784
        %1786 = vrot.lane.b32.xlu0 %v1755, 17
        %v1787 = vpop.permute.xlu0 %1786
        %1788 = vrot.lane.b32.xlu0 %v1757, 17
        %v1789 = vpop.permute.xlu0 %1788
        %1790 = vrot.lane.b32.xlu0 %v1759, 17
        %v1791 = vpop.permute.xlu0 %1790
        %1792 = vrot.lane.b32.xlu0 %v1761, 17
        %v1793 = vpop.permute.xlu0 %1792
        %1794 = vrot.lane.b32.xlu0 %v1763, 17
        %v1795 = vpop.permute.xlu0 %1794
        %1796 = vrot.lane.b32.xlu0 %v1765, 17
        %v1797 = vpop.permute.xlu0 %1796
        %v1798 = vsel %vm556, %v1767, %v1783
        %v1799 = vsel %vm556, %v1769, %v1785
        %v1800 = vsel %vm556, %v1771, %v1787
        %v1801 = vsel %vm556, %v1773, %v1789
        %v1802 = vsel %vm556, %v1775, %v1791
        %v1803 = vsel %vm556, %v1777, %v1793
        %v1804 = vsel %vm556, %v1779, %v1795
        %v1805 = vsel %vm556, %v1781, %v1797
        %v1806 = vsel %vm556, %v1783, %v1767
        %v1807 = vsel %vm556, %v1785, %v1769
        %v1808 = vsel %vm556, %v1787, %v1771
        %v1809 = vsel %vm556, %v1789, %v1773
        %v1810 = vsel %vm556, %v1791, %v1775
        %v1811 = vsel %vm556, %v1793, %v1777
        %v1812 = vsel %vm556, %v1795, %v1779
        %v1813 = vsel %vm556, %v1797, %v1781
        %1814 = vrot.lane.b32.xlu0 %v1750, 16
        %v1815 = vpop.permute.xlu0 %1814
        %1816 = vrot.lane.b32.xlu0 %v1752, 16
        %v1817 = vpop.permute.xlu0 %1816
        %1818 = vrot.lane.b32.xlu0 %v1754, 16
        %v1819 = vpop.permute.xlu0 %1818
        %1820 = vrot.lane.b32.xlu0 %v1756, 16
        %v1821 = vpop.permute.xlu0 %1820
        %1822 = vrot.lane.b32.xlu0 %v1758, 16
        %v1823 = vpop.permute.xlu0 %1822
        %1824 = vrot.lane.b32.xlu0 %v1760, 16
        %v1825 = vpop.permute.xlu0 %1824
        %1826 = vrot.lane.b32.xlu0 %v1762, 16
        %v1827 = vpop.permute.xlu0 %1826
        %1828 = vrot.lane.b32.xlu0 %v1764, 16
        %v1829 = vpop.permute.xlu0 %1828
        %1830 = vrot.lane.b32.xlu0 %v1751, 16
        %v1831 = vpop.permute.xlu0 %1830
        %1832 = vrot.lane.b32.xlu0 %v1753, 16
        %v1833 = vpop.permute.xlu0 %1832
        %1834 = vrot.lane.b32.xlu0 %v1755, 16
        %v1835 = vpop.permute.xlu0 %1834
        %1836 = vrot.lane.b32.xlu0 %v1757, 16
        %v1837 = vpop.permute.xlu0 %1836
        %1838 = vrot.lane.b32.xlu0 %v1759, 16
        %v1839 = vpop.permute.xlu0 %1838
        %1840 = vrot.lane.b32.xlu0 %v1761, 16
        %v1841 = vpop.permute.xlu0 %1840
        %1842 = vrot.lane.b32.xlu0 %v1763, 16
        %v1843 = vpop.permute.xlu0 %1842
        %1844 = vrot.lane.b32.xlu0 %v1765, 16
        %v1845 = vpop.permute.xlu0 %1844
        %v1846 = vsel %vm563, %v1815, %v1831
        %v1847 = vsel %vm563, %v1817, %v1833
        %v1848 = vsel %vm563, %v1819, %v1835
        %v1849 = vsel %vm563, %v1821, %v1837
        %v1850 = vsel %vm563, %v1823, %v1839
        %v1851 = vsel %vm563, %v1825, %v1841
        %v1852 = vsel %vm563, %v1827, %v1843
        %v1853 = vsel %vm563, %v1829, %v1845
        %v1854 = vsel %vm563, %v1831, %v1815
        %v1855 = vsel %vm563, %v1833, %v1817
        %v1856 = vsel %vm563, %v1835, %v1819
        %v1857 = vsel %vm563, %v1837, %v1821
        %v1858 = vsel %vm563, %v1839, %v1823
        %v1859 = vsel %vm563, %v1841, %v1825
        %v1860 = vsel %vm563, %v1843, %v1827
        %v1861 = vsel %vm563, %v1845, %v1829
        %1862 = vrot.lane.b32.xlu0 %v1750, 15
        %v1863 = vpop.permute.xlu0 %1862
        %1864 = vrot.lane.b32.xlu0 %v1752, 15
        %v1865 = vpop.permute.xlu0 %1864
        %1866 = vrot.lane.b32.xlu0 %v1754, 15
        %v1867 = vpop.permute.xlu0 %1866
        %1868 = vrot.lane.b32.xlu0 %v1756, 15
        %v1869 = vpop.permute.xlu0 %1868
        %1870 = vrot.lane.b32.xlu0 %v1758, 15
        %v1871 = vpop.permute.xlu0 %1870
        %1872 = vrot.lane.b32.xlu0 %v1760, 15
        %v1873 = vpop.permute.xlu0 %1872
        %1874 = vrot.lane.b32.xlu0 %v1762, 15
        %v1875 = vpop.permute.xlu0 %1874
        %1876 = vrot.lane.b32.xlu0 %v1764, 15
        %v1877 = vpop.permute.xlu0 %1876
        %1878 = vrot.lane.b32.xlu0 %v1751, 15
        %v1879 = vpop.permute.xlu0 %1878
        %1880 = vrot.lane.b32.xlu0 %v1753, 15
        %v1881 = vpop.permute.xlu0 %1880
        %1882 = vrot.lane.b32.xlu0 %v1755, 15
        %v1883 = vpop.permute.xlu0 %1882
        %1884 = vrot.lane.b32.xlu0 %v1757, 15
        %v1885 = vpop.permute.xlu0 %1884
        %1886 = vrot.lane.b32.xlu0 %v1759, 15
        %v1887 = vpop.permute.xlu0 %1886
        %1888 = vrot.lane.b32.xlu0 %v1761, 15
        %v1889 = vpop.permute.xlu0 %1888
        %1890 = vrot.lane.b32.xlu0 %v1763, 15
        %v1891 = vpop.permute.xlu0 %1890
        %1892 = vrot.lane.b32.xlu0 %v1765, 15
        %v1893 = vpop.permute.xlu0 %1892
        %v1894 = vsel %vm570, %v1863, %v1879
        %v1895 = vsel %vm570, %v1865, %v1881
        %v1896 = vsel %vm570, %v1867, %v1883
        %v1897 = vsel %vm570, %v1869, %v1885
        %v1898 = vsel %vm570, %v1871, %v1887
        %v1899 = vsel %vm570, %v1873, %v1889
        %v1900 = vsel %vm570, %v1875, %v1891
        %v1901 = vsel %vm570, %v1877, %v1893
        %v1902 = vsel %vm570, %v1879, %v1863
        %v1903 = vsel %vm570, %v1881, %v1865
        %v1904 = vsel %vm570, %v1883, %v1867
        %v1905 = vsel %vm570, %v1885, %v1869
        %v1906 = vsel %vm570, %v1887, %v1871
        %v1907 = vsel %vm570, %v1889, %v1873
        %v1908 = vsel %vm570, %v1891, %v1875
        %v1909 = vsel %vm570, %v1893, %v1877
        %1910 = vrot.lane.b32.xlu0 %v1750, 1
        %v1911 = vpop.permute.xlu0 %1910
        %1912 = vrot.lane.b32.xlu0 %v1752, 1
        %v1913 = vpop.permute.xlu0 %1912
        %1914 = vrot.lane.b32.xlu0 %v1754, 1
        %v1915 = vpop.permute.xlu0 %1914
        %1916 = vrot.lane.b32.xlu0 %v1756, 1
        %v1917 = vpop.permute.xlu0 %1916
        %1918 = vrot.lane.b32.xlu0 %v1758, 1
        %v1919 = vpop.permute.xlu0 %1918
        %1920 = vrot.lane.b32.xlu0 %v1760, 1
        %v1921 = vpop.permute.xlu0 %1920
        %1922 = vrot.lane.b32.xlu0 %v1762, 1
        %v1923 = vpop.permute.xlu0 %1922
        %1924 = vrot.lane.b32.xlu0 %v1764, 1
        %v1925 = vpop.permute.xlu0 %1924
        %1926 = vrot.lane.b32.xlu0 %v1751, 1
        %v1927 = vpop.permute.xlu0 %1926
        %1928 = vrot.lane.b32.xlu0 %v1753, 1
        %v1929 = vpop.permute.xlu0 %1928
        %1930 = vrot.lane.b32.xlu0 %v1755, 1
        %v1931 = vpop.permute.xlu0 %1930
        %1932 = vrot.lane.b32.xlu0 %v1757, 1
        %v1933 = vpop.permute.xlu0 %1932
        %1934 = vrot.lane.b32.xlu0 %v1759, 1
        %v1935 = vpop.permute.xlu0 %1934
        %1936 = vrot.lane.b32.xlu0 %v1761, 1
        %v1937 = vpop.permute.xlu0 %1936
        %1938 = vrot.lane.b32.xlu0 %v1763, 1
        %v1939 = vpop.permute.xlu0 %1938
        %1940 = vrot.lane.b32.xlu0 %v1765, 1
        %v1941 = vpop.permute.xlu0 %1940
        %v1942 = vsel %vm577, %v1911, %v1927
        %v1943 = vsel %vm577, %v1913, %v1929
        %v1944 = vsel %vm577, %v1915, %v1931
        %v1945 = vsel %vm577, %v1917, %v1933
        %v1946 = vsel %vm577, %v1919, %v1935
        %v1947 = vsel %vm577, %v1921, %v1937
        %v1948 = vsel %vm577, %v1923, %v1939
        %v1949 = vsel %vm577, %v1925, %v1941
        %v1950 = vsel %vm577, %v1927, %v1911
        %v1951 = vsel %vm577, %v1929, %v1913
        %v1952 = vsel %vm577, %v1931, %v1915
        %v1953 = vsel %vm577, %v1933, %v1917
        %v1954 = vsel %vm577, %v1935, %v1919
        %v1955 = vsel %vm577, %v1937, %v1921
        %v1956 = vsel %vm577, %v1939, %v1923
        %v1957 = vsel %vm577, %v1941, %v1925
        %1958 = vrot.lane.b32.xlu0 %v1750, 127
        %v1959 = vpop.permute.xlu0 %1958
        %1960 = vrot.lane.b32.xlu0 %v1752, 127
        %v1961 = vpop.permute.xlu0 %1960
        %1962 = vrot.lane.b32.xlu0 %v1754, 127
        %v1963 = vpop.permute.xlu0 %1962
        %1964 = vrot.lane.b32.xlu0 %v1756, 127
        %v1965 = vpop.permute.xlu0 %1964
        %1966 = vrot.lane.b32.xlu0 %v1758, 127
        %v1967 = vpop.permute.xlu0 %1966
        %1968 = vrot.lane.b32.xlu0 %v1760, 127
        %v1969 = vpop.permute.xlu0 %1968
        %1970 = vrot.lane.b32.xlu0 %v1762, 127
        %v1971 = vpop.permute.xlu0 %1970
        %1972 = vrot.lane.b32.xlu0 %v1764, 127
        %v1973 = vpop.permute.xlu0 %1972
        %1974 = vrot.lane.b32.xlu0 %v1751, 127
        %v1975 = vpop.permute.xlu0 %1974
        %1976 = vrot.lane.b32.xlu0 %v1753, 127
        %v1977 = vpop.permute.xlu0 %1976
        %1978 = vrot.lane.b32.xlu0 %v1755, 127
        %v1979 = vpop.permute.xlu0 %1978
        %1980 = vrot.lane.b32.xlu0 %v1757, 127
        %v1981 = vpop.permute.xlu0 %1980
        %1982 = vrot.lane.b32.xlu0 %v1759, 127
        %v1983 = vpop.permute.xlu0 %1982
        %1984 = vrot.lane.b32.xlu0 %v1761, 127
        %v1985 = vpop.permute.xlu0 %1984
        %1986 = vrot.lane.b32.xlu0 %v1763, 127
        %v1987 = vpop.permute.xlu0 %1986
        %1988 = vrot.lane.b32.xlu0 %v1765, 127
        %v1989 = vpop.permute.xlu0 %1988
        %v1990 = vsel %vm584, %v1959, %v1975
        %v1991 = vsel %vm584, %v1961, %v1977
        %v1992 = vsel %vm584, %v1963, %v1979
        %v1993 = vsel %vm584, %v1965, %v1981
        %v1994 = vsel %vm584, %v1967, %v1983
        %v1995 = vsel %vm584, %v1969, %v1985
        %v1996 = vsel %vm584, %v1971, %v1987
        %v1997 = vsel %vm584, %v1973, %v1989
        %v1998 = vsel %vm584, %v1975, %v1959
        %v1999 = vsel %vm584, %v1977, %v1961
        %v2000 = vsel %vm584, %v1979, %v1963
        %v2001 = vsel %vm584, %v1981, %v1965
        %v2002 = vsel %vm584, %v1983, %v1967
        %v2003 = vsel %vm584, %v1985, %v1969
        %v2004 = vsel %vm584, %v1987, %v1971
        %v2005 = vsel %vm584, %v1989, %v1973
        %2006 = vrot.lane.b32.xlu0 %v1750, 113
        %v2007 = vpop.permute.xlu0 %2006
        %2008 = vrot.lane.b32.xlu0 %v1752, 113
        %v2009 = vpop.permute.xlu0 %2008
        %2010 = vrot.lane.b32.xlu0 %v1754, 113
        %v2011 = vpop.permute.xlu0 %2010
        %2012 = vrot.lane.b32.xlu0 %v1756, 113
        %v2013 = vpop.permute.xlu0 %2012
        %2014 = vrot.lane.b32.xlu0 %v1758, 113
        %v2015 = vpop.permute.xlu0 %2014
        %2016 = vrot.lane.b32.xlu0 %v1760, 113
        %v2017 = vpop.permute.xlu0 %2016
        %2018 = vrot.lane.b32.xlu0 %v1762, 113
        %v2019 = vpop.permute.xlu0 %2018
        %2020 = vrot.lane.b32.xlu0 %v1764, 113
        %v2021 = vpop.permute.xlu0 %2020
        %2022 = vrot.lane.b32.xlu0 %v1751, 113
        %v2023 = vpop.permute.xlu0 %2022
        %2024 = vrot.lane.b32.xlu0 %v1753, 113
        %v2025 = vpop.permute.xlu0 %2024
        %2026 = vrot.lane.b32.xlu0 %v1755, 113
        %v2027 = vpop.permute.xlu0 %2026
        %2028 = vrot.lane.b32.xlu0 %v1757, 113
        %v2029 = vpop.permute.xlu0 %2028
        %2030 = vrot.lane.b32.xlu0 %v1759, 113
        %v2031 = vpop.permute.xlu0 %2030
        %2032 = vrot.lane.b32.xlu0 %v1761, 113
        %v2033 = vpop.permute.xlu0 %2032
        %2034 = vrot.lane.b32.xlu0 %v1763, 113
        %v2035 = vpop.permute.xlu0 %2034
        %2036 = vrot.lane.b32.xlu0 %v1765, 113
        %v2037 = vpop.permute.xlu0 %2036
        %v2038 = vsel %vm591, %v2007, %v2023
        %v2039 = vsel %vm591, %v2009, %v2025
        %v2040 = vsel %vm591, %v2011, %v2027
        %v2041 = vsel %vm591, %v2013, %v2029
        %v2042 = vsel %vm591, %v2015, %v2031
        %v2043 = vsel %vm591, %v2017, %v2033
        %v2044 = vsel %vm591, %v2019, %v2035
        %v2045 = vsel %vm591, %v2021, %v2037
        %v2046 = vsel %vm591, %v2023, %v2007
        %v2047 = vsel %vm591, %v2025, %v2009
        %v2048 = vsel %vm591, %v2027, %v2011
        %v2049 = vsel %vm591, %v2029, %v2013
        %v2050 = vsel %vm591, %v2031, %v2015
        %v2051 = vsel %vm591, %v2033, %v2017
        %v2052 = vsel %vm591, %v2035, %v2019
        %v2053 = vsel %vm591, %v2037, %v2021
        %2054 = vrot.lane.b32.xlu0 %v1750, 112
        %v2055 = vpop.permute.xlu0 %2054
        %2056 = vrot.lane.b32.xlu0 %v1752, 112
        %v2057 = vpop.permute.xlu0 %2056
        %2058 = vrot.lane.b32.xlu0 %v1754, 112
        %v2059 = vpop.permute.xlu0 %2058
        %2060 = vrot.lane.b32.xlu0 %v1756, 112
        %v2061 = vpop.permute.xlu0 %2060
        %2062 = vrot.lane.b32.xlu0 %v1758, 112
        %v2063 = vpop.permute.xlu0 %2062
        %2064 = vrot.lane.b32.xlu0 %v1760, 112
        %v2065 = vpop.permute.xlu0 %2064
        %2066 = vrot.lane.b32.xlu0 %v1762, 112
        %v2067 = vpop.permute.xlu0 %2066
        %2068 = vrot.lane.b32.xlu0 %v1764, 112
        %v2069 = vpop.permute.xlu0 %2068
        %2070 = vrot.lane.b32.xlu0 %v1751, 112
        %v2071 = vpop.permute.xlu0 %2070
        %2072 = vrot.lane.b32.xlu0 %v1753, 112
        %v2073 = vpop.permute.xlu0 %2072
        %2074 = vrot.lane.b32.xlu0 %v1755, 112
        %v2075 = vpop.permute.xlu0 %2074
        %2076 = vrot.lane.b32.xlu0 %v1757, 112
        %v2077 = vpop.permute.xlu0 %2076
        %2078 = vrot.lane.b32.xlu0 %v1759, 112
        %v2079 = vpop.permute.xlu0 %2078
        %2080 = vrot.lane.b32.xlu0 %v1761, 112
        %v2081 = vpop.permute.xlu0 %2080
        %2082 = vrot.lane.b32.xlu0 %v1763, 112
        %v2083 = vpop.permute.xlu0 %2082
        %2084 = vrot.lane.b32.xlu0 %v1765, 112
        %v2085 = vpop.permute.xlu0 %2084
        %v2086 = vsel %vm598, %v2055, %v2071
        %v2087 = vsel %vm598, %v2057, %v2073
        %v2088 = vsel %vm598, %v2059, %v2075
        %v2089 = vsel %vm598, %v2061, %v2077
        %v2090 = vsel %vm598, %v2063, %v2079
        %v2091 = vsel %vm598, %v2065, %v2081
        %v2092 = vsel %vm598, %v2067, %v2083
        %v2093 = vsel %vm598, %v2069, %v2085
        %v2094 = vsel %vm598, %v2071, %v2055
        %v2095 = vsel %vm598, %v2073, %v2057
        %v2096 = vsel %vm598, %v2075, %v2059
        %v2097 = vsel %vm598, %v2077, %v2061
        %v2098 = vsel %vm598, %v2079, %v2063
        %v2099 = vsel %vm598, %v2081, %v2065
        %v2100 = vsel %vm598, %v2083, %v2067
        %v2101 = vsel %vm598, %v2085, %v2069
        %2102 = vrot.lane.b32.xlu0 %v1750, 111
        %v2103 = vpop.permute.xlu0 %2102
        %2104 = vrot.lane.b32.xlu0 %v1752, 111
        %v2105 = vpop.permute.xlu0 %2104
        %2106 = vrot.lane.b32.xlu0 %v1754, 111
        %v2107 = vpop.permute.xlu0 %2106
        %2108 = vrot.lane.b32.xlu0 %v1756, 111
        %v2109 = vpop.permute.xlu0 %2108
        %2110 = vrot.lane.b32.xlu0 %v1758, 111
        %v2111 = vpop.permute.xlu0 %2110
        %2112 = vrot.lane.b32.xlu0 %v1760, 111
        %v2113 = vpop.permute.xlu0 %2112
        %2114 = vrot.lane.b32.xlu0 %v1762, 111
        %v2115 = vpop.permute.xlu0 %2114
        %2116 = vrot.lane.b32.xlu0 %v1764, 111
        %v2117 = vpop.permute.xlu0 %2116
        %2118 = vrot.lane.b32.xlu0 %v1751, 111
        %v2119 = vpop.permute.xlu0 %2118
        %2120 = vrot.lane.b32.xlu0 %v1753, 111
        %v2121 = vpop.permute.xlu0 %2120
        %2122 = vrot.lane.b32.xlu0 %v1755, 111
        %v2123 = vpop.permute.xlu0 %2122
        %2124 = vrot.lane.b32.xlu0 %v1757, 111
        %v2125 = vpop.permute.xlu0 %2124
        %2126 = vrot.lane.b32.xlu0 %v1759, 111
        %v2127 = vpop.permute.xlu0 %2126
        %2128 = vrot.lane.b32.xlu0 %v1761, 111
        %v2129 = vpop.permute.xlu0 %2128
        %2130 = vrot.lane.b32.xlu0 %v1763, 111
        %v2131 = vpop.permute.xlu0 %2130
        %2132 = vrot.lane.b32.xlu0 %v1765, 111
        %v2133 = vpop.permute.xlu0 %2132
        %v2134 = vsel %vm605, %v2103, %v2119
        %v2135 = vsel %vm605, %v2105, %v2121
        %v2136 = vsel %vm605, %v2107, %v2123
        %v2137 = vsel %vm605, %v2109, %v2125
        %v2138 = vsel %vm605, %v2111, %v2127
        %v2139 = vsel %vm605, %v2113, %v2129
        %v2140 = vsel %vm605, %v2115, %v2131
        %v2141 = vsel %vm605, %v2117, %v2133
        %v2142 = vsel %vm605, %v2119, %v2103
        %v2143 = vsel %vm605, %v2121, %v2105
        %v2144 = vsel %vm605, %v2123, %v2107
        %v2145 = vsel %vm605, %v2125, %v2109
        %v2146 = vsel %vm605, %v2127, %v2111
        %v2147 = vsel %vm605, %v2129, %v2113
        %v2148 = vsel %vm605, %v2131, %v2115
        %v2149 = vsel %vm605, %v2133, %v2117
        %v2150 = vld [vmem:[#allocation11] sm:$0xff]
        %v2151 = vld [vmem:[#allocation11 + $0x8] sm:$0xff]
        %v2152 = vld [vmem:[#allocation11 + $0x10] sm:$0xff]
        %v2153 = vld [vmem:[#allocation11 + $0x18] sm:$0xff]
        %v2154 = vld [vmem:[#allocation11 + $0x20] sm:$0xff]
        %v2155 = vld [vmem:[#allocation11 + $0x28] sm:$0xff]
        %v2156 = vld [vmem:[#allocation11 + $0x30] sm:$0xff]
        %v2157 = vld [vmem:[#allocation11 + $0x38] sm:$0xff]
        %v2158 = vld [vmem:[#allocation11 + $0x40] sm:$0xff]
        %v2159 = vld [vmem:[#allocation11 + $0x48] sm:$0xff]
        %v2160 = vld [vmem:[#allocation11 + $0x50] sm:$0xff]
        %v2161 = vld [vmem:[#allocation11 + $0x58] sm:$0xff]
        %v2162 = vld [vmem:[#allocation11 + $0x60] sm:$0xff]
        %v2163 = vld [vmem:[#allocation11 + $0x68] sm:$0xff]
        %v2164 = vld [vmem:[#allocation11 + $0x70] sm:$0xff]
        %v2165 = vld [vmem:[#allocation11 + $0x78] sm:$0xff]
        %v2166 = vld [vmem:[#allocation11 + $0x80] sm:$0xff]
        %v2167 = vld [vmem:[#allocation11 + $0x88] sm:$0xff]
        %v2168 = vld [vmem:[#allocation11 + $0x90] sm:$0xff]
        %v2169 = vld [vmem:[#allocation11 + $0x98] sm:$0xff]
        %v2170 = vld [vmem:[#allocation11 + $0xa0] sm:$0xff]
        %v2171 = vld [vmem:[#allocation11 + $0xa8] sm:$0xff]
        %v2172 = vld [vmem:[#allocation11 + $0xb0] sm:$0xff]
        %v2173 = vld [vmem:[#allocation11 + $0xb8] sm:$0xff]
        %v2174 = vld [vmem:[#allocation11 + $0xc0] sm:$0xff]
        %v2175 = vld [vmem:[#allocation11 + $0xc8] sm:$0xff]
        %v2176 = vld [vmem:[#allocation11 + $0xd0] sm:$0xff]
        %v2177 = vld [vmem:[#allocation11 + $0xd8] sm:$0xff]
        %v2178 = vld [vmem:[#allocation11 + $0xe0] sm:$0xff]
        %v2179 = vld [vmem:[#allocation11 + $0xe8] sm:$0xff]
        %v2180 = vld [vmem:[#allocation11 + $0xf0] sm:$0xff]
        %v2181 = vld [vmem:[#allocation11 + $0xf8] sm:$0xff]
        %v2182 = vld [vmem:[#allocation11 + $0x100] sm:$0xff]
        %v2183 = vld [vmem:[#allocation11 + $0x108] sm:$0xff]
        %v2184 = vld [vmem:[#allocation11 + $0x110] sm:$0xff]
        %v2185 = vld [vmem:[#allocation11 + $0x118] sm:$0xff]
        %v2186 = vld [vmem:[#allocation11 + $0x120] sm:$0xff]
        %v2187 = vld [vmem:[#allocation11 + $0x128] sm:$0xff]
        %v2188 = vld [vmem:[#allocation11 + $0x130] sm:$0xff]
        %v2189 = vld [vmem:[#allocation11 + $0x138] sm:$0xff]
        %v2190 = vld [vmem:[#allocation11 + $0x140] sm:$0xff]
        %v2191 = vld [vmem:[#allocation11 + $0x148] sm:$0xff]
        %v2192 = vld [vmem:[#allocation11 + $0x150] sm:$0xff]
        %v2193 = vld [vmem:[#allocation11 + $0x158] sm:$0xff]
        %v2194 = vld [vmem:[#allocation11 + $0x160] sm:$0xff]
        %v2195 = vld [vmem:[#allocation11 + $0x168] sm:$0xff]
        %v2196 = vld [vmem:[#allocation11 + $0x170] sm:$0xff]
        %v2197 = vld [vmem:[#allocation11 + $0x178] sm:$0xff]
        %v2198 = vld [vmem:[#allocation11 + $0x180] sm:$0xff]
        %v2199 = vld [vmem:[#allocation11 + $0x188] sm:$0xff]
        %v2200 = vld [vmem:[#allocation11 + $0x190] sm:$0xff]
        %v2201 = vld [vmem:[#allocation11 + $0x198] sm:$0xff]
        %v2202 = vld [vmem:[#allocation11 + $0x1a0] sm:$0xff]
        %v2203 = vld [vmem:[#allocation11 + $0x1a8] sm:$0xff]
        %v2204 = vld [vmem:[#allocation11 + $0x1b0] sm:$0xff]
        %v2205 = vld [vmem:[#allocation11 + $0x1b8] sm:$0xff]
        %v2206 = vld [vmem:[#allocation11 + $0x1c0] sm:$0xff]
        %v2207 = vld [vmem:[#allocation11 + $0x1c8] sm:$0xff]
        %v2208 = vld [vmem:[#allocation11 + $0x1d0] sm:$0xff]
        %v2209 = vld [vmem:[#allocation11 + $0x1d8] sm:$0xff]
        %v2210 = vld [vmem:[#allocation11 + $0x1e0] sm:$0xff]
        %v2211 = vld [vmem:[#allocation11 + $0x1e8] sm:$0xff]
        %v2212 = vld [vmem:[#allocation11 + $0x1f0] sm:$0xff]
        %v2213 = vld [vmem:[#allocation11 + $0x1f8] sm:$0xff]
        %v2214 = vld [vmem:[#allocation11 + $0x200] sm:$0xff]
        %v2215 = vld [vmem:[#allocation11 + $0x208] sm:$0xff]
        %v2216 = vld [vmem:[#allocation11 + $0x210] sm:$0xff]
        %v2217 = vld [vmem:[#allocation11 + $0x218] sm:$0xff]
        %v2218 = vld [vmem:[#allocation11 + $0x220] sm:$0xff]
        %v2219 = vld [vmem:[#allocation11 + $0x228] sm:$0xff]
        %v2220 = vld [vmem:[#allocation11 + $0x230] sm:$0xff]
        %v2221 = vld [vmem:[#allocation11 + $0x238] sm:$0xff]
        %v2222 = vld [vmem:[#allocation11 + $0x240] sm:$0xff]
        %v2223 = vld [vmem:[#allocation11 + $0x248] sm:$0xff]
        %v2224 = vld [vmem:[#allocation11 + $0x250] sm:$0xff]
        %v2225 = vld [vmem:[#allocation11 + $0x258] sm:$0xff]
        %v2226 = vld [vmem:[#allocation11 + $0x260] sm:$0xff]
        %v2227 = vld [vmem:[#allocation11 + $0x268] sm:$0xff]
        %v2228 = vld [vmem:[#allocation11 + $0x270] sm:$0xff]
        %v2229 = vld [vmem:[#allocation11 + $0x278] sm:$0xff]
        %v2230 = vld [vmem:[#allocation11 + $0x280] sm:$0xff]
        %v2231 = vld [vmem:[#allocation11 + $0x288] sm:$0xff]
        %v2232 = vld [vmem:[#allocation11 + $0x290] sm:$0xff]
        %v2233 = vld [vmem:[#allocation11 + $0x298] sm:$0xff]
        %v2234 = vld [vmem:[#allocation11 + $0x2a0] sm:$0xff]
        %v2235 = vld [vmem:[#allocation11 + $0x2a8] sm:$0xff]
        %v2236 = vld [vmem:[#allocation11 + $0x2b0] sm:$0xff]
        %v2237 = vld [vmem:[#allocation11 + $0x2b8] sm:$0xff]
        %v2238 = vld [vmem:[#allocation11 + $0x2c0] sm:$0xff]
        %v2239 = vld [vmem:[#allocation11 + $0x2c8] sm:$0xff]
        %v2240 = vld [vmem:[#allocation11 + $0x2d0] sm:$0xff]
        %v2241 = vld [vmem:[#allocation11 + $0x2d8] sm:$0xff]
        %v2242 = vld [vmem:[#allocation11 + $0x2e0] sm:$0xff]
        %v2243 = vld [vmem:[#allocation11 + $0x2e8] sm:$0xff]
        %v2244 = vld [vmem:[#allocation11 + $0x2f0] sm:$0xff]
        %v2245 = vld [vmem:[#allocation11 + $0x2f8] sm:$0xff]
        %v2246 = vld [vmem:[#allocation11 + $0x300] sm:$0xff]
        %v2247 = vld [vmem:[#allocation11 + $0x308] sm:$0xff]
        %v2248 = vld [vmem:[#allocation11 + $0x310] sm:$0xff]
        %v2249 = vld [vmem:[#allocation11 + $0x318] sm:$0xff]
        %v2250 = vld [vmem:[#allocation11 + $0x320] sm:$0xff]
        %v2251 = vld [vmem:[#allocation11 + $0x328] sm:$0xff]
        %v2252 = vld [vmem:[#allocation11 + $0x330] sm:$0xff]
        %v2253 = vld [vmem:[#allocation11 + $0x338] sm:$0xff]
        %v2254 = vld [vmem:[#allocation11 + $0x340] sm:$0xff]
        %v2255 = vld [vmem:[#allocation11 + $0x348] sm:$0xff]
        %v2256 = vld [vmem:[#allocation11 + $0x350] sm:$0xff]
        %v2257 = vld [vmem:[#allocation11 + $0x358] sm:$0xff]
        %v2258 = vld [vmem:[#allocation11 + $0x360] sm:$0xff]
        %v2259 = vld [vmem:[#allocation11 + $0x368] sm:$0xff]
        %v2260 = vld [vmem:[#allocation11 + $0x370] sm:$0xff]
        %v2261 = vld [vmem:[#allocation11 + $0x378] sm:$0xff]
        %v2262 = vld [vmem:[#allocation11 + $0x380] sm:$0xff]
        %v2263 = vld [vmem:[#allocation11 + $0x388] sm:$0xff]
        %v2264 = vld [vmem:[#allocation11 + $0x390] sm:$0xff]
        %v2265 = vld [vmem:[#allocation11 + $0x398] sm:$0xff]
        %v2266 = vld [vmem:[#allocation11 + $0x3a0] sm:$0xff]
        %v2267 = vld [vmem:[#allocation11 + $0x3a8] sm:$0xff]
        %v2268 = vld [vmem:[#allocation11 + $0x3b0] sm:$0xff]
        %v2269 = vld [vmem:[#allocation11 + $0x3b8] sm:$0xff]
        %v2270 = vld [vmem:[#allocation11 + $0x3c0] sm:$0xff]
        %v2271 = vld [vmem:[#allocation11 + $0x3c8] sm:$0xff]
        %v2272 = vld [vmem:[#allocation11 + $0x3d0] sm:$0xff]
        %v2273 = vld [vmem:[#allocation11 + $0x3d8] sm:$0xff]
        %v2274 = vld [vmem:[#allocation11 + $0x3e0] sm:$0xff]
        %v2275 = vld [vmem:[#allocation11 + $0x3e8] sm:$0xff]
        %v2276 = vld [vmem:[#allocation11 + $0x3f0] sm:$0xff]
        %v2277 = vld [vmem:[#allocation11 + $0x3f8] sm:$0xff]
        %v2278 = vld [vmem:[#allocation11 + $0x400] sm:$0xff]
        %v2279 = vld [vmem:[#allocation11 + $0x408] sm:$0xff]
        %v2280 = vld [vmem:[#allocation11 + $0x410] sm:$0xff]
        %v2281 = vld [vmem:[#allocation11 + $0x418] sm:$0xff]
        %v2282 = vld [vmem:[#allocation11 + $0x420] sm:$0xff]
        %v2283 = vld [vmem:[#allocation11 + $0x428] sm:$0xff]
        %v2284 = vld [vmem:[#allocation11 + $0x430] sm:$0xff]
        %v2285 = vld [vmem:[#allocation11 + $0x438] sm:$0xff]
        %v2286 = vld [vmem:[#allocation11 + $0x440] sm:$0xff]
        %v2287 = vld [vmem:[#allocation11 + $0x448] sm:$0xff]
        %v2288 = vld [vmem:[#allocation11 + $0x450] sm:$0xff]
        %v2289 = vld [vmem:[#allocation11 + $0x458] sm:$0xff]
        %v2290 = vld [vmem:[#allocation11 + $0x460] sm:$0xff]
        %v2291 = vld [vmem:[#allocation11 + $0x468] sm:$0xff]
        %v2292 = vld [vmem:[#allocation11 + $0x470] sm:$0xff]
        %v2293 = vld [vmem:[#allocation11 + $0x478] sm:$0xff]
        %v2294 = vmul.f32 %v1806, %v2150
        %v2295 = vmul.f32 %v1798, %v2151
        %v2296 = vmul.f32 %v1807, %v2152
        %v2297 = vmul.f32 %v1799, %v2153
        %v2298 = vmul.f32 %v1808, %v2154
        %v2299 = vmul.f32 %v1800, %v2155
        %v2300 = vmul.f32 %v1809, %v2156
        %v2301 = vmul.f32 %v1801, %v2157
        %v2302 = vmul.f32 %v1810, %v2158
        %v2303 = vmul.f32 %v1802, %v2159
        %v2304 = vmul.f32 %v1811, %v2160
        %v2305 = vmul.f32 %v1803, %v2161
        %v2306 = vmul.f32 %v1812, %v2162
        %v2307 = vmul.f32 %v1804, %v2163
        %v2308 = vmul.f32 %v1813, %v2164
        %v2309 = vmul.f32 %v1805, %v2165
        %v2310 = vmul.f32 %v1854, %v2166
        %v2311 = vmul.f32 %v1846, %v2167
        %v2312 = vmul.f32 %v1855, %v2168
        %v2313 = vmul.f32 %v1847, %v2169
        %v2314 = vmul.f32 %v1856, %v2170
        %v2315 = vmul.f32 %v1848, %v2171
        %v2316 = vmul.f32 %v1857, %v2172
        %v2317 = vmul.f32 %v1849, %v2173
        %v2318 = vmul.f32 %v1858, %v2174
        %v2319 = vmul.f32 %v1850, %v2175
        %v2320 = vmul.f32 %v1859, %v2176
        %v2321 = vmul.f32 %v1851, %v2177
        %v2322 = vmul.f32 %v1860, %v2178
        %v2323 = vmul.f32 %v1852, %v2179
        %v2324 = vmul.f32 %v1861, %v2180
        %v2325 = vmul.f32 %v1853, %v2181
        %v2326 = vmul.f32 %v1902, %v2182
        %v2327 = vmul.f32 %v1894, %v2183
        %v2328 = vmul.f32 %v1903, %v2184
        %v2329 = vmul.f32 %v1895, %v2185
        %v2330 = vmul.f32 %v1904, %v2186
        %v2331 = vmul.f32 %v1896, %v2187
        %v2332 = vmul.f32 %v1905, %v2188
        %v2333 = vmul.f32 %v1897, %v2189
        %v2334 = vmul.f32 %v1906, %v2190
        %v2335 = vmul.f32 %v1898, %v2191
        %v2336 = vmul.f32 %v1907, %v2192
        %v2337 = vmul.f32 %v1899, %v2193
        %v2338 = vmul.f32 %v1908, %v2194
        %v2339 = vmul.f32 %v1900, %v2195
        %v2340 = vmul.f32 %v1909, %v2196
        %v2341 = vmul.f32 %v1901, %v2197
        %v2342 = vmul.f32 %v1950, %v2198
        %v2343 = vmul.f32 %v1942, %v2199
        %v2344 = vmul.f32 %v1951, %v2200
        %v2345 = vmul.f32 %v1943, %v2201
        %v2346 = vmul.f32 %v1952, %v2202
        %v2347 = vmul.f32 %v1944, %v2203
        %v2348 = vmul.f32 %v1953, %v2204
        %v2349 = vmul.f32 %v1945, %v2205
        %v2350 = vmul.f32 %v1954, %v2206
        %v2351 = vmul.f32 %v1946, %v2207
        %v2352 = vmul.f32 %v1955, %v2208
        %v2353 = vmul.f32 %v1947, %v2209
        %v2354 = vmul.f32 %v1956, %v2210
        %v2355 = vmul.f32 %v1948, %v2211
        %v2356 = vmul.f32 %v1957, %v2212
        %v2357 = vmul.f32 %v1949, %v2213
        %v2358 = vmul.f32 %v1750, %v2214
        %v2359 = vmul.f32 %v1751, %v2215
        %v2360 = vmul.f32 %v1752, %v2216
        %v2361 = vmul.f32 %v1753, %v2217
        %v2362 = vmul.f32 %v1754, %v2218
        %v2363 = vmul.f32 %v1755, %v2219
        %v2364 = vmul.f32 %v1756, %v2220
        %v2365 = vmul.f32 %v1757, %v2221
        %v2366 = vmul.f32 %v1758, %v2222
        %v2367 = vmul.f32 %v1759, %v2223
        %v2368 = vmul.f32 %v1760, %v2224
        %v2369 = vmul.f32 %v1761, %v2225
        %v2370 = vmul.f32 %v1762, %v2226
        %v2371 = vmul.f32 %v1763, %v2227
        %v2372 = vmul.f32 %v1764, %v2228
        %v2373 = vmul.f32 %v1765, %v2229
        %v2374 = vmul.f32 %v1990, %v2230
        %v2375 = vmul.f32 %v1998, %v2231
        %v2376 = vmul.f32 %v1991, %v2232
        %v2377 = vmul.f32 %v1999, %v2233
        %v2378 = vmul.f32 %v1992, %v2234
        %v2379 = vmul.f32 %v2000, %v2235
        %v2380 = vmul.f32 %v1993, %v2236
        %v2381 = vmul.f32 %v2001, %v2237
        %v2382 = vmul.f32 %v1994, %v2238
        %v2383 = vmul.f32 %v2002, %v2239
        %v2384 = vmul.f32 %v1995, %v2240
        %v2385 = vmul.f32 %v2003, %v2241
        %v2386 = vmul.f32 %v1996, %v2242
        %v2387 = vmul.f32 %v2004, %v2243
        %v2388 = vmul.f32 %v1997, %v2244
        %v2389 = vmul.f32 %v2005, %v2245
        %v2390 = vmul.f32 %v2038, %v2246
        %v2391 = vmul.f32 %v2046, %v2247
        %v2392 = vmul.f32 %v2039, %v2248
        %v2393 = vmul.f32 %v2047, %v2249
        %v2394 = vmul.f32 %v2040, %v2250
        %v2395 = vmul.f32 %v2048, %v2251
        %v2396 = vmul.f32 %v2041, %v2252
        %v2397 = vmul.f32 %v2049, %v2253
        %v2398 = vmul.f32 %v2042, %v2254
        %v2399 = vmul.f32 %v2050, %v2255
        %v2400 = vmul.f32 %v2043, %v2256
        %v2401 = vmul.f32 %v2051, %v2257
        %v2402 = vmul.f32 %v2044, %v2258
        %v2403 = vmul.f32 %v2052, %v2259
        %v2404 = vmul.f32 %v2045, %v2260
        %v2405 = vmul.f32 %v2053, %v2261
        %v2406 = vmul.f32 %v2086, %v2262
        %v2407 = vmul.f32 %v2094, %v2263
        %v2408 = vmul.f32 %v2087, %v2264
        %v2409 = vmul.f32 %v2095, %v2265
        %v2410 = vmul.f32 %v2088, %v2266
        %v2411 = vmul.f32 %v2096, %v2267
        %v2412 = vmul.f32 %v2089, %v2268
        %v2413 = vmul.f32 %v2097, %v2269
        %v2414 = vmul.f32 %v2090, %v2270
        %v2415 = vmul.f32 %v2098, %v2271
        %v2416 = vmul.f32 %v2091, %v2272
        %v2417 = vmul.f32 %v2099, %v2273
        %v2418 = vmul.f32 %v2092, %v2274
        %v2419 = vmul.f32 %v2100, %v2275
        %v2420 = vmul.f32 %v2093, %v2276
        %v2421 = vmul.f32 %v2101, %v2277
        %v2422 = vmul.f32 %v2134, %v2278
        %v2423 = vmul.f32 %v2142, %v2279
        %v2424 = vmul.f32 %v2135, %v2280
        %v2425 = vmul.f32 %v2143, %v2281
        %v2426 = vmul.f32 %v2136, %v2282
        %v2427 = vmul.f32 %v2144, %v2283
        %v2428 = vmul.f32 %v2137, %v2284
        %v2429 = vmul.f32 %v2145, %v2285
        %v2430 = vmul.f32 %v2138, %v2286
        %v2431 = vmul.f32 %v2146, %v2287
        %v2432 = vmul.f32 %v2139, %v2288
        %v2433 = vmul.f32 %v2147, %v2289
        %v2434 = vmul.f32 %v2140, %v2290
        %v2435 = vmul.f32 %v2148, %v2291
        %v2436 = vmul.f32 %v2141, %v2292
        %v2437 = vmul.f32 %v2149, %v2293
        %v2438 = vld [vmem:[%s12] sm:$0x1f]
        %v2439 = vld [vmem:[#allocation2] sm:$0x1]
        %2441 = vset.pattern.permute.xlu0 0
        %2442 = vperm.xlu0 %2441, %v2439
        %v2443 = vpop.permute.xlu0 %2442
        %v2445 = vlaneseq
        %v2446 = vshrl.u32 %v2445, 7
        %v2447 = vsub.s32 0, %v2446
        %v2448 = vrot.slane %v2443, %v2447
        %v2450 = vlaneseq
        %v2451 = vshrl.u32 %v2450, 7
        %v2452 = vsub.s32 0, %v2451
        %v2453 = vrot.slane %v2438, %v2452
        %v2454 = vlaneseq
        %v2455 = vshrl.u32 %v2454, 7
        %v2456 = vsub.s32 1, %v2455
        %v2457 = vrot.slane %v2438, %v2456
        %v2458 = vlaneseq
        %v2459 = vshrl.u32 %v2458, 7
        %v2460 = vsub.s32 2, %v2459
        %v2461 = vrot.slane %v2438, %v2460
        %v2462 = vlaneseq
        %v2463 = vshrl.u32 %v2462, 7
        %v2464 = vsub.s32 3, %v2463
        %v2465 = vrot.slane %v2438, %v2464
        %v2466 = vlaneseq
        %v2467 = vshrl.u32 %v2466, 7
        %v2468 = vsub.s32 4, %v2467
        %v2469 = vrot.slane %v2438, %v2468
        %vm2474 = vcmask 523264
        %v2475 = vsel %vm2474, %v2469, 0
        %2477 = vmatprep.subr.mxu0 %v2325
        %2478 = vmatpush1.msra.mxu0 %v2324
        %2479 = vmatprep.subr.mxu0 %v2323
        %2480 = vmatpush1.msra.mxu0 %v2322
        %2481 = vmatprep.subr.mxu0 %v2321
        %2482 = vmatpush1.msra.mxu0 %v2320
        %2483 = vmatprep.subr.mxu0 %v2319
        %2484 = vmatpush1.msra.mxu0 %v2318
        %2485 = vmatprep.subr.mxu0 %v2317
        %2486 = vmatpush1.msra.mxu0 %v2316
        %2487 = vmatprep.subr.mxu0 %v2315
        %2488 = vmatpush1.msra.mxu0 %v2314
        %2489 = vmatprep.subr.mxu0 %v2313
        %2490 = vmatpush1.msra.mxu0 %v2312
        %2491 = vmatprep.subr.mxu0 %v2311
        %2492 = vmatpush1.msra.mxu0 %v2310
        %2493 = vmatprep.subr.mxu0 %v2309
        %2494 = vmatpush1.msra.mxu0 %v2308
        %2495 = vmatprep.subr.mxu0 %v2307
        %2496 = vmatpush1.msra.mxu0 %v2306
        %2497 = vmatprep.subr.mxu0 %v2305
        %2498 = vmatpush1.msra.mxu0 %v2304
        %2499 = vmatprep.subr.mxu0 %v2303
        %2500 = vmatpush1.msra.mxu0 %v2302
        %2501 = vmatprep.subr.mxu0 %v2301
        %2502 = vmatpush1.msra.mxu0 %v2300
        %2503 = vmatprep.subr.mxu0 %v2299
        %2504 = vmatpush1.msra.mxu0 %v2298
        %2505 = vmatprep.subr.mxu0 %v2297
        %2506 = vmatpush1.msra.mxu0 %v2296
        %2507 = vmatprep.subr.mxu0 %v2295
        %2508 = vmatpush1.msra.mxu0 %v2294
        %2509 = vmatprep.subr.mxu0 %v2357
        %2510 = vmatpush2.msra.mxu0 %v2356
        %2511 = vmatprep.subr.mxu0 %v2355
        %2512 = vmatpush2.msra.mxu0 %v2354
        %2513 = vmatprep.subr.mxu0 %v2353
        %2514 = vmatpush2.msra.mxu0 %v2352
        %2515 = vmatprep.subr.mxu0 %v2351
        %2516 = vmatpush2.msra.mxu0 %v2350
        %2517 = vmatprep.subr.mxu0 %v2349
        %2518 = vmatpush2.msra.mxu0 %v2348
        %2519 = vmatprep.subr.mxu0 %v2347
        %2520 = vmatpush2.msra.mxu0 %v2346
        %2521 = vmatprep.subr.mxu0 %v2345
        %2522 = vmatpush2.msra.mxu0 %v2344
        %2523 = vmatprep.subr.mxu0 %v2343
        %2524 = vmatpush2.msra.mxu0 %v2342
        %2525 = vmatprep.subr.mxu0 %v2341
        %2526 = vmatpush2.msra.mxu0 %v2340
        %2527 = vmatprep.subr.mxu0 %v2339
        %2528 = vmatpush2.msra.mxu0 %v2338
        %2529 = vmatprep.subr.mxu0 %v2337
        %2530 = vmatpush2.msra.mxu0 %v2336
        %2531 = vmatprep.subr.mxu0 %v2335
        %2532 = vmatpush2.msra.mxu0 %v2334
        %2533 = vmatprep.subr.mxu0 %v2333
        %2534 = vmatpush2.msra.mxu0 %v2332
        %2535 = vmatprep.subr.mxu0 %v2331
        %2536 = vmatpush2.msra.mxu0 %v2330
        %2537 = vmatprep.subr.mxu0 %v2329
        %2538 = vmatpush2.msra.mxu0 %v2328
        %2539 = vmatprep.subr.mxu0 %v2327
        %2540 = vmatpush2.msra.mxu0 %v2326
        %2541 = vmatprep.mubr.f32.mxu0 %v2457
        %2542 = vmatmul.mubr.f32.gmra.mxu0 %v2453
        %v2543 = vpop.f32.mrf.mxu0
        %v2544 = vadd.f32 %v2448, %v2543
        %v2545 = vpop.f32.mrf.mxu0
        %v2546 = vadd.f32 %v2448, %v2545
        %2547 = vdwg.mxu0
        %2548 = vmatprep.subr.mxu0 %v2389
        %2549 = vmatpush1.msra.mxu0 %v2388
        %2550 = vmatprep.subr.mxu0 %v2387
        %2551 = vmatpush1.msra.mxu0 %v2386
        %2552 = vmatprep.subr.mxu0 %v2385
        %2553 = vmatpush1.msra.mxu0 %v2384
        %2554 = vmatprep.subr.mxu0 %v2383
        %2555 = vmatpush1.msra.mxu0 %v2382
        %2556 = vmatprep.subr.mxu0 %v2381
        %2557 = vmatpush1.msra.mxu0 %v2380
        %2558 = vmatprep.subr.mxu0 %v2379
        %2559 = vmatpush1.msra.mxu0 %v2378
        %2560 = vmatprep.subr.mxu0 %v2377
        %2561 = vmatpush1.msra.mxu0 %v2376
        %2562 = vmatprep.subr.mxu0 %v2375
        %2563 = vmatpush1.msra.mxu0 %v2374
        %2564 = vmatprep.subr.mxu0 %v2373
        %2565 = vmatpush1.msra.mxu0 %v2372
        %2566 = vmatprep.subr.mxu0 %v2371
        %2567 = vmatpush1.msra.mxu0 %v2370
        %2568 = vmatprep.subr.mxu0 %v2369
        %2569 = vmatpush1.msra.mxu0 %v2368
        %2570 = vmatprep.subr.mxu0 %v2367
        %2571 = vmatpush1.msra.mxu0 %v2366
        %2572 = vmatprep.subr.mxu0 %v2365
        %2573 = vmatpush1.msra.mxu0 %v2364
        %2574 = vmatprep.subr.mxu0 %v2363
        %2575 = vmatpush1.msra.mxu0 %v2362
        %2576 = vmatprep.subr.mxu0 %v2361
        %2577 = vmatpush1.msra.mxu0 %v2360
        %2578 = vmatprep.subr.mxu0 %v2359
        %2579 = vmatpush1.msra.mxu0 %v2358
        %2580 = vmatprep.subr.mxu0 %v2421
        %2581 = vmatpush2.msra.mxu0 %v2420
        %2582 = vmatprep.subr.mxu0 %v2419
        %2583 = vmatpush2.msra.mxu0 %v2418
        %2584 = vmatprep.subr.mxu0 %v2417
        %2585 = vmatpush2.msra.mxu0 %v2416
        %2586 = vmatprep.subr.mxu0 %v2415
        %2587 = vmatpush2.msra.mxu0 %v2414
        %2588 = vmatprep.subr.mxu0 %v2413
        %2589 = vmatpush2.msra.mxu0 %v2412
        %2590 = vmatprep.subr.mxu0 %v2411
        %2591 = vmatpush2.msra.mxu0 %v2410
        %2592 = vmatprep.subr.mxu0 %v2409
        %2593 = vmatpush2.msra.mxu0 %v2408
        %2594 = vmatprep.subr.mxu0 %v2407
        %2595 = vmatpush2.msra.mxu0 %v2406
        %2596 = vmatprep.subr.mxu0 %v2405
        %2597 = vmatpush2.msra.mxu0 %v2404
        %2598 = vmatprep.subr.mxu0 %v2403
        %2599 = vmatpush2.msra.mxu0 %v2402
        %2600 = vmatprep.subr.mxu0 %v2401
        %2601 = vmatpush2.msra.mxu0 %v2400
        %2602 = vmatprep.subr.mxu0 %v2399
        %2603 = vmatpush2.msra.mxu0 %v2398
        %2604 = vmatprep.subr.mxu0 %v2397
        %2605 = vmatpush2.msra.mxu0 %v2396
        %2606 = vmatprep.subr.mxu0 %v2395
        %2607 = vmatpush2.msra.mxu0 %v2394
        %2608 = vmatprep.subr.mxu0 %v2393
        %2609 = vmatpush2.msra.mxu0 %v2392
        %2610 = vmatprep.subr.mxu0 %v2391
        %2611 = vmatpush2.msra.mxu0 %v2390
        %2612 = vmatprep.mubr.f32.mxu0 %v2465
        %2613 = vmatmul.mubr.f32.gmra.mxu0 %v2461
        %v2614 = vpop.f32.mrf.mxu0
        %v2615 = vadd.f32 %v2544, %v2614
        %v2616 = vpop.f32.mrf.mxu0
        %v2617 = vadd.f32 %v2546, %v2616
        %2618 = vdwg.mxu0
        %2619 = vmatprep.subr.mxu0 0.0
        %2620 = vmatpush1.msra.mxu0 0.0
        %2621 = vmatprep.subr.mxu0 0.0
        %2622 = vmatpush1.msra.mxu0 0.0
        %2623 = vmatprep.subr.mxu0 0.0
        %2624 = vmatpush1.msra.mxu0 0.0
        %2625 = vmatprep.subr.mxu0 0.0
        %2626 = vmatpush1.msra.mxu0 0.0
        %2627 = vmatprep.subr.mxu0 0.0
        %2628 = vmatpush1.msra.mxu0 0.0
        %2629 = vmatprep.subr.mxu0 0.0
        %2630 = vmatpush1.msra.mxu0 0.0
        %2631 = vmatprep.subr.mxu0 0.0
        %2632 = vmatpush1.msra.mxu0 0.0
        %2633 = vmatprep.subr.mxu0 0.0
        %2634 = vmatpush1.msra.mxu0 0.0
        %2635 = vmatprep.subr.mxu0 %v2437
        %2636 = vmatpush1.msra.mxu0 %v2436
        %2637 = vmatprep.subr.mxu0 %v2435
        %2638 = vmatpush1.msra.mxu0 %v2434
        %2639 = vmatprep.subr.mxu0 %v2433
        %2640 = vmatpush1.msra.mxu0 %v2432
        %2641 = vmatprep.subr.mxu0 %v2431
        %2642 = vmatpush1.msra.mxu0 %v2430
        %2643 = vmatprep.subr.mxu0 %v2429
        %2644 = vmatpush1.msra.mxu0 %v2428
        %2645 = vmatprep.subr.mxu0 %v2427
        %2646 = vmatpush1.msra.mxu0 %v2426
        %2647 = vmatprep.subr.mxu0 %v2425
        %2648 = vmatpush1.msra.mxu0 %v2424
        %2649 = vmatprep.subr.mxu0 %v2423
        %2650 = vmatpush1.msra.mxu0 %v2422
        %2651 = vmatprep.subr.mxu0 0.0
        %2652 = vmatpush2.msra.mxu0 0.0
        %2653 = vmatprep.subr.mxu0 0.0
        %2654 = vmatpush2.msra.mxu0 0.0
        %2655 = vmatprep.subr.mxu0 0.0
        %2656 = vmatpush2.msra.mxu0 0.0
        %2657 = vmatprep.subr.mxu0 0.0
        %2658 = vmatpush2.msra.mxu0 0.0
        %2659 = vmatprep.subr.mxu0 0.0
        %2660 = vmatpush2.msra.mxu0 0.0
        %2661 = vmatprep.subr.mxu0 0.0
        %2662 = vmatpush2.msra.mxu0 0.0
        %2663 = vmatprep.subr.mxu0 0.0
        %2664 = vmatpush2.msra.mxu0 0.0
        %2665 = vmatprep.subr.mxu0 0.0
        %2666 = vmatpush2.msra.mxu0 0.0
        %2667 = vmatprep.subr.mxu0 0.0
        %2668 = vmatpush2.msra.mxu0 0.0
        %2669 = vmatprep.subr.mxu0 0.0
        %2670 = vmatpush2.msra.mxu0 0.0
        %2671 = vmatprep.subr.mxu0 0.0
        %2672 = vmatpush2.msra.mxu0 0.0
        %2673 = vmatprep.subr.mxu0 0.0
        %2674 = vmatpush2.msra.mxu0 0.0
        %2675 = vmatprep.subr.mxu0 0.0
        %2676 = vmatpush2.msra.mxu0 0.0
        %2677 = vmatprep.subr.mxu0 0.0
        %2678 = vmatpush2.msra.mxu0 0.0
        %2679 = vmatprep.subr.mxu0 0.0
        %2680 = vmatpush2.msra.mxu0 0.0
        %2681 = vmatprep.subr.mxu0 0.0
        %2682 = vmatpush2.msra.mxu0 0.0
        %2683 = vmatprep.mubr.f32.mxu0 0.0
        %2684 = vmatmul.mubr.f32.gmra.mxu0 %v2475
        %v2685 = vpop.f32.mrf.mxu0
        %v2686 = vadd.f32 %v2615, %v2685
        %v2687 = vpop.f32.mrf.mxu0
        %v2688 = vadd.f32 %v2617, %v2687
        %2689 = vdwg.mxu0
        %v2690 = vld [vmem:[#allocation3] sm:$0xff]
        %v2691 = vld [vmem:[#allocation3 + $0x8] sm:$0xff]
        %v2692 = vld [vmem:[#allocation3 + $0x10] sm:$0xff]
        %v2693 = vld [vmem:[#allocation3 + $0x18] sm:$0xff]
        %v2694 = vld [vmem:[#allocation3 + $0x20] sm:$0xff]
        %v2695 = vld [vmem:[#allocation3 + $0x28] sm:$0xff]
        %v2696 = vld [vmem:[#allocation3 + $0x30] sm:$0xff]
        %v2697 = vld [vmem:[#allocation3 + $0x38] sm:$0xff]
        %v2698 = vld [vmem:[#allocation3 + $0x40] sm:$0xff]
        %v2699 = vld [vmem:[#allocation3 + $0x48] sm:$0xff]
        %v2700 = vld [vmem:[#allocation3 + $0x50] sm:$0xff]
        %v2701 = vld [vmem:[#allocation3 + $0x58] sm:$0xff]
        %v2702 = vld [vmem:[#allocation3 + $0x60] sm:$0xff]
        %v2703 = vld [vmem:[#allocation3 + $0x68] sm:$0xff]
        %v2704 = vld [vmem:[#allocation3 + $0x70] sm:$0xff]
        %v2705 = vld [vmem:[#allocation3 + $0x78] sm:$0xff]
        %v2706 = vld [vmem:[#allocation3 + $0x80] sm:$0xff]
        %v2707 = vld [vmem:[#allocation3 + $0x88] sm:$0xff]
        %v2708 = vld [vmem:[#allocation3 + $0x90] sm:$0xff]
        %v2709 = vld [vmem:[#allocation3 + $0x98] sm:$0xff]
        %v2710 = vld [vmem:[#allocation3 + $0xa0] sm:$0xff]
        %v2711 = vld [vmem:[#allocation3 + $0xa8] sm:$0xff]
        %v2712 = vld [vmem:[#allocation3 + $0xb0] sm:$0xff]
        %v2713 = vld [vmem:[#allocation3 + $0xb8] sm:$0xff]
        %v2714 = vld [vmem:[#allocation3 + $0xc0] sm:$0xff]
        %v2715 = vld [vmem:[#allocation3 + $0xc8] sm:$0xff]
        %v2716 = vld [vmem:[#allocation3 + $0xd0] sm:$0xff]
        %v2717 = vld [vmem:[#allocation3 + $0xd8] sm:$0xff]
        %v2718 = vld [vmem:[#allocation3 + $0xe0] sm:$0xff]
        %v2719 = vld [vmem:[#allocation3 + $0xe8] sm:$0xff]
        %v2720 = vld [vmem:[#allocation3 + $0xf0] sm:$0xff]
        %v2721 = vld [vmem:[#allocation3 + $0xf8] sm:$0xff]
        %v2722 = vld [vmem:[#allocation3 + $0x100] sm:$0xff]
        %v2723 = vld [vmem:[#allocation3 + $0x108] sm:$0xff]
        %v2724 = vld [vmem:[#allocation3 + $0x110] sm:$0xff]
        %v2725 = vld [vmem:[#allocation3 + $0x118] sm:$0xff]
        %v2726 = vld [vmem:[#allocation3 + $0x120] sm:$0xff]
        %v2727 = vld [vmem:[#allocation3 + $0x128] sm:$0xff]
        %v2728 = vld [vmem:[#allocation3 + $0x130] sm:$0xff]
        %v2729 = vld [vmem:[#allocation3 + $0x138] sm:$0xff]
        %v2730 = vld [vmem:[#allocation3 + $0x140] sm:$0xff]
        %v2731 = vld [vmem:[#allocation3 + $0x148] sm:$0xff]
        %v2732 = vld [vmem:[#allocation3 + $0x150] sm:$0xff]
        %v2733 = vld [vmem:[#allocation3 + $0x158] sm:$0xff]
        %v2734 = vld [vmem:[#allocation3 + $0x160] sm:$0xff]
        %v2735 = vld [vmem:[#allocation3 + $0x168] sm:$0xff]
        %v2736 = vld [vmem:[#allocation3 + $0x170] sm:$0xff]
        %v2737 = vld [vmem:[#allocation3 + $0x178] sm:$0xff]
        %v2738 = vld [vmem:[#allocation3 + $0x180] sm:$0xff]
        %v2739 = vld [vmem:[#allocation3 + $0x188] sm:$0xff]
        %v2740 = vld [vmem:[#allocation3 + $0x190] sm:$0xff]
        %v2741 = vld [vmem:[#allocation3 + $0x198] sm:$0xff]
        %v2742 = vld [vmem:[#allocation3 + $0x1a0] sm:$0xff]
        %v2743 = vld [vmem:[#allocation3 + $0x1a8] sm:$0xff]
        %v2744 = vld [vmem:[#allocation3 + $0x1b0] sm:$0xff]
        %v2745 = vld [vmem:[#allocation3 + $0x1b8] sm:$0xff]
        %v2746 = vld [vmem:[#allocation3 + $0x1c0] sm:$0xff]
        %v2747 = vld [vmem:[#allocation3 + $0x1c8] sm:$0xff]
        %v2748 = vld [vmem:[#allocation3 + $0x1d0] sm:$0xff]
        %v2749 = vld [vmem:[#allocation3 + $0x1d8] sm:$0xff]
        %v2750 = vld [vmem:[#allocation3 + $0x1e0] sm:$0xff]
        %v2751 = vld [vmem:[#allocation3 + $0x1e8] sm:$0xff]
        %v2752 = vld [vmem:[#allocation3 + $0x1f0] sm:$0xff]
        %v2753 = vld [vmem:[#allocation3 + $0x1f8] sm:$0xff]
        %v2754 = vld [vmem:[#allocation3 + $0x200] sm:$0xff]
        %v2755 = vld [vmem:[#allocation3 + $0x208] sm:$0xff]
        %v2756 = vld [vmem:[#allocation3 + $0x210] sm:$0xff]
        %v2757 = vld [vmem:[#allocation3 + $0x218] sm:$0xff]
        %v2758 = vld [vmem:[#allocation3 + $0x220] sm:$0xff]
        %v2759 = vld [vmem:[#allocation3 + $0x228] sm:$0xff]
        %v2760 = vld [vmem:[#allocation3 + $0x230] sm:$0xff]
        %v2761 = vld [vmem:[#allocation3 + $0x238] sm:$0xff]
        %v2762 = vld [vmem:[#allocation3 + $0x240] sm:$0xff]
        %v2763 = vld [vmem:[#allocation3 + $0x248] sm:$0xff]
        %v2764 = vld [vmem:[#allocation3 + $0x250] sm:$0xff]
        %v2765 = vld [vmem:[#allocation3 + $0x258] sm:$0xff]
        %v2766 = vld [vmem:[#allocation3 + $0x260] sm:$0xff]
        %v2767 = vld [vmem:[#allocation3 + $0x268] sm:$0xff]
        %v2768 = vld [vmem:[#allocation3 + $0x270] sm:$0xff]
        %v2769 = vld [vmem:[#allocation3 + $0x278] sm:$0xff]
        %v2770 = vld [vmem:[#allocation3 + $0x280] sm:$0xff]
        %v2771 = vld [vmem:[#allocation3 + $0x288] sm:$0xff]
        %v2772 = vld [vmem:[#allocation3 + $0x290] sm:$0xff]
        %v2773 = vld [vmem:[#allocation3 + $0x298] sm:$0xff]
        %v2774 = vld [vmem:[#allocation3 + $0x2a0] sm:$0xff]
        %v2775 = vld [vmem:[#allocation3 + $0x2a8] sm:$0xff]
        %v2776 = vld [vmem:[#allocation3 + $0x2b0] sm:$0xff]
        %v2777 = vld [vmem:[#allocation3 + $0x2b8] sm:$0xff]
        %v2778 = vld [vmem:[#allocation3 + $0x2c0] sm:$0xff]
        %v2779 = vld [vmem:[#allocation3 + $0x2c8] sm:$0xff]
        %v2780 = vld [vmem:[#allocation3 + $0x2d0] sm:$0xff]
        %v2781 = vld [vmem:[#allocation3 + $0x2d8] sm:$0xff]
        %v2782 = vld [vmem:[#allocation3 + $0x2e0] sm:$0xff]
        %v2783 = vld [vmem:[#allocation3 + $0x2e8] sm:$0xff]
        %v2784 = vld [vmem:[#allocation3 + $0x2f0] sm:$0xff]
        %v2785 = vld [vmem:[#allocation3 + $0x2f8] sm:$0xff]
        %v2786 = vld [vmem:[#allocation3 + $0x300] sm:$0xff]
        %v2787 = vld [vmem:[#allocation3 + $0x308] sm:$0xff]
        %v2788 = vld [vmem:[#allocation3 + $0x310] sm:$0xff]
        %v2789 = vld [vmem:[#allocation3 + $0x318] sm:$0xff]
        %v2790 = vld [vmem:[#allocation3 + $0x320] sm:$0xff]
        %v2791 = vld [vmem:[#allocation3 + $0x328] sm:$0xff]
        %v2792 = vld [vmem:[#allocation3 + $0x330] sm:$0xff]
        %v2793 = vld [vmem:[#allocation3 + $0x338] sm:$0xff]
        %v2794 = vld [vmem:[#allocation3 + $0x340] sm:$0xff]
        %v2795 = vld [vmem:[#allocation3 + $0x348] sm:$0xff]
        %v2796 = vld [vmem:[#allocation3 + $0x350] sm:$0xff]
        %v2797 = vld [vmem:[#allocation3 + $0x358] sm:$0xff]
        %v2798 = vld [vmem:[#allocation3 + $0x360] sm:$0xff]
        %v2799 = vld [vmem:[#allocation3 + $0x368] sm:$0xff]
        %v2800 = vld [vmem:[#allocation3 + $0x370] sm:$0xff]
        %v2801 = vld [vmem:[#allocation3 + $0x378] sm:$0xff]
        %v2802 = vld [vmem:[#allocation3 + $0x380] sm:$0xff]
        %v2803 = vld [vmem:[#allocation3 + $0x388] sm:$0xff]
        %v2804 = vld [vmem:[#allocation3 + $0x390] sm:$0xff]
        %v2805 = vld [vmem:[#allocation3 + $0x398] sm:$0xff]
        %v2806 = vld [vmem:[#allocation3 + $0x3a0] sm:$0xff]
        %v2807 = vld [vmem:[#allocation3 + $0x3a8] sm:$0xff]
        %v2808 = vld [vmem:[#allocation3 + $0x3b0] sm:$0xff]
        %v2809 = vld [vmem:[#allocation3 + $0x3b8] sm:$0xff]
        %v2810 = vld [vmem:[#allocation3 + $0x3c0] sm:$0xff]
        %v2811 = vld [vmem:[#allocation3 + $0x3c8] sm:$0xff]
        %v2812 = vld [vmem:[#allocation3 + $0x3d0] sm:$0xff]
        %v2813 = vld [vmem:[#allocation3 + $0x3d8] sm:$0xff]
        %v2814 = vld [vmem:[#allocation3 + $0x3e0] sm:$0xff]
        %v2815 = vld [vmem:[#allocation3 + $0x3e8] sm:$0xff]
        %v2816 = vld [vmem:[#allocation3 + $0x3f0] sm:$0xff]
        %v2817 = vld [vmem:[#allocation3 + $0x3f8] sm:$0xff]
        %v2818 = vld [vmem:[#allocation3 + $0x400] sm:$0xff]
        %v2819 = vld [vmem:[#allocation3 + $0x408] sm:$0xff]
        %v2820 = vld [vmem:[#allocation3 + $0x410] sm:$0xff]
        %v2821 = vld [vmem:[#allocation3 + $0x418] sm:$0xff]
        %v2822 = vld [vmem:[#allocation3 + $0x420] sm:$0xff]
        %v2823 = vld [vmem:[#allocation3 + $0x428] sm:$0xff]
        %v2824 = vld [vmem:[#allocation3 + $0x430] sm:$0xff]
        %v2825 = vld [vmem:[#allocation3 + $0x438] sm:$0xff]
        %v2826 = vld [vmem:[#allocation3 + $0x440] sm:$0xff]
        %v2827 = vld [vmem:[#allocation3 + $0x448] sm:$0xff]
        %v2828 = vld [vmem:[#allocation3 + $0x450] sm:$0xff]
        %v2829 = vld [vmem:[#allocation3 + $0x458] sm:$0xff]
        %v2830 = vld [vmem:[#allocation3 + $0x460] sm:$0xff]
        %v2831 = vld [vmem:[#allocation3 + $0x468] sm:$0xff]
        %v2832 = vld [vmem:[#allocation3 + $0x470] sm:$0xff]
        %v2833 = vld [vmem:[#allocation3 + $0x478] sm:$0xff]
        %v2834 = vld [vmem:[#allocation3 + $0x480] sm:$0xff]
        %v2835 = vld [vmem:[#allocation3 + $0x488] sm:$0xff]
        %v2836 = vld [vmem:[#allocation3 + $0x490] sm:$0xff]
        %v2837 = vld [vmem:[#allocation3 + $0x498] sm:$0xff]
        %v2838 = vld [vmem:[#allocation3 + $0x4a0] sm:$0xff]
        %v2839 = vld [vmem:[#allocation3 + $0x4a8] sm:$0xff]
        %v2840 = vld [vmem:[#allocation3 + $0x4b0] sm:$0xff]
        %v2841 = vld [vmem:[#allocation3 + $0x4b8] sm:$0xff]
        %v2842 = vld [vmem:[#allocation3 + $0x4c0] sm:$0xff]
        %v2843 = vld [vmem:[#allocation3 + $0x4c8] sm:$0xff]
        %v2844 = vld [vmem:[#allocation3 + $0x4d0] sm:$0xff]
        %v2845 = vld [vmem:[#allocation3 + $0x4d8] sm:$0xff]
        %v2846 = vld [vmem:[#allocation3 + $0x4e0] sm:$0xff]
        %v2847 = vld [vmem:[#allocation3 + $0x4e8] sm:$0xff]
        %v2848 = vld [vmem:[#allocation3 + $0x4f0] sm:$0xff]
        %v2849 = vld [vmem:[#allocation3 + $0x4f8] sm:$0xff]
        %v2850 = vld [vmem:[#allocation3 + $0x500] sm:$0xff]
        %v2851 = vld [vmem:[#allocation3 + $0x508] sm:$0xff]
        %v2852 = vld [vmem:[#allocation3 + $0x510] sm:$0xff]
        %v2853 = vld [vmem:[#allocation3 + $0x518] sm:$0xff]
        %v2854 = vld [vmem:[#allocation3 + $0x520] sm:$0xff]
        %v2855 = vld [vmem:[#allocation3 + $0x528] sm:$0xff]
        %v2856 = vld [vmem:[#allocation3 + $0x530] sm:$0xff]
        %v2857 = vld [vmem:[#allocation3 + $0x538] sm:$0xff]
        %v2858 = vld [vmem:[#allocation3 + $0x540] sm:$0xff]
        %v2859 = vld [vmem:[#allocation3 + $0x548] sm:$0xff]
        %v2860 = vld [vmem:[#allocation3 + $0x550] sm:$0xff]
        %v2861 = vld [vmem:[#allocation3 + $0x558] sm:$0xff]
        %v2862 = vld [vmem:[#allocation3 + $0x560] sm:$0xff]
        %v2863 = vld [vmem:[#allocation3 + $0x568] sm:$0xff]
        %v2864 = vld [vmem:[#allocation3 + $0x570] sm:$0xff]
        %v2865 = vld [vmem:[#allocation3 + $0x578] sm:$0xff]
        %v2866 = vld [vmem:[#allocation3 + $0x580] sm:$0xff]
        %v2867 = vld [vmem:[#allocation3 + $0x588] sm:$0xff]
        %v2868 = vld [vmem:[#allocation3 + $0x590] sm:$0xff]
        %v2869 = vld [vmem:[#allocation3 + $0x598] sm:$0xff]
        %v2870 = vld [vmem:[#allocation3 + $0x5a0] sm:$0xff]
        %v2871 = vld [vmem:[#allocation3 + $0x5a8] sm:$0xff]
        %v2872 = vld [vmem:[#allocation3 + $0x5b0] sm:$0xff]
        %v2873 = vld [vmem:[#allocation3 + $0x5b8] sm:$0xff]
        %v2874 = vld [vmem:[#allocation3 + $0x5c0] sm:$0xff]
        %v2875 = vld [vmem:[#allocation3 + $0x5c8] sm:$0xff]
        %v2876 = vld [vmem:[#allocation3 + $0x5d0] sm:$0xff]
        %v2877 = vld [vmem:[#allocation3 + $0x5d8] sm:$0xff]
        %v2878 = vld [vmem:[#allocation3 + $0x5e0] sm:$0xff]
        %v2879 = vld [vmem:[#allocation3 + $0x5e8] sm:$0xff]
        %v2880 = vld [vmem:[#allocation3 + $0x5f0] sm:$0xff]
        %v2881 = vld [vmem:[#allocation3 + $0x5f8] sm:$0xff]
        %v2882 = vld [vmem:[#allocation3 + $0x600] sm:$0xff]
        %v2883 = vld [vmem:[#allocation3 + $0x608] sm:$0xff]
        %v2884 = vld [vmem:[#allocation3 + $0x610] sm:$0xff]
        %v2885 = vld [vmem:[#allocation3 + $0x618] sm:$0xff]
        %v2886 = vld [vmem:[#allocation3 + $0x620] sm:$0xff]
        %v2887 = vld [vmem:[#allocation3 + $0x628] sm:$0xff]
        %v2888 = vld [vmem:[#allocation3 + $0x630] sm:$0xff]
        %v2889 = vld [vmem:[#allocation3 + $0x638] sm:$0xff]
        %v2890 = vld [vmem:[#allocation3 + $0x640] sm:$0xff]
        %v2891 = vld [vmem:[#allocation3 + $0x648] sm:$0xff]
        %v2892 = vld [vmem:[#allocation3 + $0x650] sm:$0xff]
        %v2893 = vld [vmem:[#allocation3 + $0x658] sm:$0xff]
        %v2894 = vld [vmem:[#allocation3 + $0x660] sm:$0xff]
        %v2895 = vld [vmem:[#allocation3 + $0x668] sm:$0xff]
        %v2896 = vld [vmem:[#allocation3 + $0x670] sm:$0xff]
        %v2897 = vld [vmem:[#allocation3 + $0x678] sm:$0xff]
        %v2898 = vld [vmem:[#allocation3 + $0x680] sm:$0xff]
        %v2899 = vld [vmem:[#allocation3 + $0x688] sm:$0xff]
        %v2900 = vld [vmem:[#allocation3 + $0x690] sm:$0xff]
        %v2901 = vld [vmem:[#allocation3 + $0x698] sm:$0xff]
        %v2902 = vld [vmem:[#allocation3 + $0x6a0] sm:$0xff]
        %v2903 = vld [vmem:[#allocation3 + $0x6a8] sm:$0xff]
        %v2904 = vld [vmem:[#allocation3 + $0x6b0] sm:$0xff]
        %v2905 = vld [vmem:[#allocation3 + $0x6b8] sm:$0xff]
        %v2906 = vld [vmem:[#allocation3 + $0x6c0] sm:$0xff]
        %v2907 = vld [vmem:[#allocation3 + $0x6c8] sm:$0xff]
        %v2908 = vld [vmem:[#allocation3 + $0x6d0] sm:$0xff]
        %v2909 = vld [vmem:[#allocation3 + $0x6d8] sm:$0xff]
        %v2910 = vld [vmem:[#allocation3 + $0x6e0] sm:$0xff]
        %v2911 = vld [vmem:[#allocation3 + $0x6e8] sm:$0xff]
        %v2912 = vld [vmem:[#allocation3 + $0x6f0] sm:$0xff]
        %v2913 = vld [vmem:[#allocation3 + $0x6f8] sm:$0xff]
        %v2914 = vld [vmem:[#allocation3 + $0x700] sm:$0xff]
        %v2915 = vld [vmem:[#allocation3 + $0x708] sm:$0xff]
        %v2916 = vld [vmem:[#allocation3 + $0x710] sm:$0xff]
        %v2917 = vld [vmem:[#allocation3 + $0x718] sm:$0xff]
        %v2918 = vld [vmem:[#allocation3 + $0x720] sm:$0xff]
        %v2919 = vld [vmem:[#allocation3 + $0x728] sm:$0xff]
        %v2920 = vld [vmem:[#allocation3 + $0x730] sm:$0xff]
        %v2921 = vld [vmem:[#allocation3 + $0x738] sm:$0xff]
        %v2922 = vld [vmem:[#allocation3 + $0x740] sm:$0xff]
        %v2923 = vld [vmem:[#allocation3 + $0x748] sm:$0xff]
        %v2924 = vld [vmem:[#allocation3 + $0x750] sm:$0xff]
        %v2925 = vld [vmem:[#allocation3 + $0x758] sm:$0xff]
        %v2926 = vld [vmem:[#allocation3 + $0x760] sm:$0xff]
        %v2927 = vld [vmem:[#allocation3 + $0x768] sm:$0xff]
        %v2928 = vld [vmem:[#allocation3 + $0x770] sm:$0xff]
        %v2929 = vld [vmem:[#allocation3 + $0x778] sm:$0xff]
        %v2930 = vld [vmem:[#allocation3 + $0x780] sm:$0xff]
        %v2931 = vld [vmem:[#allocation3 + $0x788] sm:$0xff]
        %v2932 = vld [vmem:[#allocation3 + $0x790] sm:$0xff]
        %v2933 = vld [vmem:[#allocation3 + $0x798] sm:$0xff]
        %v2934 = vld [vmem:[#allocation3 + $0x7a0] sm:$0xff]
        %v2935 = vld [vmem:[#allocation3 + $0x7a8] sm:$0xff]
        %v2936 = vld [vmem:[#allocation3 + $0x7b0] sm:$0xff]
        %v2937 = vld [vmem:[#allocation3 + $0x7b8] sm:$0xff]
        %v2938 = vld [vmem:[#allocation3 + $0x7c0] sm:$0xff]
        %v2939 = vld [vmem:[#allocation3 + $0x7c8] sm:$0xff]
        %v2940 = vld [vmem:[#allocation3 + $0x7d0] sm:$0xff]
        %v2941 = vld [vmem:[#allocation3 + $0x7d8] sm:$0xff]
        %v2942 = vld [vmem:[#allocation3 + $0x7e0] sm:$0xff]
        %v2943 = vld [vmem:[#allocation3 + $0x7e8] sm:$0xff]
        %v2944 = vld [vmem:[#allocation3 + $0x7f0] sm:$0xff]
        %v2945 = vld [vmem:[#allocation3 + $0x7f8] sm:$0xff]
        %2946 = vmatprep.subr.mxu0 %v2811
        %2947 = vmatpush1.msra.mxu0 %v2810
        %2948 = vmatprep.subr.mxu0 %v2803
        %2949 = vmatpush1.msra.mxu0 %v2802
        %2950 = vmatprep.subr.mxu0 %v2795
        %2951 = vmatpush1.msra.mxu0 %v2794
        %2952 = vmatprep.subr.mxu0 %v2787
        %2953 = vmatpush1.msra.mxu0 %v2786
        %2954 = vmatprep.subr.mxu0 %v2779
        %2955 = vmatpush1.msra.mxu0 %v2778
        %2956 = vmatprep.subr.mxu0 %v2771
        %2957 = vmatpush1.msra.mxu0 %v2770
        %2958 = vmatprep.subr.mxu0 %v2763
        %2959 = vmatpush1.msra.mxu0 %v2762
        %2960 = vmatprep.subr.mxu0 %v2755
        %2961 = vmatpush1.msra.mxu0 %v2754
        %2962 = vmatprep.subr.mxu0 %v2747
        %2963 = vmatpush1.msra.mxu0 %v2746
        %2964 = vmatprep.subr.mxu0 %v2739
        %2965 = vmatpush1.msra.mxu0 %v2738
        %2966 = vmatprep.subr.mxu0 %v2731
        %2967 = vmatpush1.msra.mxu0 %v2730
        %2968 = vmatprep.subr.mxu0 %v2723
        %2969 = vmatpush1.msra.mxu0 %v2722
        %2970 = vmatprep.subr.mxu0 %v2715
        %2971 = vmatpush1.msra.mxu0 %v2714
        %2972 = vmatprep.subr.mxu0 %v2707
        %2973 = vmatpush1.msra.mxu0 %v2706
        %2974 = vmatprep.subr.mxu0 %v2699
        %2975 = vmatpush1.msra.mxu0 %v2698
        %2976 = vmatprep.subr.mxu0 %v2691
        %2977 = vmatpush1.msra.mxu0 %v2690
        %2978 = vmatprep.subr.mxu0 %v2939
        %2979 = vmatpush2.msra.mxu0 %v2938
        %2980 = vmatprep.subr.mxu0 %v2931
        %2981 = vmatpush2.msra.mxu0 %v2930
        %2982 = vmatprep.subr.mxu0 %v2923
        %2983 = vmatpush2.msra.mxu0 %v2922
        %2984 = vmatprep.subr.mxu0 %v2915
        %2985 = vmatpush2.msra.mxu0 %v2914
        %2986 = vmatprep.subr.mxu0 %v2907
        %2987 = vmatpush2.msra.mxu0 %v2906
        %2988 = vmatprep.subr.mxu0 %v2899
        %2989 = vmatpush2.msra.mxu0 %v2898
        %2990 = vmatprep.subr.mxu0 %v2891
        %2991 = vmatpush2.msra.mxu0 %v2890
        %2992 = vmatprep.subr.mxu0 %v2883
        %2993 = vmatpush2.msra.mxu0 %v2882
        %2994 = vmatprep.subr.mxu0 %v2875
        %2995 = vmatpush2.msra.mxu0 %v2874
        %2996 = vmatprep.subr.mxu0 %v2867
        %2997 = vmatpush2.msra.mxu0 %v2866
        %2998 = vmatprep.subr.mxu0 %v2859
        %2999 = vmatpush2.msra.mxu0 %v2858
        %3000 = vmatprep.subr.mxu0 %v2851
        %3001 = vmatpush2.msra.mxu0 %v2850
        %3002 = vmatprep.subr.mxu0 %v2843
        %3003 = vmatpush2.msra.mxu0 %v2842
        %3004 = vmatprep.subr.mxu0 %v2835
        %3005 = vmatpush2.msra.mxu0 %v2834
        %3006 = vmatprep.subr.mxu0 %v2827
        %3007 = vmatpush2.msra.mxu0 %v2826
        %3008 = vmatprep.subr.mxu0 %v2819
        %3009 = vmatpush2.msra.mxu0 %v2818
        %3010 = vmatprep.mubr.f32.mxu0 %v2688
        %3011 = vmatmul.mubr.f32.gmra.mxu0 %v2686
        %v3012 = vpop.f32.mrf.mxu0
        %v3013 = vadd.f32 0.0, %v3012
        %v3014 = vpop.f32.mrf.mxu0
        %v3015 = vadd.f32 0.0, %v3014
        %3016 = vdwg.mxu0
        %3017 = vmatprep.subr.mxu0 %v2813
        %3018 = vmatpush1.msra.mxu0 %v2812
        %3019 = vmatprep.subr.mxu0 %v2805
        %3020 = vmatpush1.msra.mxu0 %v2804
        %3021 = vmatprep.subr.mxu0 %v2797
        %3022 = vmatpush1.msra.mxu0 %v2796
        %3023 = vmatprep.subr.mxu0 %v2789
        %3024 = vmatpush1.msra.mxu0 %v2788
        %3025 = vmatprep.subr.mxu0 %v2781
        %3026 = vmatpush1.msra.mxu0 %v2780
        %3027 = vmatprep.subr.mxu0 %v2773
        %3028 = vmatpush1.msra.mxu0 %v2772
        %3029 = vmatprep.subr.mxu0 %v2765
        %3030 = vmatpush1.msra.mxu0 %v2764
        %3031 = vmatprep.subr.mxu0 %v2757
        %3032 = vmatpush1.msra.mxu0 %v2756
        %3033 = vmatprep.subr.mxu0 %v2749
        %3034 = vmatpush1.msra.mxu0 %v2748
        %3035 = vmatprep.subr.mxu0 %v2741
        %3036 = vmatpush1.msra.mxu0 %v2740
        %3037 = vmatprep.subr.mxu0 %v2733
        %3038 = vmatpush1.msra.mxu0 %v2732
        %3039 = vmatprep.subr.mxu0 %v2725
        %3040 = vmatpush1.msra.mxu0 %v2724
        %3041 = vmatprep.subr.mxu0 %v2717
        %3042 = vmatpush1.msra.mxu0 %v2716
        %3043 = vmatprep.subr.mxu0 %v2709
        %3044 = vmatpush1.msra.mxu0 %v2708
        %3045 = vmatprep.subr.mxu0 %v2701
        %3046 = vmatpush1.msra.mxu0 %v2700
        %3047 = vmatprep.subr.mxu0 %v2693
        %3048 = vmatpush1.msra.mxu0 %v2692
        %3049 = vmatprep.subr.mxu0 %v2941
        %3050 = vmatpush2.msra.mxu0 %v2940
        %3051 = vmatprep.subr.mxu0 %v2933
        %3052 = vmatpush2.msra.mxu0 %v2932
        %3053 = vmatprep.subr.mxu0 %v2925
        %3054 = vmatpush2.msra.mxu0 %v2924
        %3055 = vmatprep.subr.mxu0 %v2917
        %3056 = vmatpush2.msra.mxu0 %v2916
        %3057 = vmatprep.subr.mxu0 %v2909
        %3058 = vmatpush2.msra.mxu0 %v2908
        %3059 = vmatprep.subr.mxu0 %v2901
        %3060 = vmatpush2.msra.mxu0 %v2900
        %3061 = vmatprep.subr.mxu0 %v2893
        %3062 = vmatpush2.msra.mxu0 %v2892
        %3063 = vmatprep.subr.mxu0 %v2885
        %3064 = vmatpush2.msra.mxu0 %v2884
        %3065 = vmatprep.subr.mxu0 %v2877
        %3066 = vmatpush2.msra.mxu0 %v2876
        %3067 = vmatprep.subr.mxu0 %v2869
        %3068 = vmatpush2.msra.mxu0 %v2868
        %3069 = vmatprep.subr.mxu0 %v2861
        %3070 = vmatpush2.msra.mxu0 %v2860
        %3071 = vmatprep.subr.mxu0 %v2853
        %3072 = vmatpush2.msra.mxu0 %v2852
        %3073 = vmatprep.subr.mxu0 %v2845
        %3074 = vmatpush2.msra.mxu0 %v2844
        %3075 = vmatprep.subr.mxu0 %v2837
        %3076 = vmatpush2.msra.mxu0 %v2836
        %3077 = vmatprep.subr.mxu0 %v2829
        %3078 = vmatpush2.msra.mxu0 %v2828
        %3079 = vmatprep.subr.mxu0 %v2821
        %3080 = vmatpush2.msra.mxu0 %v2820
        %3081 = vmatprep.mubr.f32.mxu0 %v2688
        %3082 = vmatmul.mubr.f32.gmra.mxu0 %v2686
        %v3083 = vpop.f32.mrf.mxu0
        %v3084 = vadd.f32 0.0, %v3083
        %v3085 = vpop.f32.mrf.mxu0
        %v3086 = vadd.f32 0.0, %v3085
        %3087 = vdwg.mxu0
        %3088 = vmatprep.subr.mxu0 %v2815
        %3089 = vmatpush1.msra.mxu0 %v2814
        %3090 = vmatprep.subr.mxu0 %v2807
        %3091 = vmatpush1.msra.mxu0 %v2806
        %3092 = vmatprep.subr.mxu0 %v2799
        %3093 = vmatpush1.msra.mxu0 %v2798
        %3094 = vmatprep.subr.mxu0 %v2791
        %3095 = vmatpush1.msra.mxu0 %v2790
        %3096 = vmatprep.subr.mxu0 %v2783
        %3097 = vmatpush1.msra.mxu0 %v2782
        %3098 = vmatprep.subr.mxu0 %v2775
        %3099 = vmatpush1.msra.mxu0 %v2774
        %3100 = vmatprep.subr.mxu0 %v2767
        %3101 = vmatpush1.msra.mxu0 %v2766
        %3102 = vmatprep.subr.mxu0 %v2759
        %3103 = vmatpush1.msra.mxu0 %v2758
        %3104 = vmatprep.subr.mxu0 %v2751
        %3105 = vmatpush1.msra.mxu0 %v2750
        %3106 = vmatprep.subr.mxu0 %v2743
        %3107 = vmatpush1.msra.mxu0 %v2742
        %3108 = vmatprep.subr.mxu0 %v2735
        %3109 = vmatpush1.msra.mxu0 %v2734
        %3110 = vmatprep.subr.mxu0 %v2727
        %3111 = vmatpush1.msra.mxu0 %v2726
        %3112 = vmatprep.subr.mxu0 %v2719
        %3113 = vmatpush1.msra.mxu0 %v2718
        %3114 = vmatprep.subr.mxu0 %v2711
        %3115 = vmatpush1.msra.mxu0 %v2710
        %3116 = vmatprep.subr.mxu0 %v2703
        %3117 = vmatpush1.msra.mxu0 %v2702
        %3118 = vmatprep.subr.mxu0 %v2695
        %3119 = vmatpush1.msra.mxu0 %v2694
        %3120 = vmatprep.subr.mxu0 %v2943
        %3121 = vmatpush2.msra.mxu0 %v2942
        %3122 = vmatprep.subr.mxu0 %v2935
        %3123 = vmatpush2.msra.mxu0 %v2934
        %3124 = vmatprep.subr.mxu0 %v2927
        %3125 = vmatpush2.msra.mxu0 %v2926
        %3126 = vmatprep.subr.mxu0 %v2919
        %3127 = vmatpush2.msra.mxu0 %v2918
        %3128 = vmatprep.subr.mxu0 %v2911
        %3129 = vmatpush2.msra.mxu0 %v2910
        %3130 = vmatprep.subr.mxu0 %v2903
        %3131 = vmatpush2.msra.mxu0 %v2902
        %3132 = vmatprep.subr.mxu0 %v2895
        %3133 = vmatpush2.msra.mxu0 %v2894
        %3134 = vmatprep.subr.mxu0 %v2887
        %3135 = vmatpush2.msra.mxu0 %v2886
        %3136 = vmatprep.subr.mxu0 %v2879
        %3137 = vmatpush2.msra.mxu0 %v2878
        %3138 = vmatprep.subr.mxu0 %v2871
        %3139 = vmatpush2.msra.mxu0 %v2870
        %3140 = vmatprep.subr.mxu0 %v2863
        %3141 = vmatpush2.msra.mxu0 %v2862
        %3142 = vmatprep.subr.mxu0 %v2855
        %3143 = vmatpush2.msra.mxu0 %v2854
        %3144 = vmatprep.subr.mxu0 %v2847
        %3145 = vmatpush2.msra.mxu0 %v2846
        %3146 = vmatprep.subr.mxu0 %v2839
        %3147 = vmatpush2.msra.mxu0 %v2838
        %3148 = vmatprep.subr.mxu0 %v2831
        %3149 = vmatpush2.msra.mxu0 %v2830
        %3150 = vmatprep.subr.mxu0 %v2823
        %3151 = vmatpush2.msra.mxu0 %v2822
        %3152 = vmatprep.mubr.f32.mxu0 %v2688
        %3153 = vmatmul.mubr.f32.gmra.mxu0 %v2686
        %v3154 = vpop.f32.mrf.mxu0
        %v3155 = vadd.f32 0.0, %v3154
        %v3156 = vpop.f32.mrf.mxu0
        %v3157 = vadd.f32 0.0, %v3156
        %3158 = vdwg.mxu0
        %3159 = vmatprep.subr.mxu0 %v2817
        %3160 = vmatpush1.msra.mxu0 %v2816
        %3161 = vmatprep.subr.mxu0 %v2809
        %3162 = vmatpush1.msra.mxu0 %v2808
        %3163 = vmatprep.subr.mxu0 %v2801
        %3164 = vmatpush1.msra.mxu0 %v2800
        %3165 = vmatprep.subr.mxu0 %v2793
        %3166 = vmatpush1.msra.mxu0 %v2792
        %3167 = vmatprep.subr.mxu0 %v2785
        %3168 = vmatpush1.msra.mxu0 %v2784
        %3169 = vmatprep.subr.mxu0 %v2777
        %3170 = vmatpush1.msra.mxu0 %v2776
        %3171 = vmatprep.subr.mxu0 %v2769
        %3172 = vmatpush1.msra.mxu0 %v2768
        %3173 = vmatprep.subr.mxu0 %v2761
        %3174 = vmatpush1.msra.mxu0 %v2760
        %3175 = vmatprep.subr.mxu0 %v2753
        %3176 = vmatpush1.msra.mxu0 %v2752
        %3177 = vmatprep.subr.mxu0 %v2745
        %3178 = vmatpush1.msra.mxu0 %v2744
        %3179 = vmatprep.subr.mxu0 %v2737
        %3180 = vmatpush1.msra.mxu0 %v2736
        %3181 = vmatprep.subr.mxu0 %v2729
        %3182 = vmatpush1.msra.mxu0 %v2728
        %3183 = vmatprep.subr.mxu0 %v2721
        %3184 = vmatpush1.msra.mxu0 %v2720
        %3185 = vmatprep.subr.mxu0 %v2713
        %3186 = vmatpush1.msra.mxu0 %v2712
        %3187 = vmatprep.subr.mxu0 %v2705
        %3188 = vmatpush1.msra.mxu0 %v2704
        %3189 = vmatprep.subr.mxu0 %v2697
        %3190 = vmatpush1.msra.mxu0 %v2696
        %3191 = vmatprep.subr.mxu0 %v2945
        %3192 = vmatpush2.msra.mxu0 %v2944
        %3193 = vmatprep.subr.mxu0 %v2937
        %3194 = vmatpush2.msra.mxu0 %v2936
        %3195 = vmatprep.subr.mxu0 %v2929
        %3196 = vmatpush2.msra.mxu0 %v2928
        %3197 = vmatprep.subr.mxu0 %v2921
        %3198 = vmatpush2.msra.mxu0 %v2920
        %3199 = vmatprep.subr.mxu0 %v2913
        %3200 = vmatpush2.msra.mxu0 %v2912
        %3201 = vmatprep.subr.mxu0 %v2905
        %3202 = vmatpush2.msra.mxu0 %v2904
        %3203 = vmatprep.subr.mxu0 %v2897
        %3204 = vmatpush2.msra.mxu0 %v2896
        %3205 = vmatprep.subr.mxu0 %v2889
        %3206 = vmatpush2.msra.mxu0 %v2888
        %3207 = vmatprep.subr.mxu0 %v2881
        %3208 = vmatpush2.msra.mxu0 %v2880
        %3209 = vmatprep.subr.mxu0 %v2873
        %3210 = vmatpush2.msra.mxu0 %v2872
        %3211 = vmatprep.subr.mxu0 %v2865
        %3212 = vmatpush2.msra.mxu0 %v2864
        %3213 = vmatprep.subr.mxu0 %v2857
        %3214 = vmatpush2.msra.mxu0 %v2856
        %3215 = vmatprep.subr.mxu0 %v2849
        %3216 = vmatpush2.msra.mxu0 %v2848
        %3217 = vmatprep.subr.mxu0 %v2841
        %3218 = vmatpush2.msra.mxu0 %v2840
        %3219 = vmatprep.subr.mxu0 %v2833
        %3220 = vmatpush2.msra.mxu0 %v2832
        %3221 = vmatprep.subr.mxu0 %v2825
        %3222 = vmatpush2.msra.mxu0 %v2824
        %3223 = vmatprep.mubr.f32.mxu0 %v2688
        %3224 = vmatmul.mubr.f32.gmra.mxu0 %v2686
        %v3225 = vpop.f32.mrf.mxu0
        %v3226 = vadd.f32 0.0, %v3225
        %v3227 = vpop.f32.mrf.mxu0
        %v3228 = vadd.f32 0.0, %v3227
        %3229 = vdwg.mxu0
        %v3238 = vcombine.low %v3013, %v3015
        %v3239 = vcombine.low %v3084, %v3086
        %v3240 = vcombine.low %v3155, %v3157
        %v3241 = vcombine.low %v3226, %v3228
        %v3243 = vunpack.c.l.s4 1966171168
        %v3244 = vunpack.c.0.s8 %v3243
        %v3245 = vlaneseq
        %v3246 = vshrl.u32 %v3245, 7
        %v3247 = vsub.s32 %v3244, %v3246
        %v3248 = vrot.slane %v3238, %v3247
        %v3250 = vunpack.c.l.s4 1966171168
        %v3251 = vunpack.c.0.s8 %v3250
        %v3252 = vlaneseq
        %v3253 = vshrl.u32 %v3252, 7
        %v3254 = vsub.s32 %v3251, %v3253
        %v3255 = vrot.slane %v3239, %v3254
        %v3257 = vunpack.c.l.s4 1966171168
        %v3258 = vunpack.c.0.s8 %v3257
        %v3259 = vlaneseq
        %v3260 = vshrl.u32 %v3259, 7
        %v3261 = vsub.s32 %v3258, %v3260
        %v3262 = vrot.slane %v3240, %v3261
        %v3264 = vunpack.c.l.s4 1966171168
        %v3265 = vunpack.c.0.s8 %v3264
        %v3266 = vlaneseq
        %v3267 = vshrl.u32 %v3266, 7
        %v3268 = vsub.s32 %v3265, %v3267
        %v3269 = vrot.slane %v3241, %v3268
        %v3270 = vcombine.low %v3248, %v3255
        %v3271 = vcombine.low %v3262, %v3269
        %v3273 = vunpack.c.l.s4 1966171168
        %v3274 = vunpack.c.0.s8 %v3273
        %v3275 = vlaneseq
        %v3276 = vshrl.u32 %v3275, 7
        %v3277 = vsub.s32 %v3274, %v3276
        %v3278 = vrot.slane %v3270, %v3277
        %v3280 = vunpack.c.l.s4 1966171168
        %v3281 = vunpack.c.0.s8 %v3280
        %v3282 = vlaneseq
        %v3283 = vshrl.u32 %v3282, 7
        %v3284 = vsub.s32 %v3281, %v3283
        %v3285 = vrot.slane %v3271, %v3284
        %v3286 = vcombine.low %v3278, %v3285
        %3288 = vst [vmem:[%s533] sm:$0xff] %v3286
        %s3289 = sand.u32 %s340, 1
        %s3290 = scalar_lea.sflag [#allocation5], %s3289
        %s3291 = sand.u32 %s340, 1
        %s3292 = smul.addr %s3291, 8
        %s3293 = scalar_lea.vmem [#allocation12], %s3292
        // Predicated region
        $region97: #{tpu_custom_call.1} parent=75 // pred_check
          %p3294 = pneg %p350
        $region98: #{tpu_custom_call.1} parent=75 // pred_check_branch
          %3296 = sbr.rel (%p3294) target = $region100
        $region99: #{tpu_custom_call.1} parent=75 // pred_region
          %s3298 = ssub.s32 128, 128
          %3299 = vsyncadd %s3290, %s3298
          %s3300 = smul.addr %s33, 8
          %s3301 = smul.addr %s3300, 16
          %s3302 = scalar_lea.hbm %s14, %s3301
          %s3304 = sshll.u32 %s3293, 4
          %s3305 = int_to_ptr.vmem [resolvable:$true] %s3304
          %3307 = dma.vmem_to_hbm [thread:$0]  %s3305, 128, %s3302, %s3290
        $region100: #{tpu_custom_call.1} parent=75 // pred_fallthru
          _
      $region76: #{tpu_custom_call.1} parent=5 // pred_fallthru
        _
      %p3308 = scmp.le.s32.totalorder 2, %s28
      // Predicated region
      $region101: #{tpu_custom_call.1} parent=5 // pred_check
        %p3309 = pneg %p3308
      $region102: #{tpu_custom_call.1} parent=5 // pred_check_branch
        %3311 = sbr.rel (%p3309) target = $region104
      $region103: #{tpu_custom_call.1} parent=5 // pred_region
        %s3312 = ssub.s32 %s28, 2
        // Predicated region
        $region105: #{tpu_custom_call.1} parent=103 // pred_check
          %p3313 = pneg %p356
        $region106: #{tpu_custom_call.1} parent=103 // pred_check_branch
          %3315 = sbr.rel (%p3313) target = $region108
        $region107: #{tpu_custom_call.1} parent=103 // pred_region
          %s3316 = sand.u32 %s341, 1
          %s3317 = scalar_lea.sflag [#allocation5], %s3316
          %s3318 = sand.u32 %s341, 1
          %s3319 = smul.addr %s3318, 8
          %s3320 = scalar_lea.vmem [#allocation12], %s3319
          %3321 = dma.done %s3317, 128
        $region108: #{tpu_custom_call.1} parent=103 // pred_fallthru
          _
      $region104: #{tpu_custom_call.1} parent=5 // pred_fallthru
        _
    $region6: #{tpu_custom_call.1} parent=1 // loop_footer
      %s32 = sadd.s32 1, %s28
    $region7: #{tpu_custom_call.1} parent=1 // loop_footer_branch
      %27 = sbr.rel target = $region3
    $region8: #{tpu_custom_call.1} parent=1 // loop_exit
      _
    %3322 = vsyncpa [#allocation4], 1
    %s3323 = scalar_lea.sflag [#allocation4], 1
    %3324 = vsyncpa %s3323, 1
    %3325 = vsyncpa [#allocation7], 1
    %3326 = vsyncpa [#allocation10], 1
    %3327 = vsyncpa [#allocation5], 1
    %s3328 = scalar_lea.sflag [#allocation5], 1
    %3329 = vsyncpa %s3328, 1

</llo_original>
